<compile_context>
chip_gen: v5e
topology: v5e:2x2
jax: 0.10.0
libtpu: 0.0.40
codegen_flags: <defaults>
</compile_context>

<pallas_src>
import jax
import jax.numpy as jnp
from jax.experimental import pallas as pl
from jax.experimental.pallas import tpu as pltpu


# ----------------------------------------------------------------------------
# Small host-side helpers (run at trace time, pure Python).
# ----------------------------------------------------------------------------
def _tpu_generation():
    """Best-effort TPU generation from device_kind; conservative fallback."""
    try:
        kind = jax.devices()[0].device_kind.lower()
    except Exception:
        return 5
    for g in (7, 6, 5):
        if f"v{g}" in kind:
            return g
    return 5


def _round_up(n, m):
    return ((n + m - 1) // m) * m


def _pick_tile(dim, cap):
    """Largest multiple-of-256 tile <= cap dividing dim (dim % 256 == 0)."""
    if dim <= cap:
        return dim
    for t in range(cap - cap % 256, 255, -256):
        if dim % t == 0:
            return t
    return 256  # dim is a multiple of 256, so 256 always divides it


# ----------------------------------------------------------------------------
# Fused kernel.
# Grid = (nj, nk): j tiles output columns ('parallel'), k tiles the reduction
# ('arbitrary', last).  Output tile is resident across k; accumulate in place.
#   out[B, tn] = (x * c_in) @ W[:, tn] + cond_mix @ Wc[:, tn] + b[tn]
# ----------------------------------------------------------------------------
def _cfg_denoise_kernel(x_ref, cinv_ref, cmix_ref, wc_ref, b_ref, w_ref,
                        out_ref, h_ref):
    k = pl.program_id(1)
    tk = w_ref.shape[0]

    @pl.when(k == 0)
    def _():
        # c_in(sigma)-scaled activations for the whole (B, D) row block, cast
        # to bf16 once per j-sweep.  x itself is DMA'd only once (constant
        # index_map); this is recomputed at k==0 so it is megacore-safe.
        h_ref[...] = (x_ref[...] * cinv_ref[...]).astype(jnp.bfloat16)
        # Conditioning projection (already CFG-mixed) + bias initializes the
        # resident f32 output tile: tiny E x tn matmul, no second pallas_call.
        out_ref[...] = (
            jnp.dot(cmix_ref[...], wc_ref[...],
                    preferred_element_type=jnp.float32)
            + b_ref[...]
        )

    # bf16 MXU matmul with f32 accumulation directly into the resident tile.
    off = pl.multiple_of(k * tk, 256)
    out_ref[...] += jnp.dot(h_ref[:, pl.ds(off, tk)], w_ref[...],
                            preferred_element_type=jnp.float32)


def cfg_denoiser_pallas(x_flat, c_inv, cond_mix, w_bf, wc_bf, b2):
    B, Dp = x_flat.shape  # Dp is already a multiple of 256
    E = cond_mix.shape[-1]
    gen = _tpu_generation()

    # 2048^2 bf16 double-buffered = 16 MiB: fits v6e/v7x 32 MiB scoped default,
    # not v5e's 16 MiB -> keep 1024 there.
    cap = 2048 if gen >= 6 else 1024
    tk = _pick_tile(Dp, cap)
    if gen >= 7 and Dp >= 512:
        # Guarantee nj >= 2 so the 'parallel' j axis shards across both v7x
        # TensorCores (each TC streams half of W).
        tn = _pick_tile(Dp, min(cap, max(256, Dp // 2)))
    else:
        # Single TC: full-width output -> contiguous W row-strip DMAs.
        tn = _pick_tile(Dp, cap)
    nj, nk = Dp // tn, Dp // tk

    w_spec = pl.BlockSpec((tk, tn), lambda j, k: (k, j))
    if nk >= 3:
        # Deeper W pipelining only when the reduction has many short steps.
        w_spec = pl.BlockSpec((tk, tn), lambda j, k: (k, j),
                              pipeline_mode=pl.Buffered(3))

    cost = pl.CostEstimate(
        flops=2 * B * Dp * Dp + 2 * B * E * Dp * nj,
        transcendentals=0,
        bytes_accessed=(Dp * Dp * 2            # W (bf16), dominant stream
                        + B * Dp * 4           # x
                        + B * Dp * 4           # out
                        + E * Dp * 2 + Dp * 4  # Wc, bias
                        + B * E * 2 + B * 4),  # cond_mix, c_inv
    )

    return pl.pallas_call(
        _cfg_denoise_kernel,
        out_shape=jax.ShapeDtypeStruct((B, Dp), jnp.float32),
        grid_spec=pltpu.PrefetchScalarGridSpec(
            num_scalar_prefetch=0,
            grid=(nj, nk),
            in_specs=[
                pl.BlockSpec((B, Dp), lambda j, k: (0, 0)),   # x, resident (f32)
                pl.BlockSpec((B, 1), lambda j, k: (0, 0)),    # 1/sqrt(sigma^2+1)
                pl.BlockSpec((B, E), lambda j, k: (0, 0)),    # cond_mix (bf16)
                pl.BlockSpec((E, tn), lambda j, k: (0, j)),   # Wc       (bf16)
                pl.BlockSpec((1, tn), lambda j, k: (0, j)),   # bias     (f32)
                w_spec,                                       # W        (bf16)
            ],
            out_specs=pl.BlockSpec((B, tn), lambda j, k: (0, j)),
            scratch_shapes=[pltpu.VMEM((B, Dp), jnp.bfloat16)],  # h = (x*c_in).bf16
        ),
        compiler_params=pltpu.CompilerParams(
            # N axis parallel (megacore-shardable on v7x), K axis arbitrary (last).
            dimension_semantics=("parallel", "arbitrary")),
        cost_estimate=cost,
    )(x_flat, c_inv, cond_mix, wc_bf, b2, w_bf)


# ----------------------------------------------------------------------------
# CFGDenoiser.forward
# ----------------------------------------------------------------------------
@jax.jit
def cfg_denoiser_forward(x, sigma, uncond, cond, cond_scale, w, wc, b):
    B, C, H, W_sp = x.shape
    D = C * H * W_sp
    x_flat = x.reshape(B, D).astype(jnp.float32)

    # Per-sample c_in(sigma).  sigma_in = cat([sigma]*2) means both CFG halves
    # share the same c_in, so the x @ W term is computed once (linear model).
    c_inv = (1.0 / jnp.sqrt(sigma.astype(jnp.float32) ** 2 + 1.0)).reshape(B, 1)

    # CFG combine folded through the linear conditioning projection:
    #   u + (c - u)*s == (x*c_in)@W + (uncond + (cond - uncond)*s) @ Wc + b
    cond_mix = (uncond.astype(jnp.float32)
                + (cond.astype(jnp.float32) - uncond.astype(jnp.float32))
                * cond_scale).astype(jnp.bfloat16)

    # TODO(synk): on v7x, store W as fp8 (e4m3) to halve the dominant HBM
    # stream (MXU-native there); kept bf16 for accuracy on all generations.
    w_bf = w.astype(jnp.bfloat16)
    wc_bf = wc.astype(jnp.bfloat16)
    b_f = b.astype(jnp.float32)

    # Zero-pad the feature dim to a multiple of 256 so every tile is bounded
    # and MXU/lane aligned.  Exact: padded x cols / W rows contribute zero and
    # padded output cols are sliced away.
    Dp = _round_up(D, 256)
    if Dp != D:
        pad = Dp - D
        x_flat = jnp.pad(x_flat, ((0, 0), (0, pad)))
        w_bf = jnp.pad(w_bf, ((0, pad), (0, pad)))
        wc_bf = jnp.pad(wc_bf, ((0, 0), (0, pad)))
        b_f = jnp.pad(b_f, (0, pad))

    out = cfg_denoiser_pallas(x_flat, c_inv, cond_mix, w_bf, wc_bf,
                              b_f.reshape(1, Dp))
    return out[:, :D].reshape(B, C, H, W_sp)


# ----------------------------------------------------------------------------
# Pure-JAX reference: literal module flow (cat -> inner -> chunk -> combine)
# in float32 (weights upcast from their stored dtype).
# ----------------------------------------------------------------------------
def cfg_denoiser_reference(x, sigma, uncond, cond, cond_scale, w, wc, b):
    B, C, H, W_sp = x.shape
    D = C * H * W_sp
    x_flat = x.reshape(B, D).astype(jnp.float32)
    x_in = jnp.concatenate([x_flat, x_flat], axis=0)
    sigma_in = jnp.concatenate([sigma, sigma], axis=0).astype(jnp.float32)
    cond_in = jnp.concatenate([uncond, cond], axis=0).astype(jnp.float32)
    c_inv = (1.0 / jnp.sqrt(sigma_in ** 2 + 1.0)).reshape(-1, 1)
    out = ((x_in * c_inv) @ w.astype(jnp.float32)
           + cond_in @ wc.astype(jnp.float32)
           + b.astype(jnp.float32)[None, :])
    u, c = out[:B], out[B:]
    return (u + (c - u) * cond_scale).reshape(B, C, H, W_sp)


if __name__ == "__main__":
    B, C, H, W = 2, 4, 16, 16
    D = C * H * W          # 1024
    E = 32                 # conditioning embedding width

    key = jax.random.PRNGKey(0)
    kx, ks, ku, kc, kw, kwc, kb = jax.random.split(key, 7)

    x = jax.random.normal(kx, (B, C, H, W), dtype=jnp.float32)
    sigma = jax.random.uniform(ks, (B,), dtype=jnp.float32, minval=0.1, maxval=2.0)
    uncond = jax.random.normal(ku, (B, E), dtype=jnp.float32)
    cond = jax.random.normal(kc, (B, E), dtype=jnp.float32)
    cond_scale = 7.5

    # Deterministic synthetic inner-model parameters; weights stored in bf16
    # (the kernel streams them at half the HBM bytes of f32).
    w = (jax.random.normal(kw, (D, D), dtype=jnp.float32)
         * (1.0 / jnp.sqrt(D))).astype(jnp.bfloat16)
    wc = (jax.random.normal(kwc, (E, D), dtype=jnp.float32)
          * (1.0 / jnp.sqrt(E))).astype(jnp.bfloat16)
    b = jax.random.normal(kb, (D,), dtype=jnp.float32) * 0.01

    out = cfg_denoiser_forward(x, sigma, uncond, cond, cond_scale, w, wc, b)
    out = jax.block_until_ready(out)

    ref = cfg_denoiser_reference(x, sigma, uncond, cond, cond_scale, w, wc, b)
    assert out.shape == (B, C, H, W)
    # bf16 activations (h, cond_mix) in the kernel vs. f32 reference math.
    assert jnp.allclose(out, ref, atol=1e-1, rtol=5e-2), "mismatch vs reference"

    print("KERNEL_OK")
</pallas_src>

<mosaic_0001>
module attributes {stable_mosaic.version = 11 : i64} {
  func.func @_cfg_denoise_kernel(%arg0: i32, %arg1: i32, %arg2: memref<2x1024xf32, #tpu.memory_space<vmem>>, %arg3: memref<2x1xf32, #tpu.memory_space<vmem>>, %arg4: memref<2x32xbf16, #tpu.memory_space<vmem>>, %arg5: memref<32x1024xbf16, #tpu.memory_space<vmem>>, %arg6: memref<1x1024xf32, #tpu.memory_space<vmem>>, %arg7: memref<1024x1024xbf16, #tpu.memory_space<vmem>>, %arg8: memref<2x1024xf32, #tpu.memory_space<vmem>>, %arg9: memref<2x1024xbf16, #tpu.memory_space<vmem>>) attributes {dimension_semantics = [#tpu.dimension_semantics<parallel>, #tpu.dimension_semantics<arbitrary>], iteration_bounds = array<i64: 1, 1>, scalar_prefetch = 0 : i64, scratch_operands = 1 : i64, tpu.core_type = #tpu.core_type<tc>, window_params = [{pipeline_mode = #tpu.pipeline_mode<synchronous>, transform_indices = @transform_0, window_bounds = array<i64: 2, 1024>}, {pipeline_mode = #tpu.pipeline_mode<synchronous>, transform_indices = @transform_1, window_bounds = array<i64: 2, 1>}, {pipeline_mode = #tpu.pipeline_mode<synchronous>, transform_indices = @transform_2, window_bounds = array<i64: 2, 32>}, {transform_indices = @transform_3, window_bounds = array<i64: 32, 1024>}, {transform_indices = @transform_4, window_bounds = array<i64: 1, 1024>}, {transform_indices = @transform_5, window_bounds = array<i64: 1024, 1024>}, {transform_indices = @transform_6, window_bounds = array<i64: 2, 1024>}]} {
    %c0_i32 = arith.constant 0 : i32
    %0 = arith.cmpi eq, %arg1, %c0_i32 : i32
    %1 = arith.extui %0 : i1 to i32
    %c0_i32_0 = arith.constant 0 : i32
    %2 = arith.cmpi ne, %1, %c0_i32_0 : i32
    scf.if %2 {
      %c0_7 = arith.constant 0 : index
      %c0_8 = arith.constant 0 : index
      %12 = vector.load %arg2[%c0_7, %c0_8] : memref<2x1024xf32, #tpu.memory_space<vmem>>, vector<2x1024xf32>
      %c0_9 = arith.constant 0 : index
      %c0_10 = arith.constant 0 : index
      %13 = vector.load %arg3[%c0_9, %c0_10] : memref<2x1xf32, #tpu.memory_space<vmem>>, vector<2x1xf32>
      %14 = vector.broadcast %13 : vector<2x1xf32> to vector<2x1024xf32>
      %15 = arith.mulf %12, %14 : vector<2x1024xf32>
      %16 = arith.truncf %15 : vector<2x1024xf32> to vector<2x1024xbf16>
      %c0_11 = arith.constant 0 : index
      %c0_12 = arith.constant 0 : index
      %17 = vector.load %arg9[%c0_11, %c0_12] : memref<2x1024xbf16, #tpu.memory_space<vmem>>, vector<2x1024xbf16>
      tpu.vector_store %arg9[%c0_11, %c0_12], %16 {strides = array<i32>} : memref<2x1024xbf16, #tpu.memory_space<vmem>>, vector<2x1024xbf16>,
      %c0_13 = arith.constant 0 : index
      %c0_14 = arith.constant 0 : index
      %18 = vector.load %arg4[%c0_13, %c0_14] : memref<2x32xbf16, #tpu.memory_space<vmem>>, vector<2x32xbf16>
      %c0_15 = arith.constant 0 : index
      %c0_16 = arith.constant 0 : index
      %19 = vector.load %arg5[%c0_15, %c0_16] : memref<32x1024xbf16, #tpu.memory_space<vmem>>, vector<32x1024xbf16>
      %cst_17 = arith.constant dense<0.000000e+00> : vector<2x1024xf32>
      %20 = tpu.matmul %18, %19, %cst_17 {dimension_numbers = #tpu.dot_dimension_numbers<[1], [0], [0], [1], [0, 0, 1, 1], [], []>} : vector<2x32xbf16>, vector<32x1024xbf16>, vector<2x1024xf32> -> vector<2x1024xf32>
      %c0_18 = arith.constant 0 : index
      %c0_19 = arith.constant 0 : index
      %21 = vector.load %arg6[%c0_18, %c0_19] : memref<1x1024xf32, #tpu.memory_space<vmem>>, vector<1x1024xf32>
      %22 = vector.broadcast %21 : vector<1x1024xf32> to vector<2x1024xf32>
      %23 = arith.addf %20, %22 : vector<2x1024xf32>
      %c0_20 = arith.constant 0 : index
      %c0_21 = arith.constant 0 : index
      %24 = vector.load %arg8[%c0_20, %c0_21] : memref<2x1024xf32, #tpu.memory_space<vmem>>, vector<2x1024xf32>
      tpu.vector_store %arg8[%c0_20, %c0_21], %23 {strides = array<i32>} : memref<2x1024xf32, #tpu.memory_space<vmem>>, vector<2x1024xf32>,
    } else {
    }
    %c1024_i32 = arith.constant 1024 : i32
    %3 = arith.muli %arg1, %c1024_i32 : i32
    %4 = tpu.assume_multiple %3, 256 : i32
    %c0 = arith.constant 0 : index
    %c0_1 = arith.constant 0 : index
    %5 = vector.load %arg8[%c0, %c0_1] : memref<2x1024xf32, #tpu.memory_space<vmem>>, vector<2x1024xf32>
    %c0_2 = arith.constant 0 : index
    %6 = arith.index_cast %4 : i32 to index
    %7 = vector.load %arg9[%c0_2, %6] : memref<2x1024xbf16, #tpu.memory_space<vmem>>, vector<2x1024xbf16>
    %c0_3 = arith.constant 0 : index
    %c0_4 = arith.constant 0 : index
    %8 = vector.load %arg7[%c0_3, %c0_4] : memref<1024x1024xbf16, #tpu.memory_space<vmem>>, vector<1024x1024xbf16>
    %cst = arith.constant dense<0.000000e+00> : vector<2x1024xf32>
    %9 = tpu.matmul %7, %8, %cst {dimension_numbers = #tpu.dot_dimension_numbers<[1], [0], [0], [1], [0, 0, 1, 1], [], []>} : vector<2x1024xbf16>, vector<1024x1024xbf16>, vector<2x1024xf32> -> vector<2x1024xf32>
    %10 = arith.addf %5, %9 : vector<2x1024xf32>
    %c0_5 = arith.constant 0 : index
    %c0_6 = arith.constant 0 : index
    %11 = vector.load %arg8[%c0_5, %c0_6] : memref<2x1024xf32, #tpu.memory_space<vmem>>, vector<2x1024xf32>
    tpu.vector_store %arg8[%c0_5, %c0_6], %10 {strides = array<i32>} : memref<2x1024xf32, #tpu.memory_space<vmem>>, vector<2x1024xf32>,
    return
  }
  func.func @transform_0(%arg0: i32, %arg1: i32) -> (i32, i32) {
    %c0_i32 = arith.constant 0 : i32
    %c0_i32_0 = arith.constant 0 : i32
    %c0_i32_1 = arith.constant 0 : i32
    return %c0_i32, %c0_i32_0 : i32, i32
  }
  func.func @transform_1(%arg0: i32, %arg1: i32) -> (i32, i32) {
    %c0_i32 = arith.constant 0 : i32
    %c0_i32_0 = arith.constant 0 : i32
    %c0_i32_1 = arith.constant 0 : i32
    return %c0_i32, %c0_i32_0 : i32, i32
  }
  func.func @transform_2(%arg0: i32, %arg1: i32) -> (i32, i32) {
    %c0_i32 = arith.constant 0 : i32
    %c0_i32_0 = arith.constant 0 : i32
    %c0_i32_1 = arith.constant 0 : i32
    return %c0_i32, %c0_i32_0 : i32, i32
  }
  func.func @transform_3(%arg0: i32, %arg1: i32) -> (i32, i32) {
    %c0_i32 = arith.constant 0 : i32
    %c0_i32_0 = arith.constant 0 : i32
    return %c0_i32, %arg0 : i32, i32
  }
  func.func @transform_4(%arg0: i32, %arg1: i32) -> (i32, i32) {
    %c0_i32 = arith.constant 0 : i32
    %c0_i32_0 = arith.constant 0 : i32
    return %c0_i32, %arg0 : i32, i32
  }
  func.func @transform_5(%arg0: i32, %arg1: i32) -> (i32, i32) {
    %c0_i32 = arith.constant 0 : i32
    return %arg1, %arg0 : i32, i32
  }
  func.func @transform_6(%arg0: i32, %arg1: i32) -> (i32, i32) {
    %c0_i32 = arith.constant 0 : i32
    %c0_i32_0 = arith.constant 0 : i32
    return %c0_i32, %arg0 : i32, i32
  }
}

</mosaic_0001>

<llo_original>
// kernel: cfg_denoiser_forward.1
$region0: #{cfg_denoiser_forward.1}
  #allocation0 [shape = 'u32[]', space=smem, size = 0x4, offset = 0x4, fixed_abs, tag = 'smem constant byte address 0x4 - core index']
  #allocation1 [shape = 'u32[72,128]{1,0:T(1,128)}', space=vmem, size = 0x9000, scoped, tag = 'internal scratch']
  #allocation2 [shape = 'bf16[2,1024]{1,0:T(2,128)(2,1)}', space=vmem, size = 0x1000, scoped, tag = 'scratch operand']
  %s0 = inlined_call_operand.vmem [shape: f32[2,1024], index: 0, kind: input, shape index: {}]
  %s1 = inlined_call_operand.vmem [shape: f32[2,1], index: 1, kind: input, shape index: {}]
  %s2 = inlined_call_operand.vmem [shape: bf16[2,32], index: 2, kind: input, shape index: {}]
  %s3 = inlined_call_operand.hbm [shape: bf16[32,1024], index: 3, kind: input, shape index: {}]
  %s4 = inlined_call_operand.hbm [shape: f32[1,1024], index: 4, kind: input, shape index: {}]
  %s5 = inlined_call_operand.hbm [shape: bf16[1024,1024], index: 5, kind: input, shape index: {}]
  %s6 = inlined_call_operand.vmem [shape: f32[2,1024], index: 6, kind: output, shape index: {}]
  %s7 = sld [smem:[#allocation0]]
  $region50: #{cfg_denoiser_forward.1} parent=0
    _
  %s9 = ssub.s32 1, %s7
  %s10 = scalar_select 0, %s9, %s7
  $region1: #{cfg_denoiser_forward.1} parent=0
    #allocation3 [shape = 'u8[65536]{0}', space=vmem, size = 0x10000, scoped, tag = 'input window, operand 3, single buffered']
    #allocation4 [shape = 's32[1]{0}', space=sflag, size = 0x4, scoped, tag = 'scoped memory for cfg_denoiser_forward.1']
    #allocation5 [shape = 'u8[4096]{0}', space=vmem, size = 0x1000, scoped, tag = 'input window, operand 4, single buffered']
    #allocation6 [shape = 's32[1]{0}', space=sflag, size = 0x4, scoped, tag = 'scoped memory for cfg_denoiser_forward.1']
    #allocation7 [shape = 'u8[2097152]{0}', space=vmem, size = 0x200000, scoped, tag = 'input window, operand 5, single buffered']
    %11 = vsyncpa [#allocation4], 0
    %12 = vsyncpa [#allocation6], 0
    // Predicated region
    $region2: #{cfg_denoiser_forward.1} parent=1 // pred_check
      _
    $region3: #{cfg_denoiser_forward.1} parent=1 // pred_check_branch
      %14 = sbr.rel (0) target = $region5
    $region4: #{cfg_denoiser_forward.1} parent=1 // pred_region
      _
    $region5: #{cfg_denoiser_forward.1} parent=1 // pred_fallthru
      _
    // Predicated region
    $region6: #{cfg_denoiser_forward.1} parent=1 // pred_check
      _
    $region7: #{cfg_denoiser_forward.1} parent=1 // pred_check_branch
      %16 = sbr.rel (0) target = $region9
    $region8: #{cfg_denoiser_forward.1} parent=1 // pred_region
      _
    $region9: #{cfg_denoiser_forward.1} parent=1 // pred_fallthru
      _
    // Predicated region
    $region10: #{cfg_denoiser_forward.1} parent=1 // pred_check
      _
    $region11: #{cfg_denoiser_forward.1} parent=1 // pred_check_branch
      %18 = sbr.rel (0) target = $region13
    $region12: #{cfg_denoiser_forward.1} parent=1 // pred_region
      _
    $region13: #{cfg_denoiser_forward.1} parent=1 // pred_fallthru
      _
    // Predicated region
    $region14: #{cfg_denoiser_forward.1} parent=1 // pred_check
      _
    $region15: #{cfg_denoiser_forward.1} parent=1 // pred_check_branch
      %20 = sbr.rel (0) target = $region17
    $region16: #{cfg_denoiser_forward.1} parent=1 // pred_region
      %22 = vsyncadd [#allocation4], 0
      %s23 = sshll.u32 %s3, 4
      %s24 = int_to_ptr.hbm [resolvable:$true] %s23
      %s25 = sshll.u32 [#allocation3], 4
      %s26 = int_to_ptr.vmem [resolvable:$true] %s25
      %31 = dma.hbm_to_vmem [thread:$0]  %s24, 2048, %s26, [#allocation4], 512, 512, 32
    $region17: #{cfg_denoiser_forward.1} parent=1 // pred_fallthru
      _
    // Predicated region
    $region18: #{cfg_denoiser_forward.1} parent=1 // pred_check
      _
    $region19: #{cfg_denoiser_forward.1} parent=1 // pred_check_branch
      %33 = sbr.rel (0) target = $region21
    $region20: #{cfg_denoiser_forward.1} parent=1 // pred_region
      %35 = vsyncadd [#allocation6], 0
      %s37 = sshll.u32 %s4, 4
      %s38 = int_to_ptr.hbm [resolvable:$true] %s37
      %s39 = sshll.u32 [#allocation5], 4
      %s40 = int_to_ptr.vmem [resolvable:$true] %s39
      %42 = dma.hbm_to_vmem [thread:$0]  %s38, 128, %s40, [#allocation6]
    $region21: #{cfg_denoiser_forward.1} parent=1 // pred_fallthru
      _
    // Predicated region
    $region22: #{cfg_denoiser_forward.1} parent=1 // pred_check
      _
    $region23: #{cfg_denoiser_forward.1} parent=1 // pred_check_branch
      %44 = sbr.rel (0) target = $region25
    $region24: #{cfg_denoiser_forward.1} parent=1 // pred_region
      %46 = vsyncadd [#allocation6], 0
      %s47 = sshll.u32 %s5, 4
      %s48 = int_to_ptr.hbm [resolvable:$true] %s47
      %s49 = sshll.u32 [#allocation7], 4
      %s50 = int_to_ptr.vmem [resolvable:$true] %s49
      %55 = dma.hbm_to_vmem [thread:$0]  %s48, 65536, %s50, [#allocation6], 512, 512, 32
    $region25: #{cfg_denoiser_forward.1} parent=1 // pred_fallthru
      _
    // Predicated region
    $region26: #{cfg_denoiser_forward.1} parent=1 // pred_check
      _
    $region27: #{cfg_denoiser_forward.1} parent=1 // pred_check_branch
      %57 = sbr.rel (0) target = $region29
    $region28: #{cfg_denoiser_forward.1} parent=1 // pred_region
      %59 = dma.done [#allocation4], 2048
    $region29: #{cfg_denoiser_forward.1} parent=1 // pred_fallthru
      _
    // Predicated region
    $region30: #{cfg_denoiser_forward.1} parent=1 // pred_check
      _
    $region31: #{cfg_denoiser_forward.1} parent=1 // pred_check_branch
      %61 = sbr.rel (0) target = $region33
    $region32: #{cfg_denoiser_forward.1} parent=1 // pred_region
      %63 = dma.done [#allocation6], 128
    $region33: #{cfg_denoiser_forward.1} parent=1 // pred_fallthru
      _
    // Predicated region
    $region34: #{cfg_denoiser_forward.1} parent=1 // pred_check
      _
    $region35: #{cfg_denoiser_forward.1} parent=1 // pred_check_branch
      %65 = sbr.rel (0) target = $region37
    $region36: #{cfg_denoiser_forward.1} parent=1 // pred_region
      %67 = dma.done [#allocation6], 65536
    $region37: #{cfg_denoiser_forward.1} parent=1 // pred_fallthru
      _
    %p69 = scmp.eq.s32.totalorder 0, 0
    // Predicated region
    $region38: #{cfg_denoiser_forward.1} parent=1 // pred_check
      %p70 = pneg %p69
    $region39: #{cfg_denoiser_forward.1} parent=1 // pred_check_branch
      %72 = sbr.rel (%p70) target = $region41
    $region40: #{cfg_denoiser_forward.1} parent=1 // pred_region
      %v73 = vld [vmem:[%s0] sm:$0xff]
      %v74 = vld [vmem:[%s0 + $0x8] sm:$0xff]
      %v75 = vld [vmem:[%s1] sm:$0x3]
      %77 = vset.pattern.permute.xlu0 0
      %78 = vperm.xlu0 %77, %v75
      %v79 = vpop.permute.xlu0 %78
      %v81 = vunpack.c.l.s4 269488144
      %v82 = vunpack.c.0.s8 %v81
      %v83 = vperm.slane %v79, %v82
      %v85 = vmul.f32 %v73, %v83
      %v86 = vmul.f32 %v74, %v83
      %89 = vst [vmem:[#allocation1] ss:$4 sm:$0xff] %v85
      %s90 = scalar_lea.vmem [#allocation1], 32
      %91 = vst [vmem:[%s90] ss:$4 sm:$0xff] %v86
      %v92 = vld.sshfl [vmem:[#allocation1] sm:$0xff pattern:$0x73625140]
      %v93 = vld.sshfl [vmem:[#allocation1 + $0x8] sm:$0xff pattern:$0x73625140]
      %v94 = vld.sshfl [vmem:[#allocation1 + $0x10] sm:$0xff pattern:$0x73625140]
      %v95 = vld.sshfl [vmem:[#allocation1 + $0x18] sm:$0xff pattern:$0x73625140]
      %v96 = vld.sshfl [vmem:[#allocation1 + $0x20] sm:$0xff pattern:$0x73625140]
      %v97 = vld.sshfl [vmem:[#allocation1 + $0x28] sm:$0xff pattern:$0x73625140]
      %v98 = vld.sshfl [vmem:[#allocation1 + $0x30] sm:$0xff pattern:$0x73625140]
      %v99 = vld.sshfl [vmem:[#allocation1 + $0x38] sm:$0xff pattern:$0x73625140]
      %v108 = vpack.c.bf16 %v93, %v92
      %v109 = vpack.c.bf16 %v95, %v94
      %v110 = vpack.c.bf16 %v97, %v96
      %v111 = vpack.c.bf16 %v99, %v98
      %v116 = vrot.slane %v108, 3
      %v117 = vrot.slane %v109, 6
      %v118 = vrot.slane %v109, 1
      %v119 = vrot.slane %v110, 4
      %v120 = vrot.slane %v110, 7
      %v121 = vrot.slane %v111, 2
      %v122 = vrot.slane %v111, 5
      %vm123 = vcmask 1040384
      %v126 = vsel %vm123, %v108, %v116
      %vm127 = vcmask 1042434
      %v130 = vsel %vm127, %v117, %v118
      %vm131 = vcmask 1041408
      %v132 = vsel %vm131, %v126, %v130
      %vm133 = vcmask 1044484
      %v136 = vsel %vm133, %v119, %v120
      %vm137 = vcmask 1046534
      %v140 = vsel %vm137, %v121, %v122
      %vm141 = vcmask 1045508
      %v142 = vsel %vm141, %v136, %v140
      %vm143 = vcmask 1043456
      %v144 = vsel %vm143, %v132, %v142
      %146 = vst [vmem:[#allocation2] sm:$0xff] %v144
      %v147 = vld [vmem:[%s2] sm:$0x1]
      %v148 = vld [vmem:[#allocation3] sm:$0xff]
      %v149 = vld [vmem:[#allocation3 + $0x8] sm:$0xff]
      %v150 = vld [vmem:[#allocation3 + $0x10] sm:$0xff]
      %v151 = vld [vmem:[#allocation3 + $0x18] sm:$0xff]
      %v152 = vld [vmem:[#allocation3 + $0x20] sm:$0xff]
      %v153 = vld [vmem:[#allocation3 + $0x28] sm:$0xff]
      %v154 = vld [vmem:[#allocation3 + $0x30] sm:$0xff]
      %v155 = vld [vmem:[#allocation3 + $0x38] sm:$0xff]
      %v156 = vld [vmem:[#allocation3 + $0x40] sm:$0xff]
      %v157 = vld [vmem:[#allocation3 + $0x48] sm:$0xff]
      %v158 = vld [vmem:[#allocation3 + $0x50] sm:$0xff]
      %v159 = vld [vmem:[#allocation3 + $0x58] sm:$0xff]
      %v160 = vld [vmem:[#allocation3 + $0x60] sm:$0xff]
      %v161 = vld [vmem:[#allocation3 + $0x68] sm:$0xff]
      %v162 = vld [vmem:[#allocation3 + $0x70] sm:$0xff]
      %v163 = vld [vmem:[#allocation3 + $0x78] sm:$0xff]
      %v164 = vld [vmem:[#allocation5] sm:$0xff]
      %v166 = vperm.slane %v164, 0
      %v167 = vperm.slane %v164, 1
      %v168 = vperm.slane %v164, 2
      %v169 = vperm.slane %v164, 3
      %v170 = vperm.slane %v164, 4
      %v171 = vperm.slane %v164, 5
      %v172 = vperm.slane %v164, 6
      %v173 = vperm.slane %v164, 7
      %v198 = vunpack.c.l.b16 %v148
      %v199 = vunpack.c.h.b16 %v148
      %v200 = vunpack.c.l.b16 %v149
      %v201 = vunpack.c.h.b16 %v149
      %v202 = vunpack.c.l.b16 %v150
      %v203 = vunpack.c.h.b16 %v150
      %v204 = vunpack.c.l.b16 %v151
      %v205 = vunpack.c.h.b16 %v151
      %v206 = vunpack.c.l.b16 %v152
      %v207 = vunpack.c.h.b16 %v152
      %v208 = vunpack.c.l.b16 %v153
      %v209 = vunpack.c.h.b16 %v153
      %v210 = vunpack.c.l.b16 %v154
      %v211 = vunpack.c.h.b16 %v154
      %v212 = vunpack.c.l.b16 %v155
      %v213 = vunpack.c.h.b16 %v155
      %v214 = vunpack.c.l.b16 %v156
      %v215 = vunpack.c.h.b16 %v156
      %v216 = vunpack.c.l.b16 %v157
      %v217 = vunpack.c.h.b16 %v157
      %v218 = vunpack.c.l.b16 %v158
      %v219 = vunpack.c.h.b16 %v158
      %v220 = vunpack.c.l.b16 %v159
      %v221 = vunpack.c.h.b16 %v159
      %v222 = vunpack.c.l.b16 %v160
      %v223 = vunpack.c.h.b16 %v160
      %v224 = vunpack.c.l.b16 %v161
      %v225 = vunpack.c.h.b16 %v161
      %v226 = vunpack.c.l.b16 %v162
      %v227 = vunpack.c.h.b16 %v162
      %v228 = vunpack.c.l.b16 %v163
      %v229 = vunpack.c.h.b16 %v163
      %v230 = vpack.c.b16 %v206, %v198
      %v231 = vpack.c.b16 %v207, %v199
      %v232 = vpack.c.b16 %v208, %v200
      %v233 = vpack.c.b16 %v209, %v201
      %v234 = vpack.c.b16 %v210, %v202
      %v235 = vpack.c.b16 %v211, %v203
      %v236 = vpack.c.b16 %v212, %v204
      %v237 = vpack.c.b16 %v213, %v205
      %v238 = vpack.c.b16 %v222, %v214
      %v239 = vpack.c.b16 %v223, %v215
      %v240 = vpack.c.b16 %v224, %v216
      %v241 = vpack.c.b16 %v225, %v217
      %v242 = vpack.c.b16 %v226, %v218
      %v243 = vpack.c.b16 %v227, %v219
      %v244 = vpack.c.b16 %v228, %v220
      %v245 = vpack.c.b16 %v229, %v221
      %vm262 = vcmask 261120
      %v264 = vsel %vm262, %v147, 0
      %266 = vmatpush.bf16.msra.mxu0 0
      %267 = vmatpush.bf16.msra.mxu0 0
      %268 = vmatpush.bf16.msra.mxu0 0
      %269 = vmatpush.bf16.msra.mxu0 0
      %270 = vmatpush.bf16.msra.mxu0 0
      %271 = vmatpush.bf16.msra.mxu0 0
      %272 = vmatpush.bf16.msra.mxu0 %v238
      %273 = vmatpush.bf16.msra.mxu0 %v230
      %274 = vmatmul.bf16.gmra.mxu0 %v264
      %v275 = vpop.f32.mrf.mxu0
      %v276 = vadd.f32 %v166, %v275
      %v277 = vpop.f32.mrf.mxu0
      %278 = vdwg.mxu0
      %279 = vmatpush.bf16.msra.mxu0 0
      %280 = vmatpush.bf16.msra.mxu0 0
      %281 = vmatpush.bf16.msra.mxu0 0
      %282 = vmatpush.bf16.msra.mxu0 0
      %283 = vmatpush.bf16.msra.mxu0 0
      %284 = vmatpush.bf16.msra.mxu0 0
      %285 = vmatpush.bf16.msra.mxu0 %v239
      %286 = vmatpush.bf16.msra.mxu0 %v231
      %287 = vmatmul.bf16.gmra.mxu0 %v264
      %v288 = vpop.f32.mrf.mxu0
      %v289 = vadd.f32 %v167, %v288
      %v290 = vpop.f32.mrf.mxu0
      %291 = vdwg.mxu0
      %292 = vmatpush.bf16.msra.mxu0 0
      %293 = vmatpush.bf16.msra.mxu0 0
      %294 = vmatpush.bf16.msra.mxu0 0
      %295 = vmatpush.bf16.msra.mxu0 0
      %296 = vmatpush.bf16.msra.mxu0 0
      %297 = vmatpush.bf16.msra.mxu0 0
      %298 = vmatpush.bf16.msra.mxu0 %v240
      %299 = vmatpush.bf16.msra.mxu0 %v232
      %300 = vmatmul.bf16.gmra.mxu0 %v264
      %v301 = vpop.f32.mrf.mxu0
      %v302 = vadd.f32 %v168, %v301
      %v303 = vpop.f32.mrf.mxu0
      %304 = vdwg.mxu0
      %305 = vmatpush.bf16.msra.mxu0 0
      %306 = vmatpush.bf16.msra.mxu0 0
      %307 = vmatpush.bf16.msra.mxu0 0
      %308 = vmatpush.bf16.msra.mxu0 0
      %309 = vmatpush.bf16.msra.mxu0 0
      %310 = vmatpush.bf16.msra.mxu0 0
      %311 = vmatpush.bf16.msra.mxu0 %v241
      %312 = vmatpush.bf16.msra.mxu0 %v233
      %313 = vmatmul.bf16.gmra.mxu0 %v264
      %v314 = vpop.f32.mrf.mxu0
      %v315 = vadd.f32 %v169, %v314
      %v316 = vpop.f32.mrf.mxu0
      %317 = vdwg.mxu0
      %318 = vmatpush.bf16.msra.mxu0 0
      %319 = vmatpush.bf16.msra.mxu0 0
      %320 = vmatpush.bf16.msra.mxu0 0
      %321 = vmatpush.bf16.msra.mxu0 0
      %322 = vmatpush.bf16.msra.mxu0 0
      %323 = vmatpush.bf16.msra.mxu0 0
      %324 = vmatpush.bf16.msra.mxu0 %v242
      %325 = vmatpush.bf16.msra.mxu0 %v234
      %326 = vmatmul.bf16.gmra.mxu0 %v264
      %v327 = vpop.f32.mrf.mxu0
      %v328 = vadd.f32 %v170, %v327
      %v329 = vpop.f32.mrf.mxu0
      %330 = vdwg.mxu0
      %331 = vmatpush.bf16.msra.mxu0 0
      %332 = vmatpush.bf16.msra.mxu0 0
      %333 = vmatpush.bf16.msra.mxu0 0
      %334 = vmatpush.bf16.msra.mxu0 0
      %335 = vmatpush.bf16.msra.mxu0 0
      %336 = vmatpush.bf16.msra.mxu0 0
      %337 = vmatpush.bf16.msra.mxu0 %v243
      %338 = vmatpush.bf16.msra.mxu0 %v235
      %339 = vmatmul.bf16.gmra.mxu0 %v264
      %v340 = vpop.f32.mrf.mxu0
      %v341 = vadd.f32 %v171, %v340
      %v342 = vpop.f32.mrf.mxu0
      %343 = vdwg.mxu0
      %344 = vmatpush.bf16.msra.mxu0 0
      %345 = vmatpush.bf16.msra.mxu0 0
      %346 = vmatpush.bf16.msra.mxu0 0
      %347 = vmatpush.bf16.msra.mxu0 0
      %348 = vmatpush.bf16.msra.mxu0 0
      %349 = vmatpush.bf16.msra.mxu0 0
      %350 = vmatpush.bf16.msra.mxu0 %v244
      %351 = vmatpush.bf16.msra.mxu0 %v236
      %352 = vmatmul.bf16.gmra.mxu0 %v264
      %v353 = vpop.f32.mrf.mxu0
      %v354 = vadd.f32 %v172, %v353
      %v355 = vpop.f32.mrf.mxu0
      %356 = vdwg.mxu0
      %357 = vmatpush.bf16.msra.mxu0 0
      %358 = vmatpush.bf16.msra.mxu0 0
      %359 = vmatpush.bf16.msra.mxu0 0
      %360 = vmatpush.bf16.msra.mxu0 0
      %361 = vmatpush.bf16.msra.mxu0 0
      %362 = vmatpush.bf16.msra.mxu0 0
      %363 = vmatpush.bf16.msra.mxu0 %v245
      %364 = vmatpush.bf16.msra.mxu0 %v237
      %365 = vmatmul.bf16.gmra.mxu0 %v264
      %v366 = vpop.f32.mrf.mxu0
      %v367 = vadd.f32 %v173, %v366
      %v368 = vpop.f32.mrf.mxu0
      %369 = vdwg.mxu0
      %v378 = vrot.slane %v289, 6
      %v379 = vrot.slane %v302, 4
      %v380 = vrot.slane %v315, 2
      %v381 = vrot.slane %v341, 6
      %v382 = vrot.slane %v354, 4
      %v383 = vrot.slane %v367, 2
      %v384 = vsel %vm131, %v276, %v378
      %v385 = vsel %vm141, %v379, %v380
      %v386 = vsel %vm143, %v384, %v385
      %v387 = vsel %vm131, %v328, %v381
      %v388 = vsel %vm141, %v382, %v383
      %v389 = vsel %vm143, %v387, %v388
      %392 = vst [vmem:[%s6] sm:$0xff] %v386
      %393 = vst [vmem:[%s6 + $0x8] sm:$0xff] %v389
    $region41: #{cfg_denoiser_forward.1} parent=1 // pred_fallthru
      _
    %s394 = smul.u32 0, 1024
    %v395 = vld [vmem:[%s6] sm:$0xff]
    %v396 = vld [vmem:[%s6 + $0x8] sm:$0xff]
    %s397 = sshra.s32 %s394, 7
    %s398 = sand.u32 %s394, 127
    %s399 = scalar_lea.vmem [#allocation2], %s397
    %v400 = vld [vmem:[%s399] sm:$0xff]
    %v401 = vld [vmem:[#allocation7] sm:$0xff]
    %v402 = vld [vmem:[#allocation7 + $0x8] sm:$0xff]
    %v403 = vld [vmem:[#allocation7 + $0x10] sm:$0xff]
    %v404 = vld [vmem:[#allocation7 + $0x18] sm:$0xff]
    %v405 = vld [vmem:[#allocation7 + $0x20] sm:$0xff]
    %v406 = vld [vmem:[#allocation7 + $0x28] sm:$0xff]
    %v407 = vld [vmem:[#allocation7 + $0x30] sm:$0xff]
    %v408 = vld [vmem:[#allocation7 + $0x38] sm:$0xff]
    %v409 = vld [vmem:[#allocation7 + $0x40] sm:$0xff]
    %v410 = vld [vmem:[#allocation7 + $0x48] sm:$0xff]
    %v411 = vld [vmem:[#allocation7 + $0x50] sm:$0xff]
    %v412 = vld [vmem:[#allocation7 + $0x58] sm:$0xff]
    %v413 = vld [vmem:[#allocation7 + $0x60] sm:$0xff]
    %v414 = vld [vmem:[#allocation7 + $0x68] sm:$0xff]
    %v415 = vld [vmem:[#allocation7 + $0x70] sm:$0xff]
    %v416 = vld [vmem:[#allocation7 + $0x78] sm:$0xff]
    %v417 = vld [vmem:[#allocation7 + $0x80] sm:$0xff]
    %v418 = vld [vmem:[#allocation7 + $0x88] sm:$0xff]
    %v419 = vld [vmem:[#allocation7 + $0x90] sm:$0xff]
    %v420 = vld [vmem:[#allocation7 + $0x98] sm:$0xff]
    %v421 = vld [vmem:[#allocation7 + $0xa0] sm:$0xff]
    %v422 = vld [vmem:[#allocation7 + $0xa8] sm:$0xff]
    %v423 = vld [vmem:[#allocation7 + $0xb0] sm:$0xff]
    %v424 = vld [vmem:[#allocation7 + $0xb8] sm:$0xff]
    %v425 = vld [vmem:[#allocation7 + $0xc0] sm:$0xff]
    %v426 = vld [vmem:[#allocation7 + $0xc8] sm:$0xff]
    %v427 = vld [vmem:[#allocation7 + $0xd0] sm:$0xff]
    %v428 = vld [vmem:[#allocation7 + $0xd8] sm:$0xff]
    %v429 = vld [vmem:[#allocation7 + $0xe0] sm:$0xff]
    %v430 = vld [vmem:[#allocation7 + $0xe8] sm:$0xff]
    %v431 = vld [vmem:[#allocation7 + $0xf0] sm:$0xff]
    %v432 = vld [vmem:[#allocation7 + $0xf8] sm:$0xff]
    %v433 = vld [vmem:[#allocation7 + $0x100] sm:$0xff]
    %v434 = vld [vmem:[#allocation7 + $0x108] sm:$0xff]
    %v435 = vld [vmem:[#allocation7 + $0x110] sm:$0xff]
    %v436 = vld [vmem:[#allocation7 + $0x118] sm:$0xff]
    %v437 = vld [vmem:[#allocation7 + $0x120] sm:$0xff]
    %v438 = vld [vmem:[#allocation7 + $0x128] sm:$0xff]
    %v439 = vld [vmem:[#allocation7 + $0x130] sm:$0xff]
    %v440 = vld [vmem:[#allocation7 + $0x138] sm:$0xff]
    %v441 = vld [vmem:[#allocation7 + $0x140] sm:$0xff]
    %v442 = vld [vmem:[#allocation7 + $0x148] sm:$0xff]
    %v443 = vld [vmem:[#allocation7 + $0x150] sm:$0xff]
    %v444 = vld [vmem:[#allocation7 + $0x158] sm:$0xff]
    %v445 = vld [vmem:[#allocation7 + $0x160] sm:$0xff]
    %v446 = vld [vmem:[#allocation7 + $0x168] sm:$0xff]
    %v447 = vld [vmem:[#allocation7 + $0x170] sm:$0xff]
    %v448 = vld [vmem:[#allocation7 + $0x178] sm:$0xff]
    %v449 = vld [vmem:[#allocation7 + $0x180] sm:$0xff]
    %v450 = vld [vmem:[#allocation7 + $0x188] sm:$0xff]
    %v451 = vld [vmem:[#allocation7 + $0x190] sm:$0xff]
    %v452 = vld [vmem:[#allocation7 + $0x198] sm:$0xff]
    %v453 = vld [vmem:[#allocation7 + $0x1a0] sm:$0xff]
    %v454 = vld [vmem:[#allocation7 + $0x1a8] sm:$0xff]
    %v455 = vld [vmem:[#allocation7 + $0x1b0] sm:$0xff]
    %v456 = vld [vmem:[#allocation7 + $0x1b8] sm:$0xff]
    %v457 = vld [vmem:[#allocation7 + $0x1c0] sm:$0xff]
    %v458 = vld [vmem:[#allocation7 + $0x1c8] sm:$0xff]
    %v459 = vld [vmem:[#allocation7 + $0x1d0] sm:$0xff]
    %v460 = vld [vmem:[#allocation7 + $0x1d8] sm:$0xff]
    %v461 = vld [vmem:[#allocation7 + $0x1e0] sm:$0xff]
    %v462 = vld [vmem:[#allocation7 + $0x1e8] sm:$0xff]
    %v463 = vld [vmem:[#allocation7 + $0x1f0] sm:$0xff]
    %v464 = vld [vmem:[#allocation7 + $0x1f8] sm:$0xff]
    %v465 = vld [vmem:[#allocation7 + $0x200] sm:$0xff]
    %v466 = vld [vmem:[#allocation7 + $0x208] sm:$0xff]
    %v467 = vld [vmem:[#allocation7 + $0x210] sm:$0xff]
    %v468 = vld [vmem:[#allocation7 + $0x218] sm:$0xff]
    %v469 = vld [vmem:[#allocation7 + $0x220] sm:$0xff]
    %v470 = vld [vmem:[#allocation7 + $0x228] sm:$0xff]
    %v471 = vld [vmem:[#allocation7 + $0x230] sm:$0xff]
    %v472 = vld [vmem:[#allocation7 + $0x238] sm:$0xff]
    %v473 = vld [vmem:[#allocation7 + $0x240] sm:$0xff]
    %v474 = vld [vmem:[#allocation7 + $0x248] sm:$0xff]
    %v475 = vld [vmem:[#allocation7 + $0x250] sm:$0xff]
    %v476 = vld [vmem:[#allocation7 + $0x258] sm:$0xff]
    %v477 = vld [vmem:[#allocation7 + $0x260] sm:$0xff]
    %v478 = vld [vmem:[#allocation7 + $0x268] sm:$0xff]
    %v479 = vld [vmem:[#allocation7 + $0x270] sm:$0xff]
    %v480 = vld [vmem:[#allocation7 + $0x278] sm:$0xff]
    %v481 = vld [vmem:[#allocation7 + $0x280] sm:$0xff]
    %v482 = vld [vmem:[#allocation7 + $0x288] sm:$0xff]
    %v483 = vld [vmem:[#allocation7 + $0x290] sm:$0xff]
    %v484 = vld [vmem:[#allocation7 + $0x298] sm:$0xff]
    %v485 = vld [vmem:[#allocation7 + $0x2a0] sm:$0xff]
    %v486 = vld [vmem:[#allocation7 + $0x2a8] sm:$0xff]
    %v487 = vld [vmem:[#allocation7 + $0x2b0] sm:$0xff]
    %v488 = vld [vmem:[#allocation7 + $0x2b8] sm:$0xff]
    %v489 = vld [vmem:[#allocation7 + $0x2c0] sm:$0xff]
    %v490 = vld [vmem:[#allocation7 + $0x2c8] sm:$0xff]
    %v491 = vld [vmem:[#allocation7 + $0x2d0] sm:$0xff]
    %v492 = vld [vmem:[#allocation7 + $0x2d8] sm:$0xff]
    %v493 = vld [vmem:[#allocation7 + $0x2e0] sm:$0xff]
    %v494 = vld [vmem:[#allocation7 + $0x2e8] sm:$0xff]
    %v495 = vld [vmem:[#allocation7 + $0x2f0] sm:$0xff]
    %v496 = vld [vmem:[#allocation7 + $0x2f8] sm:$0xff]
    %v497 = vld [vmem:[#allocation7 + $0x300] sm:$0xff]
    %v498 = vld [vmem:[#allocation7 + $0x308] sm:$0xff]
    %v499 = vld [vmem:[#allocation7 + $0x310] sm:$0xff]
    %v500 = vld [vmem:[#allocation7 + $0x318] sm:$0xff]
    %v501 = vld [vmem:[#allocation7 + $0x320] sm:$0xff]
    %v502 = vld [vmem:[#allocation7 + $0x328] sm:$0xff]
    %v503 = vld [vmem:[#allocation7 + $0x330] sm:$0xff]
    %v504 = vld [vmem:[#allocation7 + $0x338] sm:$0xff]
    %v505 = vld [vmem:[#allocation7 + $0x340] sm:$0xff]
    %v506 = vld [vmem:[#allocation7 + $0x348] sm:$0xff]
    %v507 = vld [vmem:[#allocation7 + $0x350] sm:$0xff]
    %v508 = vld [vmem:[#allocation7 + $0x358] sm:$0xff]
    %v509 = vld [vmem:[#allocation7 + $0x360] sm:$0xff]
    %v510 = vld [vmem:[#allocation7 + $0x368] sm:$0xff]
    %v511 = vld [vmem:[#allocation7 + $0x370] sm:$0xff]
    %v512 = vld [vmem:[#allocation7 + $0x378] sm:$0xff]
    %v513 = vld [vmem:[#allocation7 + $0x380] sm:$0xff]
    %v514 = vld [vmem:[#allocation7 + $0x388] sm:$0xff]
    %v515 = vld [vmem:[#allocation7 + $0x390] sm:$0xff]
    %v516 = vld [vmem:[#allocation7 + $0x398] sm:$0xff]
    %v517 = vld [vmem:[#allocation7 + $0x3a0] sm:$0xff]
    %v518 = vld [vmem:[#allocation7 + $0x3a8] sm:$0xff]
    %v519 = vld [vmem:[#allocation7 + $0x3b0] sm:$0xff]
    %v520 = vld [vmem:[#allocation7 + $0x3b8] sm:$0xff]
    %v521 = vld [vmem:[#allocation7 + $0x3c0] sm:$0xff]
    %v522 = vld [vmem:[#allocation7 + $0x3c8] sm:$0xff]
    %v523 = vld [vmem:[#allocation7 + $0x3d0] sm:$0xff]
    %v524 = vld [vmem:[#allocation7 + $0x3d8] sm:$0xff]
    %v525 = vld [vmem:[#allocation7 + $0x3e0] sm:$0xff]
    %v526 = vld [vmem:[#allocation7 + $0x3e8] sm:$0xff]
    %v527 = vld [vmem:[#allocation7 + $0x3f0] sm:$0xff]
    %v528 = vld [vmem:[#allocation7 + $0x3f8] sm:$0xff]
    %v529 = vld [vmem:[#allocation7 + $0x400] sm:$0xff]
    %v530 = vld [vmem:[#allocation7 + $0x408] sm:$0xff]
    %v531 = vld [vmem:[#allocation7 + $0x410] sm:$0xff]
    %v532 = vld [vmem:[#allocation7 + $0x418] sm:$0xff]
    %v533 = vld [vmem:[#allocation7 + $0x420] sm:$0xff]
    %v534 = vld [vmem:[#allocation7 + $0x428] sm:$0xff]
    %v535 = vld [vmem:[#allocation7 + $0x430] sm:$0xff]
    %v536 = vld [vmem:[#allocation7 + $0x438] sm:$0xff]
    %v537 = vld [vmem:[#allocation7 + $0x440] sm:$0xff]
    %v538 = vld [vmem:[#allocation7 + $0x448] sm:$0xff]
    %v539 = vld [vmem:[#allocation7 + $0x450] sm:$0xff]
    %v540 = vld [vmem:[#allocation7 + $0x458] sm:$0xff]
    %v541 = vld [vmem:[#allocation7 + $0x460] sm:$0xff]
    %v542 = vld [vmem:[#allocation7 + $0x468] sm:$0xff]
    %v543 = vld [vmem:[#allocation7 + $0x470] sm:$0xff]
    %v544 = vld [vmem:[#allocation7 + $0x478] sm:$0xff]
    %v545 = vld [vmem:[#allocation7 + $0x480] sm:$0xff]
    %v546 = vld [vmem:[#allocation7 + $0x488] sm:$0xff]
    %v547 = vld [vmem:[#allocation7 + $0x490] sm:$0xff]
    %v548 = vld [vmem:[#allocation7 + $0x498] sm:$0xff]
    %v549 = vld [vmem:[#allocation7 + $0x4a0] sm:$0xff]
    %v550 = vld [vmem:[#allocation7 + $0x4a8] sm:$0xff]
    %v551 = vld [vmem:[#allocation7 + $0x4b0] sm:$0xff]
    %v552 = vld [vmem:[#allocation7 + $0x4b8] sm:$0xff]
    %v553 = vld [vmem:[#allocation7 + $0x4c0] sm:$0xff]
    %v554 = vld [vmem:[#allocation7 + $0x4c8] sm:$0xff]
    %v555 = vld [vmem:[#allocation7 + $0x4d0] sm:$0xff]
    %v556 = vld [vmem:[#allocation7 + $0x4d8] sm:$0xff]
    %v557 = vld [vmem:[#allocation7 + $0x4e0] sm:$0xff]
    %v558 = vld [vmem:[#allocation7 + $0x4e8] sm:$0xff]
    %v559 = vld [vmem:[#allocation7 + $0x4f0] sm:$0xff]
    %v560 = vld [vmem:[#allocation7 + $0x4f8] sm:$0xff]
    %v561 = vld [vmem:[#allocation7 + $0x500] sm:$0xff]
    %v562 = vld [vmem:[#allocation7 + $0x508] sm:$0xff]
    %v563 = vld [vmem:[#allocation7 + $0x510] sm:$0xff]
    %v564 = vld [vmem:[#allocation7 + $0x518] sm:$0xff]
    %v565 = vld [vmem:[#allocation7 + $0x520] sm:$0xff]
    %v566 = vld [vmem:[#allocation7 + $0x528] sm:$0xff]
    %v567 = vld [vmem:[#allocation7 + $0x530] sm:$0xff]
    %v568 = vld [vmem:[#allocation7 + $0x538] sm:$0xff]
    %v569 = vld [vmem:[#allocation7 + $0x540] sm:$0xff]
    %v570 = vld [vmem:[#allocation7 + $0x548] sm:$0xff]
    %v571 = vld [vmem:[#allocation7 + $0x550] sm:$0xff]
    %v572 = vld [vmem:[#allocation7 + $0x558] sm:$0xff]
    %v573 = vld [vmem:[#allocation7 + $0x560] sm:$0xff]
    %v574 = vld [vmem:[#allocation7 + $0x568] sm:$0xff]
    %v575 = vld [vmem:[#allocation7 + $0x570] sm:$0xff]
    %v576 = vld [vmem:[#allocation7 + $0x578] sm:$0xff]
    %v577 = vld [vmem:[#allocation7 + $0x580] sm:$0xff]
    %v578 = vld [vmem:[#allocation7 + $0x588] sm:$0xff]
    %v579 = vld [vmem:[#allocation7 + $0x590] sm:$0xff]
    %v580 = vld [vmem:[#allocation7 + $0x598] sm:$0xff]
    %v581 = vld [vmem:[#allocation7 + $0x5a0] sm:$0xff]
    %v582 = vld [vmem:[#allocation7 + $0x5a8] sm:$0xff]
    %v583 = vld [vmem:[#allocation7 + $0x5b0] sm:$0xff]
    %v584 = vld [vmem:[#allocation7 + $0x5b8] sm:$0xff]
    %v585 = vld [vmem:[#allocation7 + $0x5c0] sm:$0xff]
    %v586 = vld [vmem:[#allocation7 + $0x5c8] sm:$0xff]
    %v587 = vld [vmem:[#allocation7 + $0x5d0] sm:$0xff]
    %v588 = vld [vmem:[#allocation7 + $0x5d8] sm:$0xff]
    %v589 = vld [vmem:[#allocation7 + $0x5e0] sm:$0xff]
    %v590 = vld [vmem:[#allocation7 + $0x5e8] sm:$0xff]
    %v591 = vld [vmem:[#allocation7 + $0x5f0] sm:$0xff]
    %v592 = vld [vmem:[#allocation7 + $0x5f8] sm:$0xff]
    %v593 = vld [vmem:[#allocation7 + $0x600] sm:$0xff]
    %v594 = vld [vmem:[#allocation7 + $0x608] sm:$0xff]
    %v595 = vld [vmem:[#allocation7 + $0x610] sm:$0xff]
    %v596 = vld [vmem:[#allocation7 + $0x618] sm:$0xff]
    %v597 = vld [vmem:[#allocation7 + $0x620] sm:$0xff]
    %v598 = vld [vmem:[#allocation7 + $0x628] sm:$0xff]
    %v599 = vld [vmem:[#allocation7 + $0x630] sm:$0xff]
    %v600 = vld [vmem:[#allocation7 + $0x638] sm:$0xff]
    %v601 = vld [vmem:[#allocation7 + $0x640] sm:$0xff]
    %v602 = vld [vmem:[#allocation7 + $0x648] sm:$0xff]
    %v603 = vld [vmem:[#allocation7 + $0x650] sm:$0xff]
    %v604 = vld [vmem:[#allocation7 + $0x658] sm:$0xff]
    %v605 = vld [vmem:[#allocation7 + $0x660] sm:$0xff]
    %v606 = vld [vmem:[#allocation7 + $0x668] sm:$0xff]
    %v607 = vld [vmem:[#allocation7 + $0x670] sm:$0xff]
    %v608 = vld [vmem:[#allocation7 + $0x678] sm:$0xff]
    %v609 = vld [vmem:[#allocation7 + $0x680] sm:$0xff]
    %v610 = vld [vmem:[#allocation7 + $0x688] sm:$0xff]
    %v611 = vld [vmem:[#allocation7 + $0x690] sm:$0xff]
    %v612 = vld [vmem:[#allocation7 + $0x698] sm:$0xff]
    %v613 = vld [vmem:[#allocation7 + $0x6a0] sm:$0xff]
    %v614 = vld [vmem:[#allocation7 + $0x6a8] sm:$0xff]
    %v615 = vld [vmem:[#allocation7 + $0x6b0] sm:$0xff]
    %v616 = vld [vmem:[#allocation7 + $0x6b8] sm:$0xff]
    %v617 = vld [vmem:[#allocation7 + $0x6c0] sm:$0xff]
    %v618 = vld [vmem:[#allocation7 + $0x6c8] sm:$0xff]
    %v619 = vld [vmem:[#allocation7 + $0x6d0] sm:$0xff]
    %v620 = vld [vmem:[#allocation7 + $0x6d8] sm:$0xff]
    %v621 = vld [vmem:[#allocation7 + $0x6e0] sm:$0xff]
    %v622 = vld [vmem:[#allocation7 + $0x6e8] sm:$0xff]
    %v623 = vld [vmem:[#allocation7 + $0x6f0] sm:$0xff]
    %v624 = vld [vmem:[#allocation7 + $0x6f8] sm:$0xff]
    %v625 = vld [vmem:[#allocation7 + $0x700] sm:$0xff]
    %v626 = vld [vmem:[#allocation7 + $0x708] sm:$0xff]
    %v627 = vld [vmem:[#allocation7 + $0x710] sm:$0xff]
    %v628 = vld [vmem:[#allocation7 + $0x718] sm:$0xff]
    %v629 = vld [vmem:[#allocation7 + $0x720] sm:$0xff]
    %v630 = vld [vmem:[#allocation7 + $0x728] sm:$0xff]
    %v631 = vld [vmem:[#allocation7 + $0x730] sm:$0xff]
    %v632 = vld [vmem:[#allocation7 + $0x738] sm:$0xff]
    %v633 = vld [vmem:[#allocation7 + $0x740] sm:$0xff]
    %v634 = vld [vmem:[#allocation7 + $0x748] sm:$0xff]
    %v635 = vld [vmem:[#allocation7 + $0x750] sm:$0xff]
    %v636 = vld [vmem:[#allocation7 + $0x758] sm:$0xff]
    %v637 = vld [vmem:[#allocation7 + $0x760] sm:$0xff]
    %v638 = vld [vmem:[#allocation7 + $0x768] sm:$0xff]
    %v639 = vld [vmem:[#allocation7 + $0x770] sm:$0xff]
    %v640 = vld [vmem:[#allocation7 + $0x778] sm:$0xff]
    %v641 = vld [vmem:[#allocation7 + $0x780] sm:$0xff]
    %v642 = vld [vmem:[#allocation7 + $0x788] sm:$0xff]
    %v643 = vld [vmem:[#allocation7 + $0x790] sm:$0xff]
    %v644 = vld [vmem:[#allocation7 + $0x798] sm:$0xff]
    %v645 = vld [vmem:[#allocation7 + $0x7a0] sm:$0xff]
    %v646 = vld [vmem:[#allocation7 + $0x7a8] sm:$0xff]
    %v647 = vld [vmem:[#allocation7 + $0x7b0] sm:$0xff]
    %v648 = vld [vmem:[#allocation7 + $0x7b8] sm:$0xff]
    %v649 = vld [vmem:[#allocation7 + $0x7c0] sm:$0xff]
    %v650 = vld [vmem:[#allocation7 + $0x7c8] sm:$0xff]
    %v651 = vld [vmem:[#allocation7 + $0x7d0] sm:$0xff]
    %v652 = vld [vmem:[#allocation7 + $0x7d8] sm:$0xff]
    %v653 = vld [vmem:[#allocation7 + $0x7e0] sm:$0xff]
    %v654 = vld [vmem:[#allocation7 + $0x7e8] sm:$0xff]
    %v655 = vld [vmem:[#allocation7 + $0x7f0] sm:$0xff]
    %v656 = vld [vmem:[#allocation7 + $0x7f8] sm:$0xff]
    %v657 = vld [vmem:[#allocation7 + $0x800] sm:$0xff]
    %v658 = vld [vmem:[#allocation7 + $0x808] sm:$0xff]
    %v659 = vld [vmem:[#allocation7 + $0x810] sm:$0xff]
    %v660 = vld [vmem:[#allocation7 + $0x818] sm:$0xff]
    %v661 = vld [vmem:[#allocation7 + $0x820] sm:$0xff]
    %v662 = vld [vmem:[#allocation7 + $0x828] sm:$0xff]
    %v663 = vld [vmem:[#allocation7 + $0x830] sm:$0xff]
    %v664 = vld [vmem:[#allocation7 + $0x838] sm:$0xff]
    %v665 = vld [vmem:[#allocation7 + $0x840] sm:$0xff]
    %v666 = vld [vmem:[#allocation7 + $0x848] sm:$0xff]
    %v667 = vld [vmem:[#allocation7 + $0x850] sm:$0xff]
    %v668 = vld [vmem:[#allocation7 + $0x858] sm:$0xff]
    %v669 = vld [vmem:[#allocation7 + $0x860] sm:$0xff]
    %v670 = vld [vmem:[#allocation7 + $0x868] sm:$0xff]
    %v671 = vld [vmem:[#allocation7 + $0x870] sm:$0xff]
    %v672 = vld [vmem:[#allocation7 + $0x878] sm:$0xff]
    %v673 = vld [vmem:[#allocation7 + $0x880] sm:$0xff]
    %v674 = vld [vmem:[#allocation7 + $0x888] sm:$0xff]
    %v675 = vld [vmem:[#allocation7 + $0x890] sm:$0xff]
    %v676 = vld [vmem:[#allocation7 + $0x898] sm:$0xff]
    %v677 = vld [vmem:[#allocation7 + $0x8a0] sm:$0xff]
    %v678 = vld [vmem:[#allocation7 + $0x8a8] sm:$0xff]
    %v679 = vld [vmem:[#allocation7 + $0x8b0] sm:$0xff]
    %v680 = vld [vmem:[#allocation7 + $0x8b8] sm:$0xff]
    %v681 = vld [vmem:[#allocation7 + $0x8c0] sm:$0xff]
    %v682 = vld [vmem:[#allocation7 + $0x8c8] sm:$0xff]
    %v683 = vld [vmem:[#allocation7 + $0x8d0] sm:$0xff]
    %v684 = vld [vmem:[#allocation7 + $0x8d8] sm:$0xff]
    %v685 = vld [vmem:[#allocation7 + $0x8e0] sm:$0xff]
    %v686 = vld [vmem:[#allocation7 + $0x8e8] sm:$0xff]
    %v687 = vld [vmem:[#allocation7 + $0x8f0] sm:$0xff]
    %v688 = vld [vmem:[#allocation7 + $0x8f8] sm:$0xff]
    %v689 = vld [vmem:[#allocation7 + $0x900] sm:$0xff]
    %v690 = vld [vmem:[#allocation7 + $0x908] sm:$0xff]
    %v691 = vld [vmem:[#allocation7 + $0x910] sm:$0xff]
    %v692 = vld [vmem:[#allocation7 + $0x918] sm:$0xff]
    %v693 = vld [vmem:[#allocation7 + $0x920] sm:$0xff]
    %v694 = vld [vmem:[#allocation7 + $0x928] sm:$0xff]
    %v695 = vld [vmem:[#allocation7 + $0x930] sm:$0xff]
    %v696 = vld [vmem:[#allocation7 + $0x938] sm:$0xff]
    %v697 = vld [vmem:[#allocation7 + $0x940] sm:$0xff]
    %v698 = vld [vmem:[#allocation7 + $0x948] sm:$0xff]
    %v699 = vld [vmem:[#allocation7 + $0x950] sm:$0xff]
    %v700 = vld [vmem:[#allocation7 + $0x958] sm:$0xff]
    %v701 = vld [vmem:[#allocation7 + $0x960] sm:$0xff]
    %v702 = vld [vmem:[#allocation7 + $0x968] sm:$0xff]
    %v703 = vld [vmem:[#allocation7 + $0x970] sm:$0xff]
    %v704 = vld [vmem:[#allocation7 + $0x978] sm:$0xff]
    %v705 = vld [vmem:[#allocation7 + $0x980] sm:$0xff]
    %v706 = vld [vmem:[#allocation7 + $0x988] sm:$0xff]
    %v707 = vld [vmem:[#allocation7 + $0x990] sm:$0xff]
    %v708 = vld [vmem:[#allocation7 + $0x998] sm:$0xff]
    %v709 = vld [vmem:[#allocation7 + $0x9a0] sm:$0xff]
    %v710 = vld [vmem:[#allocation7 + $0x9a8] sm:$0xff]
    %v711 = vld [vmem:[#allocation7 + $0x9b0] sm:$0xff]
    %v712 = vld [vmem:[#allocation7 + $0x9b8] sm:$0xff]
    %v713 = vld [vmem:[#allocation7 + $0x9c0] sm:$0xff]
    %v714 = vld [vmem:[#allocation7 + $0x9c8] sm:$0xff]
    %v715 = vld [vmem:[#allocation7 + $0x9d0] sm:$0xff]
    %v716 = vld [vmem:[#allocation7 + $0x9d8] sm:$0xff]
    %v717 = vld [vmem:[#allocation7 + $0x9e0] sm:$0xff]
    %v718 = vld [vmem:[#allocation7 + $0x9e8] sm:$0xff]
    %v719 = vld [vmem:[#allocation7 + $0x9f0] sm:$0xff]
    %v720 = vld [vmem:[#allocation7 + $0x9f8] sm:$0xff]
    %v721 = vld [vmem:[#allocation7 + $0xa00] sm:$0xff]
    %v722 = vld [vmem:[#allocation7 + $0xa08] sm:$0xff]
    %v723 = vld [vmem:[#allocation7 + $0xa10] sm:$0xff]
    %v724 = vld [vmem:[#allocation7 + $0xa18] sm:$0xff]
    %v725 = vld [vmem:[#allocation7 + $0xa20] sm:$0xff]
    %v726 = vld [vmem:[#allocation7 + $0xa28] sm:$0xff]
    %v727 = vld [vmem:[#allocation7 + $0xa30] sm:$0xff]
    %v728 = vld [vmem:[#allocation7 + $0xa38] sm:$0xff]
    %v729 = vld [vmem:[#allocation7 + $0xa40] sm:$0xff]
    %v730 = vld [vmem:[#allocation7 + $0xa48] sm:$0xff]
    %v731 = vld [vmem:[#allocation7 + $0xa50] sm:$0xff]
    %v732 = vld [vmem:[#allocation7 + $0xa58] sm:$0xff]
    %v733 = vld [vmem:[#allocation7 + $0xa60] sm:$0xff]
    %v734 = vld [vmem:[#allocation7 + $0xa68] sm:$0xff]
    %v735 = vld [vmem:[#allocation7 + $0xa70] sm:$0xff]
    %v736 = vld [vmem:[#allocation7 + $0xa78] sm:$0xff]
    %v737 = vld [vmem:[#allocation7 + $0xa80] sm:$0xff]
    %v738 = vld [vmem:[#allocation7 + $0xa88] sm:$0xff]
    %v739 = vld [vmem:[#allocation7 + $0xa90] sm:$0xff]
    %v740 = vld [vmem:[#allocation7 + $0xa98] sm:$0xff]
    %v741 = vld [vmem:[#allocation7 + $0xaa0] sm:$0xff]
    %v742 = vld [vmem:[#allocation7 + $0xaa8] sm:$0xff]
    %v743 = vld [vmem:[#allocation7 + $0xab0] sm:$0xff]
    %v744 = vld [vmem:[#allocation7 + $0xab8] sm:$0xff]
    %v745 = vld [vmem:[#allocation7 + $0xac0] sm:$0xff]
    %v746 = vld [vmem:[#allocation7 + $0xac8] sm:$0xff]
    %v747 = vld [vmem:[#allocation7 + $0xad0] sm:$0xff]
    %v748 = vld [vmem:[#allocation7 + $0xad8] sm:$0xff]
    %v749 = vld [vmem:[#allocation7 + $0xae0] sm:$0xff]
    %v750 = vld [vmem:[#allocation7 + $0xae8] sm:$0xff]
    %v751 = vld [vmem:[#allocation7 + $0xaf0] sm:$0xff]
    %v752 = vld [vmem:[#allocation7 + $0xaf8] sm:$0xff]
    %v753 = vld [vmem:[#allocation7 + $0xb00] sm:$0xff]
    %v754 = vld [vmem:[#allocation7 + $0xb08] sm:$0xff]
    %v755 = vld [vmem:[#allocation7 + $0xb10] sm:$0xff]
    %v756 = vld [vmem:[#allocation7 + $0xb18] sm:$0xff]
    %v757 = vld [vmem:[#allocation7 + $0xb20] sm:$0xff]
    %v758 = vld [vmem:[#allocation7 + $0xb28] sm:$0xff]
    %v759 = vld [vmem:[#allocation7 + $0xb30] sm:$0xff]
    %v760 = vld [vmem:[#allocation7 + $0xb38] sm:$0xff]
    %v761 = vld [vmem:[#allocation7 + $0xb40] sm:$0xff]
    %v762 = vld [vmem:[#allocation7 + $0xb48] sm:$0xff]
    %v763 = vld [vmem:[#allocation7 + $0xb50] sm:$0xff]
    %v764 = vld [vmem:[#allocation7 + $0xb58] sm:$0xff]
    %v765 = vld [vmem:[#allocation7 + $0xb60] sm:$0xff]
    %v766 = vld [vmem:[#allocation7 + $0xb68] sm:$0xff]
    %v767 = vld [vmem:[#allocation7 + $0xb70] sm:$0xff]
    %v768 = vld [vmem:[#allocation7 + $0xb78] sm:$0xff]
    %v769 = vld [vmem:[#allocation7 + $0xb80] sm:$0xff]
    %v770 = vld [vmem:[#allocation7 + $0xb88] sm:$0xff]
    %v771 = vld [vmem:[#allocation7 + $0xb90] sm:$0xff]
    %v772 = vld [vmem:[#allocation7 + $0xb98] sm:$0xff]
    %v773 = vld [vmem:[#allocation7 + $0xba0] sm:$0xff]
    %v774 = vld [vmem:[#allocation7 + $0xba8] sm:$0xff]
    %v775 = vld [vmem:[#allocation7 + $0xbb0] sm:$0xff]
    %v776 = vld [vmem:[#allocation7 + $0xbb8] sm:$0xff]
    %v777 = vld [vmem:[#allocation7 + $0xbc0] sm:$0xff]
    %v778 = vld [vmem:[#allocation7 + $0xbc8] sm:$0xff]
    %v779 = vld [vmem:[#allocation7 + $0xbd0] sm:$0xff]
    %v780 = vld [vmem:[#allocation7 + $0xbd8] sm:$0xff]
    %v781 = vld [vmem:[#allocation7 + $0xbe0] sm:$0xff]
    %v782 = vld [vmem:[#allocation7 + $0xbe8] sm:$0xff]
    %v783 = vld [vmem:[#allocation7 + $0xbf0] sm:$0xff]
    %v784 = vld [vmem:[#allocation7 + $0xbf8] sm:$0xff]
    %v785 = vld [vmem:[#allocation7 + $0xc00] sm:$0xff]
    %v786 = vld [vmem:[#allocation7 + $0xc08] sm:$0xff]
    %v787 = vld [vmem:[#allocation7 + $0xc10] sm:$0xff]
    %v788 = vld [vmem:[#allocation7 + $0xc18] sm:$0xff]
    %v789 = vld [vmem:[#allocation7 + $0xc20] sm:$0xff]
    %v790 = vld [vmem:[#allocation7 + $0xc28] sm:$0xff]
    %v791 = vld [vmem:[#allocation7 + $0xc30] sm:$0xff]
    %v792 = vld [vmem:[#allocation7 + $0xc38] sm:$0xff]
    %v793 = vld [vmem:[#allocation7 + $0xc40] sm:$0xff]
    %v794 = vld [vmem:[#allocation7 + $0xc48] sm:$0xff]
    %v795 = vld [vmem:[#allocation7 + $0xc50] sm:$0xff]
    %v796 = vld [vmem:[#allocation7 + $0xc58] sm:$0xff]
    %v797 = vld [vmem:[#allocation7 + $0xc60] sm:$0xff]
    %v798 = vld [vmem:[#allocation7 + $0xc68] sm:$0xff]
    %v799 = vld [vmem:[#allocation7 + $0xc70] sm:$0xff]
    %v800 = vld [vmem:[#allocation7 + $0xc78] sm:$0xff]
    %v801 = vld [vmem:[#allocation7 + $0xc80] sm:$0xff]
    %v802 = vld [vmem:[#allocation7 + $0xc88] sm:$0xff]
    %v803 = vld [vmem:[#allocation7 + $0xc90] sm:$0xff]
    %v804 = vld [vmem:[#allocation7 + $0xc98] sm:$0xff]
    %v805 = vld [vmem:[#allocation7 + $0xca0] sm:$0xff]
    %v806 = vld [vmem:[#allocation7 + $0xca8] sm:$0xff]
    %v807 = vld [vmem:[#allocation7 + $0xcb0] sm:$0xff]
    %v808 = vld [vmem:[#allocation7 + $0xcb8] sm:$0xff]
    %v809 = vld [vmem:[#allocation7 + $0xcc0] sm:$0xff]
    %v810 = vld [vmem:[#allocation7 + $0xcc8] sm:$0xff]
    %v811 = vld [vmem:[#allocation7 + $0xcd0] sm:$0xff]
    %v812 = vld [vmem:[#allocation7 + $0xcd8] sm:$0xff]
    %v813 = vld [vmem:[#allocation7 + $0xce0] sm:$0xff]
    %v814 = vld [vmem:[#allocation7 + $0xce8] sm:$0xff]
    %v815 = vld [vmem:[#allocation7 + $0xcf0] sm:$0xff]
    %v816 = vld [vmem:[#allocation7 + $0xcf8] sm:$0xff]
    %v817 = vld [vmem:[#allocation7 + $0xd00] sm:$0xff]
    %v818 = vld [vmem:[#allocation7 + $0xd08] sm:$0xff]
    %v819 = vld [vmem:[#allocation7 + $0xd10] sm:$0xff]
    %v820 = vld [vmem:[#allocation7 + $0xd18] sm:$0xff]
    %v821 = vld [vmem:[#allocation7 + $0xd20] sm:$0xff]
    %v822 = vld [vmem:[#allocation7 + $0xd28] sm:$0xff]
    %v823 = vld [vmem:[#allocation7 + $0xd30] sm:$0xff]
    %v824 = vld [vmem:[#allocation7 + $0xd38] sm:$0xff]
    %v825 = vld [vmem:[#allocation7 + $0xd40] sm:$0xff]
    %v826 = vld [vmem:[#allocation7 + $0xd48] sm:$0xff]
    %v827 = vld [vmem:[#allocation7 + $0xd50] sm:$0xff]
    %v828 = vld [vmem:[#allocation7 + $0xd58] sm:$0xff]
    %v829 = vld [vmem:[#allocation7 + $0xd60] sm:$0xff]
    %v830 = vld [vmem:[#allocation7 + $0xd68] sm:$0xff]
    %v831 = vld [vmem:[#allocation7 + $0xd70] sm:$0xff]
    %v832 = vld [vmem:[#allocation7 + $0xd78] sm:$0xff]
    %v833 = vld [vmem:[#allocation7 + $0xd80] sm:$0xff]
    %v834 = vld [vmem:[#allocation7 + $0xd88] sm:$0xff]
    %v835 = vld [vmem:[#allocation7 + $0xd90] sm:$0xff]
    %v836 = vld [vmem:[#allocation7 + $0xd98] sm:$0xff]
    %v837 = vld [vmem:[#allocation7 + $0xda0] sm:$0xff]
    %v838 = vld [vmem:[#allocation7 + $0xda8] sm:$0xff]
    %v839 = vld [vmem:[#allocation7 + $0xdb0] sm:$0xff]
    %v840 = vld [vmem:[#allocation7 + $0xdb8] sm:$0xff]
    %v841 = vld [vmem:[#allocation7 + $0xdc0] sm:$0xff]
    %v842 = vld [vmem:[#allocation7 + $0xdc8] sm:$0xff]
    %v843 = vld [vmem:[#allocation7 + $0xdd0] sm:$0xff]
    %v844 = vld [vmem:[#allocation7 + $0xdd8] sm:$0xff]
    %v845 = vld [vmem:[#allocation7 + $0xde0] sm:$0xff]
    %v846 = vld [vmem:[#allocation7 + $0xde8] sm:$0xff]
    %v847 = vld [vmem:[#allocation7 + $0xdf0] sm:$0xff]
    %v848 = vld [vmem:[#allocation7 + $0xdf8] sm:$0xff]
    %v849 = vld [vmem:[#allocation7 + $0xe00] sm:$0xff]
    %v850 = vld [vmem:[#allocation7 + $0xe08] sm:$0xff]
    %v851 = vld [vmem:[#allocation7 + $0xe10] sm:$0xff]
    %v852 = vld [vmem:[#allocation7 + $0xe18] sm:$0xff]
    %v853 = vld [vmem:[#allocation7 + $0xe20] sm:$0xff]
    %v854 = vld [vmem:[#allocation7 + $0xe28] sm:$0xff]
    %v855 = vld [vmem:[#allocation7 + $0xe30] sm:$0xff]
    %v856 = vld [vmem:[#allocation7 + $0xe38] sm:$0xff]
    %v857 = vld [vmem:[#allocation7 + $0xe40] sm:$0xff]
    %v858 = vld [vmem:[#allocation7 + $0xe48] sm:$0xff]
    %v859 = vld [vmem:[#allocation7 + $0xe50] sm:$0xff]
    %v860 = vld [vmem:[#allocation7 + $0xe58] sm:$0xff]
    %v861 = vld [vmem:[#allocation7 + $0xe60] sm:$0xff]
    %v862 = vld [vmem:[#allocation7 + $0xe68] sm:$0xff]
    %v863 = vld [vmem:[#allocation7 + $0xe70] sm:$0xff]
    %v864 = vld [vmem:[#allocation7 + $0xe78] sm:$0xff]
    %v865 = vld [vmem:[#allocation7 + $0xe80] sm:$0xff]
    %v866 = vld [vmem:[#allocation7 + $0xe88] sm:$0xff]
    %v867 = vld [vmem:[#allocation7 + $0xe90] sm:$0xff]
    %v868 = vld [vmem:[#allocation7 + $0xe98] sm:$0xff]
    %v869 = vld [vmem:[#allocation7 + $0xea0] sm:$0xff]
    %v870 = vld [vmem:[#allocation7 + $0xea8] sm:$0xff]
    %v871 = vld [vmem:[#allocation7 + $0xeb0] sm:$0xff]
    %v872 = vld [vmem:[#allocation7 + $0xeb8] sm:$0xff]
    %v873 = vld [vmem:[#allocation7 + $0xec0] sm:$0xff]
    %v874 = vld [vmem:[#allocation7 + $0xec8] sm:$0xff]
    %v875 = vld [vmem:[#allocation7 + $0xed0] sm:$0xff]
    %v876 = vld [vmem:[#allocation7 + $0xed8] sm:$0xff]
    %v877 = vld [vmem:[#allocation7 + $0xee0] sm:$0xff]
    %v878 = vld [vmem:[#allocation7 + $0xee8] sm:$0xff]
    %v879 = vld [vmem:[#allocation7 + $0xef0] sm:$0xff]
    %v880 = vld [vmem:[#allocation7 + $0xef8] sm:$0xff]
    %v881 = vld [vmem:[#allocation7 + $0xf00] sm:$0xff]
    %v882 = vld [vmem:[#allocation7 + $0xf08] sm:$0xff]
    %v883 = vld [vmem:[#allocation7 + $0xf10] sm:$0xff]
    %v884 = vld [vmem:[#allocation7 + $0xf18] sm:$0xff]
    %v885 = vld [vmem:[#allocation7 + $0xf20] sm:$0xff]
    %v886 = vld [vmem:[#allocation7 + $0xf28] sm:$0xff]
    %v887 = vld [vmem:[#allocation7 + $0xf30] sm:$0xff]
    %v888 = vld [vmem:[#allocation7 + $0xf38] sm:$0xff]
    %v889 = vld [vmem:[#allocation7 + $0xf40] sm:$0xff]
    %v890 = vld [vmem:[#allocation7 + $0xf48] sm:$0xff]
    %v891 = vld [vmem:[#allocation7 + $0xf50] sm:$0xff]
    %v892 = vld [vmem:[#allocation7 + $0xf58] sm:$0xff]
    %v893 = vld [vmem:[#allocation7 + $0xf60] sm:$0xff]
    %v894 = vld [vmem:[#allocation7 + $0xf68] sm:$0xff]
    %v895 = vld [vmem:[#allocation7 + $0xf70] sm:$0xff]
    %v896 = vld [vmem:[#allocation7 + $0xf78] sm:$0xff]
    %v897 = vld [vmem:[#allocation7 + $0xf80] sm:$0xff]
    %v898 = vld [vmem:[#allocation7 + $0xf88] sm:$0xff]
    %v899 = vld [vmem:[#allocation7 + $0xf90] sm:$0xff]
    %v900 = vld [vmem:[#allocation7 + $0xf98] sm:$0xff]
    %v901 = vld [vmem:[#allocation7 + $0xfa0] sm:$0xff]
    %v902 = vld [vmem:[#allocation7 + $0xfa8] sm:$0xff]
    %v903 = vld [vmem:[#allocation7 + $0xfb0] sm:$0xff]
    %v904 = vld [vmem:[#allocation7 + $0xfb8] sm:$0xff]
    %v905 = vld [vmem:[#allocation7 + $0xfc0] sm:$0xff]
    %v906 = vld [vmem:[#allocation7 + $0xfc8] sm:$0xff]
    %v907 = vld [vmem:[#allocation7 + $0xfd0] sm:$0xff]
    %v908 = vld [vmem:[#allocation7 + $0xfd8] sm:$0xff]
    %v909 = vld [vmem:[#allocation7 + $0xfe0] sm:$0xff]
    %v910 = vld [vmem:[#allocation7 + $0xfe8] sm:$0xff]
    %v911 = vld [vmem:[#allocation7 + $0xff0] sm:$0xff]
    %v912 = vld [vmem:[#allocation7 + $0xff8] sm:$0xff]
    %914 = vst [vmem:[#allocation1] ss:$9 sm:$0xff] %v400
    %v915 = vld [vmem:[#allocation1] sm:$0xff]
    %v916 = vld [vmem:[#allocation1 + $0x9] sm:$0xff]
    %v917 = vld [vmem:[#allocation1 + $0x12] sm:$0xff]
    %v918 = vld [vmem:[#allocation1 + $0x1b] sm:$0xff]
    %v919 = vld [vmem:[#allocation1 + $0x24] sm:$0xff]
    %v920 = vld [vmem:[#allocation1 + $0x2d] sm:$0xff]
    %v921 = vld [vmem:[#allocation1 + $0x36] sm:$0xff]
    %v922 = vld [vmem:[#allocation1 + $0x3f] sm:$0xff]
    %v1443 = vunpack.c.l.b16 %v401
    %v1444 = vunpack.c.h.b16 %v401
    %v1445 = vunpack.c.l.b16 %v402
    %v1446 = vunpack.c.h.b16 %v402
    %v1447 = vunpack.c.l.b16 %v403
    %v1448 = vunpack.c.h.b16 %v403
    %v1449 = vunpack.c.l.b16 %v404
    %v1450 = vunpack.c.h.b16 %v404
    %v1451 = vunpack.c.l.b16 %v405
    %v1452 = vunpack.c.h.b16 %v405
    %v1453 = vunpack.c.l.b16 %v406
    %v1454 = vunpack.c.h.b16 %v406
    %v1455 = vunpack.c.l.b16 %v407
    %v1456 = vunpack.c.h.b16 %v407
    %v1457 = vunpack.c.l.b16 %v408
    %v1458 = vunpack.c.h.b16 %v408
    %v1459 = vunpack.c.l.b16 %v409
    %v1460 = vunpack.c.h.b16 %v409
    %v1461 = vunpack.c.l.b16 %v410
    %v1462 = vunpack.c.h.b16 %v410
    %v1463 = vunpack.c.l.b16 %v411
    %v1464 = vunpack.c.h.b16 %v411
    %v1465 = vunpack.c.l.b16 %v412
    %v1466 = vunpack.c.h.b16 %v412
    %v1467 = vunpack.c.l.b16 %v413
    %v1468 = vunpack.c.h.b16 %v413
    %v1469 = vunpack.c.l.b16 %v414
    %v1470 = vunpack.c.h.b16 %v414
    %v1471 = vunpack.c.l.b16 %v415
    %v1472 = vunpack.c.h.b16 %v415
    %v1473 = vunpack.c.l.b16 %v416
    %v1474 = vunpack.c.h.b16 %v416
    %v1475 = vunpack.c.l.b16 %v417
    %v1476 = vunpack.c.h.b16 %v417
    %v1477 = vunpack.c.l.b16 %v418
    %v1478 = vunpack.c.h.b16 %v418
    %v1479 = vunpack.c.l.b16 %v419
    %v1480 = vunpack.c.h.b16 %v419
    %v1481 = vunpack.c.l.b16 %v420
    %v1482 = vunpack.c.h.b16 %v420
    %v1483 = vunpack.c.l.b16 %v421
    %v1484 = vunpack.c.h.b16 %v421
    %v1485 = vunpack.c.l.b16 %v422
    %v1486 = vunpack.c.h.b16 %v422
    %v1487 = vunpack.c.l.b16 %v423
    %v1488 = vunpack.c.h.b16 %v423
    %v1489 = vunpack.c.l.b16 %v424
    %v1490 = vunpack.c.h.b16 %v424
    %v1491 = vunpack.c.l.b16 %v425
    %v1492 = vunpack.c.h.b16 %v425
    %v1493 = vunpack.c.l.b16 %v426
    %v1494 = vunpack.c.h.b16 %v426
    %v1495 = vunpack.c.l.b16 %v427
    %v1496 = vunpack.c.h.b16 %v427
    %v1497 = vunpack.c.l.b16 %v428
    %v1498 = vunpack.c.h.b16 %v428
    %v1499 = vunpack.c.l.b16 %v429
    %v1500 = vunpack.c.h.b16 %v429
    %v1501 = vunpack.c.l.b16 %v430
    %v1502 = vunpack.c.h.b16 %v430
    %v1503 = vunpack.c.l.b16 %v431
    %v1504 = vunpack.c.h.b16 %v431
    %v1505 = vunpack.c.l.b16 %v432
    %v1506 = vunpack.c.h.b16 %v432
    %v1507 = vunpack.c.l.b16 %v433
    %v1508 = vunpack.c.h.b16 %v433
    %v1509 = vunpack.c.l.b16 %v434
    %v1510 = vunpack.c.h.b16 %v434
    %v1511 = vunpack.c.l.b16 %v435
    %v1512 = vunpack.c.h.b16 %v435
    %v1513 = vunpack.c.l.b16 %v436
    %v1514 = vunpack.c.h.b16 %v436
    %v1515 = vunpack.c.l.b16 %v437
    %v1516 = vunpack.c.h.b16 %v437
    %v1517 = vunpack.c.l.b16 %v438
    %v1518 = vunpack.c.h.b16 %v438
    %v1519 = vunpack.c.l.b16 %v439
    %v1520 = vunpack.c.h.b16 %v439
    %v1521 = vunpack.c.l.b16 %v440
    %v1522 = vunpack.c.h.b16 %v440
    %v1523 = vunpack.c.l.b16 %v441
    %v1524 = vunpack.c.h.b16 %v441
    %v1525 = vunpack.c.l.b16 %v442
    %v1526 = vunpack.c.h.b16 %v442
    %v1527 = vunpack.c.l.b16 %v443
    %v1528 = vunpack.c.h.b16 %v443
    %v1529 = vunpack.c.l.b16 %v444
    %v1530 = vunpack.c.h.b16 %v444
    %v1531 = vunpack.c.l.b16 %v445
    %v1532 = vunpack.c.h.b16 %v445
    %v1533 = vunpack.c.l.b16 %v446
    %v1534 = vunpack.c.h.b16 %v446
    %v1535 = vunpack.c.l.b16 %v447
    %v1536 = vunpack.c.h.b16 %v447
    %v1537 = vunpack.c.l.b16 %v448
    %v1538 = vunpack.c.h.b16 %v448
    %v1539 = vunpack.c.l.b16 %v449
    %v1540 = vunpack.c.h.b16 %v449
    %v1541 = vunpack.c.l.b16 %v450
    %v1542 = vunpack.c.h.b16 %v450
    %v1543 = vunpack.c.l.b16 %v451
    %v1544 = vunpack.c.h.b16 %v451
    %v1545 = vunpack.c.l.b16 %v452
    %v1546 = vunpack.c.h.b16 %v452
    %v1547 = vunpack.c.l.b16 %v453
    %v1548 = vunpack.c.h.b16 %v453
    %v1549 = vunpack.c.l.b16 %v454
    %v1550 = vunpack.c.h.b16 %v454
    %v1551 = vunpack.c.l.b16 %v455
    %v1552 = vunpack.c.h.b16 %v455
    %v1553 = vunpack.c.l.b16 %v456
    %v1554 = vunpack.c.h.b16 %v456
    %v1555 = vunpack.c.l.b16 %v457
    %v1556 = vunpack.c.h.b16 %v457
    %v1557 = vunpack.c.l.b16 %v458
    %v1558 = vunpack.c.h.b16 %v458
    %v1559 = vunpack.c.l.b16 %v459
    %v1560 = vunpack.c.h.b16 %v459
    %v1561 = vunpack.c.l.b16 %v460
    %v1562 = vunpack.c.h.b16 %v460
    %v1563 = vunpack.c.l.b16 %v461
    %v1564 = vunpack.c.h.b16 %v461
    %v1565 = vunpack.c.l.b16 %v462
    %v1566 = vunpack.c.h.b16 %v462
    %v1567 = vunpack.c.l.b16 %v463
    %v1568 = vunpack.c.h.b16 %v463
    %v1569 = vunpack.c.l.b16 %v464
    %v1570 = vunpack.c.h.b16 %v464
    %v1571 = vunpack.c.l.b16 %v465
    %v1572 = vunpack.c.h.b16 %v465
    %v1573 = vunpack.c.l.b16 %v466
    %v1574 = vunpack.c.h.b16 %v466
    %v1575 = vunpack.c.l.b16 %v467
    %v1576 = vunpack.c.h.b16 %v467
    %v1577 = vunpack.c.l.b16 %v468
    %v1578 = vunpack.c.h.b16 %v468
    %v1579 = vunpack.c.l.b16 %v469
    %v1580 = vunpack.c.h.b16 %v469
    %v1581 = vunpack.c.l.b16 %v470
    %v1582 = vunpack.c.h.b16 %v470
    %v1583 = vunpack.c.l.b16 %v471
    %v1584 = vunpack.c.h.b16 %v471
    %v1585 = vunpack.c.l.b16 %v472
    %v1586 = vunpack.c.h.b16 %v472
    %v1587 = vunpack.c.l.b16 %v473
    %v1588 = vunpack.c.h.b16 %v473
    %v1589 = vunpack.c.l.b16 %v474
    %v1590 = vunpack.c.h.b16 %v474
    %v1591 = vunpack.c.l.b16 %v475
    %v1592 = vunpack.c.h.b16 %v475
    %v1593 = vunpack.c.l.b16 %v476
    %v1594 = vunpack.c.h.b16 %v476
    %v1595 = vunpack.c.l.b16 %v477
    %v1596 = vunpack.c.h.b16 %v477
    %v1597 = vunpack.c.l.b16 %v478
    %v1598 = vunpack.c.h.b16 %v478
    %v1599 = vunpack.c.l.b16 %v479
    %v1600 = vunpack.c.h.b16 %v479
    %v1601 = vunpack.c.l.b16 %v480
    %v1602 = vunpack.c.h.b16 %v480
    %v1603 = vunpack.c.l.b16 %v481
    %v1604 = vunpack.c.h.b16 %v481
    %v1605 = vunpack.c.l.b16 %v482
    %v1606 = vunpack.c.h.b16 %v482
    %v1607 = vunpack.c.l.b16 %v483
    %v1608 = vunpack.c.h.b16 %v483
    %v1609 = vunpack.c.l.b16 %v484
    %v1610 = vunpack.c.h.b16 %v484
    %v1611 = vunpack.c.l.b16 %v485
    %v1612 = vunpack.c.h.b16 %v485
    %v1613 = vunpack.c.l.b16 %v486
    %v1614 = vunpack.c.h.b16 %v486
    %v1615 = vunpack.c.l.b16 %v487
    %v1616 = vunpack.c.h.b16 %v487
    %v1617 = vunpack.c.l.b16 %v488
    %v1618 = vunpack.c.h.b16 %v488
    %v1619 = vunpack.c.l.b16 %v489
    %v1620 = vunpack.c.h.b16 %v489
    %v1621 = vunpack.c.l.b16 %v490
    %v1622 = vunpack.c.h.b16 %v490
    %v1623 = vunpack.c.l.b16 %v491
    %v1624 = vunpack.c.h.b16 %v491
    %v1625 = vunpack.c.l.b16 %v492
    %v1626 = vunpack.c.h.b16 %v492
    %v1627 = vunpack.c.l.b16 %v493
    %v1628 = vunpack.c.h.b16 %v493
    %v1629 = vunpack.c.l.b16 %v494
    %v1630 = vunpack.c.h.b16 %v494
    %v1631 = vunpack.c.l.b16 %v495
    %v1632 = vunpack.c.h.b16 %v495
    %v1633 = vunpack.c.l.b16 %v496
    %v1634 = vunpack.c.h.b16 %v496
    %v1635 = vunpack.c.l.b16 %v497
    %v1636 = vunpack.c.h.b16 %v497
    %v1637 = vunpack.c.l.b16 %v498
    %v1638 = vunpack.c.h.b16 %v498
    %v1639 = vunpack.c.l.b16 %v499
    %v1640 = vunpack.c.h.b16 %v499
    %v1641 = vunpack.c.l.b16 %v500
    %v1642 = vunpack.c.h.b16 %v500
    %v1643 = vunpack.c.l.b16 %v501
    %v1644 = vunpack.c.h.b16 %v501
    %v1645 = vunpack.c.l.b16 %v502
    %v1646 = vunpack.c.h.b16 %v502
    %v1647 = vunpack.c.l.b16 %v503
    %v1648 = vunpack.c.h.b16 %v503
    %v1649 = vunpack.c.l.b16 %v504
    %v1650 = vunpack.c.h.b16 %v504
    %v1651 = vunpack.c.l.b16 %v505
    %v1652 = vunpack.c.h.b16 %v505
    %v1653 = vunpack.c.l.b16 %v506
    %v1654 = vunpack.c.h.b16 %v506
    %v1655 = vunpack.c.l.b16 %v507
    %v1656 = vunpack.c.h.b16 %v507
    %v1657 = vunpack.c.l.b16 %v508
    %v1658 = vunpack.c.h.b16 %v508
    %v1659 = vunpack.c.l.b16 %v509
    %v1660 = vunpack.c.h.b16 %v509
    %v1661 = vunpack.c.l.b16 %v510
    %v1662 = vunpack.c.h.b16 %v510
    %v1663 = vunpack.c.l.b16 %v511
    %v1664 = vunpack.c.h.b16 %v511
    %v1665 = vunpack.c.l.b16 %v512
    %v1666 = vunpack.c.h.b16 %v512
    %v1667 = vunpack.c.l.b16 %v513
    %v1668 = vunpack.c.h.b16 %v513
    %v1669 = vunpack.c.l.b16 %v514
    %v1670 = vunpack.c.h.b16 %v514
    %v1671 = vunpack.c.l.b16 %v515
    %v1672 = vunpack.c.h.b16 %v515
    %v1673 = vunpack.c.l.b16 %v516
    %v1674 = vunpack.c.h.b16 %v516
    %v1675 = vunpack.c.l.b16 %v517
    %v1676 = vunpack.c.h.b16 %v517
    %v1677 = vunpack.c.l.b16 %v518
    %v1678 = vunpack.c.h.b16 %v518
    %v1679 = vunpack.c.l.b16 %v519
    %v1680 = vunpack.c.h.b16 %v519
    %v1681 = vunpack.c.l.b16 %v520
    %v1682 = vunpack.c.h.b16 %v520
    %v1683 = vunpack.c.l.b16 %v521
    %v1684 = vunpack.c.h.b16 %v521
    %v1685 = vunpack.c.l.b16 %v522
    %v1686 = vunpack.c.h.b16 %v522
    %v1687 = vunpack.c.l.b16 %v523
    %v1688 = vunpack.c.h.b16 %v523
    %v1689 = vunpack.c.l.b16 %v524
    %v1690 = vunpack.c.h.b16 %v524
    %v1691 = vunpack.c.l.b16 %v525
    %v1692 = vunpack.c.h.b16 %v525
    %v1693 = vunpack.c.l.b16 %v526
    %v1694 = vunpack.c.h.b16 %v526
    %v1695 = vunpack.c.l.b16 %v527
    %v1696 = vunpack.c.h.b16 %v527
    %v1697 = vunpack.c.l.b16 %v528
    %v1698 = vunpack.c.h.b16 %v528
    %v1699 = vunpack.c.l.b16 %v529
    %v1700 = vunpack.c.h.b16 %v529
    %v1701 = vunpack.c.l.b16 %v530
    %v1702 = vunpack.c.h.b16 %v530
    %v1703 = vunpack.c.l.b16 %v531
    %v1704 = vunpack.c.h.b16 %v531
    %v1705 = vunpack.c.l.b16 %v532
    %v1706 = vunpack.c.h.b16 %v532
    %v1707 = vunpack.c.l.b16 %v533
    %v1708 = vunpack.c.h.b16 %v533
    %v1709 = vunpack.c.l.b16 %v534
    %v1710 = vunpack.c.h.b16 %v534
    %v1711 = vunpack.c.l.b16 %v535
    %v1712 = vunpack.c.h.b16 %v535
    %v1713 = vunpack.c.l.b16 %v536
    %v1714 = vunpack.c.h.b16 %v536
    %v1715 = vunpack.c.l.b16 %v537
    %v1716 = vunpack.c.h.b16 %v537
    %v1717 = vunpack.c.l.b16 %v538
    %v1718 = vunpack.c.h.b16 %v538
    %v1719 = vunpack.c.l.b16 %v539
    %v1720 = vunpack.c.h.b16 %v539
    %v1721 = vunpack.c.l.b16 %v540
    %v1722 = vunpack.c.h.b16 %v540
    %v1723 = vunpack.c.l.b16 %v541
    %v1724 = vunpack.c.h.b16 %v541
    %v1725 = vunpack.c.l.b16 %v542
    %v1726 = vunpack.c.h.b16 %v542
    %v1727 = vunpack.c.l.b16 %v543
    %v1728 = vunpack.c.h.b16 %v543
    %v1729 = vunpack.c.l.b16 %v544
    %v1730 = vunpack.c.h.b16 %v544
    %v1731 = vunpack.c.l.b16 %v545
    %v1732 = vunpack.c.h.b16 %v545
    %v1733 = vunpack.c.l.b16 %v546
    %v1734 = vunpack.c.h.b16 %v546
    %v1735 = vunpack.c.l.b16 %v547
    %v1736 = vunpack.c.h.b16 %v547
    %v1737 = vunpack.c.l.b16 %v548
    %v1738 = vunpack.c.h.b16 %v548
    %v1739 = vunpack.c.l.b16 %v549
    %v1740 = vunpack.c.h.b16 %v549
    %v1741 = vunpack.c.l.b16 %v550
    %v1742 = vunpack.c.h.b16 %v550
    %v1743 = vunpack.c.l.b16 %v551
    %v1744 = vunpack.c.h.b16 %v551
    %v1745 = vunpack.c.l.b16 %v552
    %v1746 = vunpack.c.h.b16 %v552
    %v1747 = vunpack.c.l.b16 %v553
    %v1748 = vunpack.c.h.b16 %v553
    %v1749 = vunpack.c.l.b16 %v554
    %v1750 = vunpack.c.h.b16 %v554
    %v1751 = vunpack.c.l.b16 %v555
    %v1752 = vunpack.c.h.b16 %v555
    %v1753 = vunpack.c.l.b16 %v556
    %v1754 = vunpack.c.h.b16 %v556
    %v1755 = vunpack.c.l.b16 %v557
    %v1756 = vunpack.c.h.b16 %v557
    %v1757 = vunpack.c.l.b16 %v558
    %v1758 = vunpack.c.h.b16 %v558
    %v1759 = vunpack.c.l.b16 %v559
    %v1760 = vunpack.c.h.b16 %v559
    %v1761 = vunpack.c.l.b16 %v560
    %v1762 = vunpack.c.h.b16 %v560
    %v1763 = vunpack.c.l.b16 %v561
    %v1764 = vunpack.c.h.b16 %v561
    %v1765 = vunpack.c.l.b16 %v562
    %v1766 = vunpack.c.h.b16 %v562
    %v1767 = vunpack.c.l.b16 %v563
    %v1768 = vunpack.c.h.b16 %v563
    %v1769 = vunpack.c.l.b16 %v564
    %v1770 = vunpack.c.h.b16 %v564
    %v1771 = vunpack.c.l.b16 %v565
    %v1772 = vunpack.c.h.b16 %v565
    %v1773 = vunpack.c.l.b16 %v566
    %v1774 = vunpack.c.h.b16 %v566
    %v1775 = vunpack.c.l.b16 %v567
    %v1776 = vunpack.c.h.b16 %v567
    %v1777 = vunpack.c.l.b16 %v568
    %v1778 = vunpack.c.h.b16 %v568
    %v1779 = vunpack.c.l.b16 %v569
    %v1780 = vunpack.c.h.b16 %v569
    %v1781 = vunpack.c.l.b16 %v570
    %v1782 = vunpack.c.h.b16 %v570
    %v1783 = vunpack.c.l.b16 %v571
    %v1784 = vunpack.c.h.b16 %v571
    %v1785 = vunpack.c.l.b16 %v572
    %v1786 = vunpack.c.h.b16 %v572
    %v1787 = vunpack.c.l.b16 %v573
    %v1788 = vunpack.c.h.b16 %v573
    %v1789 = vunpack.c.l.b16 %v574
    %v1790 = vunpack.c.h.b16 %v574
    %v1791 = vunpack.c.l.b16 %v575
    %v1792 = vunpack.c.h.b16 %v575
    %v1793 = vunpack.c.l.b16 %v576
    %v1794 = vunpack.c.h.b16 %v576
    %v1795 = vunpack.c.l.b16 %v577
    %v1796 = vunpack.c.h.b16 %v577
    %v1797 = vunpack.c.l.b16 %v578
    %v1798 = vunpack.c.h.b16 %v578
    %v1799 = vunpack.c.l.b16 %v579
    %v1800 = vunpack.c.h.b16 %v579
    %v1801 = vunpack.c.l.b16 %v580
    %v1802 = vunpack.c.h.b16 %v580
    %v1803 = vunpack.c.l.b16 %v581
    %v1804 = vunpack.c.h.b16 %v581
    %v1805 = vunpack.c.l.b16 %v582
    %v1806 = vunpack.c.h.b16 %v582
    %v1807 = vunpack.c.l.b16 %v583
    %v1808 = vunpack.c.h.b16 %v583
    %v1809 = vunpack.c.l.b16 %v584
    %v1810 = vunpack.c.h.b16 %v584
    %v1811 = vunpack.c.l.b16 %v585
    %v1812 = vunpack.c.h.b16 %v585
    %v1813 = vunpack.c.l.b16 %v586
    %v1814 = vunpack.c.h.b16 %v586
    %v1815 = vunpack.c.l.b16 %v587
    %v1816 = vunpack.c.h.b16 %v587
    %v1817 = vunpack.c.l.b16 %v588
    %v1818 = vunpack.c.h.b16 %v588
    %v1819 = vunpack.c.l.b16 %v589
    %v1820 = vunpack.c.h.b16 %v589
    %v1821 = vunpack.c.l.b16 %v590
    %v1822 = vunpack.c.h.b16 %v590
    %v1823 = vunpack.c.l.b16 %v591
    %v1824 = vunpack.c.h.b16 %v591
    %v1825 = vunpack.c.l.b16 %v592
    %v1826 = vunpack.c.h.b16 %v592
    %v1827 = vunpack.c.l.b16 %v593
    %v1828 = vunpack.c.h.b16 %v593
    %v1829 = vunpack.c.l.b16 %v594
    %v1830 = vunpack.c.h.b16 %v594
    %v1831 = vunpack.c.l.b16 %v595
    %v1832 = vunpack.c.h.b16 %v595
    %v1833 = vunpack.c.l.b16 %v596
    %v1834 = vunpack.c.h.b16 %v596
    %v1835 = vunpack.c.l.b16 %v597
    %v1836 = vunpack.c.h.b16 %v597
    %v1837 = vunpack.c.l.b16 %v598
    %v1838 = vunpack.c.h.b16 %v598
    %v1839 = vunpack.c.l.b16 %v599
    %v1840 = vunpack.c.h.b16 %v599
    %v1841 = vunpack.c.l.b16 %v600
    %v1842 = vunpack.c.h.b16 %v600
    %v1843 = vunpack.c.l.b16 %v601
    %v1844 = vunpack.c.h.b16 %v601
    %v1845 = vunpack.c.l.b16 %v602
    %v1846 = vunpack.c.h.b16 %v602
    %v1847 = vunpack.c.l.b16 %v603
    %v1848 = vunpack.c.h.b16 %v603
    %v1849 = vunpack.c.l.b16 %v604
    %v1850 = vunpack.c.h.b16 %v604
    %v1851 = vunpack.c.l.b16 %v605
    %v1852 = vunpack.c.h.b16 %v605
    %v1853 = vunpack.c.l.b16 %v606
    %v1854 = vunpack.c.h.b16 %v606
    %v1855 = vunpack.c.l.b16 %v607
    %v1856 = vunpack.c.h.b16 %v607
    %v1857 = vunpack.c.l.b16 %v608
    %v1858 = vunpack.c.h.b16 %v608
    %v1859 = vunpack.c.l.b16 %v609
    %v1860 = vunpack.c.h.b16 %v609
    %v1861 = vunpack.c.l.b16 %v610
    %v1862 = vunpack.c.h.b16 %v610
    %v1863 = vunpack.c.l.b16 %v611
    %v1864 = vunpack.c.h.b16 %v611
    %v1865 = vunpack.c.l.b16 %v612
    %v1866 = vunpack.c.h.b16 %v612
    %v1867 = vunpack.c.l.b16 %v613
    %v1868 = vunpack.c.h.b16 %v613
    %v1869 = vunpack.c.l.b16 %v614
    %v1870 = vunpack.c.h.b16 %v614
    %v1871 = vunpack.c.l.b16 %v615
    %v1872 = vunpack.c.h.b16 %v615
    %v1873 = vunpack.c.l.b16 %v616
    %v1874 = vunpack.c.h.b16 %v616
    %v1875 = vunpack.c.l.b16 %v617
    %v1876 = vunpack.c.h.b16 %v617
    %v1877 = vunpack.c.l.b16 %v618
    %v1878 = vunpack.c.h.b16 %v618
    %v1879 = vunpack.c.l.b16 %v619
    %v1880 = vunpack.c.h.b16 %v619
    %v1881 = vunpack.c.l.b16 %v620
    %v1882 = vunpack.c.h.b16 %v620
    %v1883 = vunpack.c.l.b16 %v621
    %v1884 = vunpack.c.h.b16 %v621
    %v1885 = vunpack.c.l.b16 %v622
    %v1886 = vunpack.c.h.b16 %v622
    %v1887 = vunpack.c.l.b16 %v623
    %v1888 = vunpack.c.h.b16 %v623
    %v1889 = vunpack.c.l.b16 %v624
    %v1890 = vunpack.c.h.b16 %v624
    %v1891 = vunpack.c.l.b16 %v625
    %v1892 = vunpack.c.h.b16 %v625
    %v1893 = vunpack.c.l.b16 %v626
    %v1894 = vunpack.c.h.b16 %v626
    %v1895 = vunpack.c.l.b16 %v627
    %v1896 = vunpack.c.h.b16 %v627
    %v1897 = vunpack.c.l.b16 %v628
    %v1898 = vunpack.c.h.b16 %v628
    %v1899 = vunpack.c.l.b16 %v629
    %v1900 = vunpack.c.h.b16 %v629
    %v1901 = vunpack.c.l.b16 %v630
    %v1902 = vunpack.c.h.b16 %v630
    %v1903 = vunpack.c.l.b16 %v631
    %v1904 = vunpack.c.h.b16 %v631
    %v1905 = vunpack.c.l.b16 %v632
    %v1906 = vunpack.c.h.b16 %v632
    %v1907 = vunpack.c.l.b16 %v633
    %v1908 = vunpack.c.h.b16 %v633
    %v1909 = vunpack.c.l.b16 %v634
    %v1910 = vunpack.c.h.b16 %v634
    %v1911 = vunpack.c.l.b16 %v635
    %v1912 = vunpack.c.h.b16 %v635
    %v1913 = vunpack.c.l.b16 %v636
    %v1914 = vunpack.c.h.b16 %v636
    %v1915 = vunpack.c.l.b16 %v637
    %v1916 = vunpack.c.h.b16 %v637
    %v1917 = vunpack.c.l.b16 %v638
    %v1918 = vunpack.c.h.b16 %v638
    %v1919 = vunpack.c.l.b16 %v639
    %v1920 = vunpack.c.h.b16 %v639
    %v1921 = vunpack.c.l.b16 %v640
    %v1922 = vunpack.c.h.b16 %v640
    %v1923 = vunpack.c.l.b16 %v641
    %v1924 = vunpack.c.h.b16 %v641
    %v1925 = vunpack.c.l.b16 %v642
    %v1926 = vunpack.c.h.b16 %v642
    %v1927 = vunpack.c.l.b16 %v643
    %v1928 = vunpack.c.h.b16 %v643
    %v1929 = vunpack.c.l.b16 %v644
    %v1930 = vunpack.c.h.b16 %v644
    %v1931 = vunpack.c.l.b16 %v645
    %v1932 = vunpack.c.h.b16 %v645
    %v1933 = vunpack.c.l.b16 %v646
    %v1934 = vunpack.c.h.b16 %v646
    %v1935 = vunpack.c.l.b16 %v647
    %v1936 = vunpack.c.h.b16 %v647
    %v1937 = vunpack.c.l.b16 %v648
    %v1938 = vunpack.c.h.b16 %v648
    %v1939 = vunpack.c.l.b16 %v649
    %v1940 = vunpack.c.h.b16 %v649
    %v1941 = vunpack.c.l.b16 %v650
    %v1942 = vunpack.c.h.b16 %v650
    %v1943 = vunpack.c.l.b16 %v651
    %v1944 = vunpack.c.h.b16 %v651
    %v1945 = vunpack.c.l.b16 %v652
    %v1946 = vunpack.c.h.b16 %v652
    %v1947 = vunpack.c.l.b16 %v653
    %v1948 = vunpack.c.h.b16 %v653
    %v1949 = vunpack.c.l.b16 %v654
    %v1950 = vunpack.c.h.b16 %v654
    %v1951 = vunpack.c.l.b16 %v655
    %v1952 = vunpack.c.h.b16 %v655
    %v1953 = vunpack.c.l.b16 %v656
    %v1954 = vunpack.c.h.b16 %v656
    %v1955 = vunpack.c.l.b16 %v657
    %v1956 = vunpack.c.h.b16 %v657
    %v1957 = vunpack.c.l.b16 %v658
    %v1958 = vunpack.c.h.b16 %v658
    %v1959 = vunpack.c.l.b16 %v659
    %v1960 = vunpack.c.h.b16 %v659
    %v1961 = vunpack.c.l.b16 %v660
    %v1962 = vunpack.c.h.b16 %v660
    %v1963 = vunpack.c.l.b16 %v661
    %v1964 = vunpack.c.h.b16 %v661
    %v1965 = vunpack.c.l.b16 %v662
    %v1966 = vunpack.c.h.b16 %v662
    %v1967 = vunpack.c.l.b16 %v663
    %v1968 = vunpack.c.h.b16 %v663
    %v1969 = vunpack.c.l.b16 %v664
    %v1970 = vunpack.c.h.b16 %v664
    %v1971 = vunpack.c.l.b16 %v665
    %v1972 = vunpack.c.h.b16 %v665
    %v1973 = vunpack.c.l.b16 %v666
    %v1974 = vunpack.c.h.b16 %v666
    %v1975 = vunpack.c.l.b16 %v667
    %v1976 = vunpack.c.h.b16 %v667
    %v1977 = vunpack.c.l.b16 %v668
    %v1978 = vunpack.c.h.b16 %v668
    %v1979 = vunpack.c.l.b16 %v669
    %v1980 = vunpack.c.h.b16 %v669
    %v1981 = vunpack.c.l.b16 %v670
    %v1982 = vunpack.c.h.b16 %v670
    %v1983 = vunpack.c.l.b16 %v671
    %v1984 = vunpack.c.h.b16 %v671
    %v1985 = vunpack.c.l.b16 %v672
    %v1986 = vunpack.c.h.b16 %v672
    %v1987 = vunpack.c.l.b16 %v673
    %v1988 = vunpack.c.h.b16 %v673
    %v1989 = vunpack.c.l.b16 %v674
    %v1990 = vunpack.c.h.b16 %v674
    %v1991 = vunpack.c.l.b16 %v675
    %v1992 = vunpack.c.h.b16 %v675
    %v1993 = vunpack.c.l.b16 %v676
    %v1994 = vunpack.c.h.b16 %v676
    %v1995 = vunpack.c.l.b16 %v677
    %v1996 = vunpack.c.h.b16 %v677
    %v1997 = vunpack.c.l.b16 %v678
    %v1998 = vunpack.c.h.b16 %v678
    %v1999 = vunpack.c.l.b16 %v679
    %v2000 = vunpack.c.h.b16 %v679
    %v2001 = vunpack.c.l.b16 %v680
    %v2002 = vunpack.c.h.b16 %v680
    %v2003 = vunpack.c.l.b16 %v681
    %v2004 = vunpack.c.h.b16 %v681
    %v2005 = vunpack.c.l.b16 %v682
    %v2006 = vunpack.c.h.b16 %v682
    %v2007 = vunpack.c.l.b16 %v683
    %v2008 = vunpack.c.h.b16 %v683
    %v2009 = vunpack.c.l.b16 %v684
    %v2010 = vunpack.c.h.b16 %v684
    %v2011 = vunpack.c.l.b16 %v685
    %v2012 = vunpack.c.h.b16 %v685
    %v2013 = vunpack.c.l.b16 %v686
    %v2014 = vunpack.c.h.b16 %v686
    %v2015 = vunpack.c.l.b16 %v687
    %v2016 = vunpack.c.h.b16 %v687
    %v2017 = vunpack.c.l.b16 %v688
    %v2018 = vunpack.c.h.b16 %v688
    %v2019 = vunpack.c.l.b16 %v689
    %v2020 = vunpack.c.h.b16 %v689
    %v2021 = vunpack.c.l.b16 %v690
    %v2022 = vunpack.c.h.b16 %v690
    %v2023 = vunpack.c.l.b16 %v691
    %v2024 = vunpack.c.h.b16 %v691
    %v2025 = vunpack.c.l.b16 %v692
    %v2026 = vunpack.c.h.b16 %v692
    %v2027 = vunpack.c.l.b16 %v693
    %v2028 = vunpack.c.h.b16 %v693
    %v2029 = vunpack.c.l.b16 %v694
    %v2030 = vunpack.c.h.b16 %v694
    %v2031 = vunpack.c.l.b16 %v695
    %v2032 = vunpack.c.h.b16 %v695
    %v2033 = vunpack.c.l.b16 %v696
    %v2034 = vunpack.c.h.b16 %v696
    %v2035 = vunpack.c.l.b16 %v697
    %v2036 = vunpack.c.h.b16 %v697
    %v2037 = vunpack.c.l.b16 %v698
    %v2038 = vunpack.c.h.b16 %v698
    %v2039 = vunpack.c.l.b16 %v699
    %v2040 = vunpack.c.h.b16 %v699
    %v2041 = vunpack.c.l.b16 %v700
    %v2042 = vunpack.c.h.b16 %v700
    %v2043 = vunpack.c.l.b16 %v701
    %v2044 = vunpack.c.h.b16 %v701
    %v2045 = vunpack.c.l.b16 %v702
    %v2046 = vunpack.c.h.b16 %v702
    %v2047 = vunpack.c.l.b16 %v703
    %v2048 = vunpack.c.h.b16 %v703
    %v2049 = vunpack.c.l.b16 %v704
    %v2050 = vunpack.c.h.b16 %v704
    %v2051 = vunpack.c.l.b16 %v705
    %v2052 = vunpack.c.h.b16 %v705
    %v2053 = vunpack.c.l.b16 %v706
    %v2054 = vunpack.c.h.b16 %v706
    %v2055 = vunpack.c.l.b16 %v707
    %v2056 = vunpack.c.h.b16 %v707
    %v2057 = vunpack.c.l.b16 %v708
    %v2058 = vunpack.c.h.b16 %v708
    %v2059 = vunpack.c.l.b16 %v709
    %v2060 = vunpack.c.h.b16 %v709
    %v2061 = vunpack.c.l.b16 %v710
    %v2062 = vunpack.c.h.b16 %v710
    %v2063 = vunpack.c.l.b16 %v711
    %v2064 = vunpack.c.h.b16 %v711
    %v2065 = vunpack.c.l.b16 %v712
    %v2066 = vunpack.c.h.b16 %v712
    %v2067 = vunpack.c.l.b16 %v713
    %v2068 = vunpack.c.h.b16 %v713
    %v2069 = vunpack.c.l.b16 %v714
    %v2070 = vunpack.c.h.b16 %v714
    %v2071 = vunpack.c.l.b16 %v715
    %v2072 = vunpack.c.h.b16 %v715
    %v2073 = vunpack.c.l.b16 %v716
    %v2074 = vunpack.c.h.b16 %v716
    %v2075 = vunpack.c.l.b16 %v717
    %v2076 = vunpack.c.h.b16 %v717
    %v2077 = vunpack.c.l.b16 %v718
    %v2078 = vunpack.c.h.b16 %v718
    %v2079 = vunpack.c.l.b16 %v719
    %v2080 = vunpack.c.h.b16 %v719
    %v2081 = vunpack.c.l.b16 %v720
    %v2082 = vunpack.c.h.b16 %v720
    %v2083 = vunpack.c.l.b16 %v721
    %v2084 = vunpack.c.h.b16 %v721
    %v2085 = vunpack.c.l.b16 %v722
    %v2086 = vunpack.c.h.b16 %v722
    %v2087 = vunpack.c.l.b16 %v723
    %v2088 = vunpack.c.h.b16 %v723
    %v2089 = vunpack.c.l.b16 %v724
    %v2090 = vunpack.c.h.b16 %v724
    %v2091 = vunpack.c.l.b16 %v725
    %v2092 = vunpack.c.h.b16 %v725
    %v2093 = vunpack.c.l.b16 %v726
    %v2094 = vunpack.c.h.b16 %v726
    %v2095 = vunpack.c.l.b16 %v727
    %v2096 = vunpack.c.h.b16 %v727
    %v2097 = vunpack.c.l.b16 %v728
    %v2098 = vunpack.c.h.b16 %v728
    %v2099 = vunpack.c.l.b16 %v729
    %v2100 = vunpack.c.h.b16 %v729
    %v2101 = vunpack.c.l.b16 %v730
    %v2102 = vunpack.c.h.b16 %v730
    %v2103 = vunpack.c.l.b16 %v731
    %v2104 = vunpack.c.h.b16 %v731
    %v2105 = vunpack.c.l.b16 %v732
    %v2106 = vunpack.c.h.b16 %v732
    %v2107 = vunpack.c.l.b16 %v733
    %v2108 = vunpack.c.h.b16 %v733
    %v2109 = vunpack.c.l.b16 %v734
    %v2110 = vunpack.c.h.b16 %v734
    %v2111 = vunpack.c.l.b16 %v735
    %v2112 = vunpack.c.h.b16 %v735
    %v2113 = vunpack.c.l.b16 %v736
    %v2114 = vunpack.c.h.b16 %v736
    %v2115 = vunpack.c.l.b16 %v737
    %v2116 = vunpack.c.h.b16 %v737
    %v2117 = vunpack.c.l.b16 %v738
    %v2118 = vunpack.c.h.b16 %v738
    %v2119 = vunpack.c.l.b16 %v739
    %v2120 = vunpack.c.h.b16 %v739
    %v2121 = vunpack.c.l.b16 %v740
    %v2122 = vunpack.c.h.b16 %v740
    %v2123 = vunpack.c.l.b16 %v741
    %v2124 = vunpack.c.h.b16 %v741
    %v2125 = vunpack.c.l.b16 %v742
    %v2126 = vunpack.c.h.b16 %v742
    %v2127 = vunpack.c.l.b16 %v743
    %v2128 = vunpack.c.h.b16 %v743
    %v2129 = vunpack.c.l.b16 %v744
    %v2130 = vunpack.c.h.b16 %v744
    %v2131 = vunpack.c.l.b16 %v745
    %v2132 = vunpack.c.h.b16 %v745
    %v2133 = vunpack.c.l.b16 %v746
    %v2134 = vunpack.c.h.b16 %v746
    %v2135 = vunpack.c.l.b16 %v747
    %v2136 = vunpack.c.h.b16 %v747
    %v2137 = vunpack.c.l.b16 %v748
    %v2138 = vunpack.c.h.b16 %v748
    %v2139 = vunpack.c.l.b16 %v749
    %v2140 = vunpack.c.h.b16 %v749
    %v2141 = vunpack.c.l.b16 %v750
    %v2142 = vunpack.c.h.b16 %v750
    %v2143 = vunpack.c.l.b16 %v751
    %v2144 = vunpack.c.h.b16 %v751
    %v2145 = vunpack.c.l.b16 %v752
    %v2146 = vunpack.c.h.b16 %v752
    %v2147 = vunpack.c.l.b16 %v753
    %v2148 = vunpack.c.h.b16 %v753
    %v2149 = vunpack.c.l.b16 %v754
    %v2150 = vunpack.c.h.b16 %v754
    %v2151 = vunpack.c.l.b16 %v755
    %v2152 = vunpack.c.h.b16 %v755
    %v2153 = vunpack.c.l.b16 %v756
    %v2154 = vunpack.c.h.b16 %v756
    %v2155 = vunpack.c.l.b16 %v757
    %v2156 = vunpack.c.h.b16 %v757
    %v2157 = vunpack.c.l.b16 %v758
    %v2158 = vunpack.c.h.b16 %v758
    %v2159 = vunpack.c.l.b16 %v759
    %v2160 = vunpack.c.h.b16 %v759
    %v2161 = vunpack.c.l.b16 %v760
    %v2162 = vunpack.c.h.b16 %v760
    %v2163 = vunpack.c.l.b16 %v761
    %v2164 = vunpack.c.h.b16 %v761
    %v2165 = vunpack.c.l.b16 %v762
    %v2166 = vunpack.c.h.b16 %v762
    %v2167 = vunpack.c.l.b16 %v763
    %v2168 = vunpack.c.h.b16 %v763
    %v2169 = vunpack.c.l.b16 %v764
    %v2170 = vunpack.c.h.b16 %v764
    %v2171 = vunpack.c.l.b16 %v765
    %v2172 = vunpack.c.h.b16 %v765
    %v2173 = vunpack.c.l.b16 %v766
    %v2174 = vunpack.c.h.b16 %v766
    %v2175 = vunpack.c.l.b16 %v767
    %v2176 = vunpack.c.h.b16 %v767
    %v2177 = vunpack.c.l.b16 %v768
    %v2178 = vunpack.c.h.b16 %v768
    %v2179 = vunpack.c.l.b16 %v769
    %v2180 = vunpack.c.h.b16 %v769
    %v2181 = vunpack.c.l.b16 %v770
    %v2182 = vunpack.c.h.b16 %v770
    %v2183 = vunpack.c.l.b16 %v771
    %v2184 = vunpack.c.h.b16 %v771
    %v2185 = vunpack.c.l.b16 %v772
    %v2186 = vunpack.c.h.b16 %v772
    %v2187 = vunpack.c.l.b16 %v773
    %v2188 = vunpack.c.h.b16 %v773
    %v2189 = vunpack.c.l.b16 %v774
    %v2190 = vunpack.c.h.b16 %v774
    %v2191 = vunpack.c.l.b16 %v775
    %v2192 = vunpack.c.h.b16 %v775
    %v2193 = vunpack.c.l.b16 %v776
    %v2194 = vunpack.c.h.b16 %v776
    %v2195 = vunpack.c.l.b16 %v777
    %v2196 = vunpack.c.h.b16 %v777
    %v2197 = vunpack.c.l.b16 %v778
    %v2198 = vunpack.c.h.b16 %v778
    %v2199 = vunpack.c.l.b16 %v779
    %v2200 = vunpack.c.h.b16 %v779
    %v2201 = vunpack.c.l.b16 %v780
    %v2202 = vunpack.c.h.b16 %v780
    %v2203 = vunpack.c.l.b16 %v781
    %v2204 = vunpack.c.h.b16 %v781
    %v2205 = vunpack.c.l.b16 %v782
    %v2206 = vunpack.c.h.b16 %v782
    %v2207 = vunpack.c.l.b16 %v783
    %v2208 = vunpack.c.h.b16 %v783
    %v2209 = vunpack.c.l.b16 %v784
    %v2210 = vunpack.c.h.b16 %v784
    %v2211 = vunpack.c.l.b16 %v785
    %v2212 = vunpack.c.h.b16 %v785
    %v2213 = vunpack.c.l.b16 %v786
    %v2214 = vunpack.c.h.b16 %v786
    %v2215 = vunpack.c.l.b16 %v787
    %v2216 = vunpack.c.h.b16 %v787
    %v2217 = vunpack.c.l.b16 %v788
    %v2218 = vunpack.c.h.b16 %v788
    %v2219 = vunpack.c.l.b16 %v789
    %v2220 = vunpack.c.h.b16 %v789
    %v2221 = vunpack.c.l.b16 %v790
    %v2222 = vunpack.c.h.b16 %v790
    %v2223 = vunpack.c.l.b16 %v791
    %v2224 = vunpack.c.h.b16 %v791
    %v2225 = vunpack.c.l.b16 %v792
    %v2226 = vunpack.c.h.b16 %v792
    %v2227 = vunpack.c.l.b16 %v793
    %v2228 = vunpack.c.h.b16 %v793
    %v2229 = vunpack.c.l.b16 %v794
    %v2230 = vunpack.c.h.b16 %v794
    %v2231 = vunpack.c.l.b16 %v795
    %v2232 = vunpack.c.h.b16 %v795
    %v2233 = vunpack.c.l.b16 %v796
    %v2234 = vunpack.c.h.b16 %v796
    %v2235 = vunpack.c.l.b16 %v797
    %v2236 = vunpack.c.h.b16 %v797
    %v2237 = vunpack.c.l.b16 %v798
    %v2238 = vunpack.c.h.b16 %v798
    %v2239 = vunpack.c.l.b16 %v799
    %v2240 = vunpack.c.h.b16 %v799
    %v2241 = vunpack.c.l.b16 %v800
    %v2242 = vunpack.c.h.b16 %v800
    %v2243 = vunpack.c.l.b16 %v801
    %v2244 = vunpack.c.h.b16 %v801
    %v2245 = vunpack.c.l.b16 %v802
    %v2246 = vunpack.c.h.b16 %v802
    %v2247 = vunpack.c.l.b16 %v803
    %v2248 = vunpack.c.h.b16 %v803
    %v2249 = vunpack.c.l.b16 %v804
    %v2250 = vunpack.c.h.b16 %v804
    %v2251 = vunpack.c.l.b16 %v805
    %v2252 = vunpack.c.h.b16 %v805
    %v2253 = vunpack.c.l.b16 %v806
    %v2254 = vunpack.c.h.b16 %v806
    %v2255 = vunpack.c.l.b16 %v807
    %v2256 = vunpack.c.h.b16 %v807
    %v2257 = vunpack.c.l.b16 %v808
    %v2258 = vunpack.c.h.b16 %v808
    %v2259 = vunpack.c.l.b16 %v809
    %v2260 = vunpack.c.h.b16 %v809
    %v2261 = vunpack.c.l.b16 %v810
    %v2262 = vunpack.c.h.b16 %v810
    %v2263 = vunpack.c.l.b16 %v811
    %v2264 = vunpack.c.h.b16 %v811
    %v2265 = vunpack.c.l.b16 %v812
    %v2266 = vunpack.c.h.b16 %v812
    %v2267 = vunpack.c.l.b16 %v813
    %v2268 = vunpack.c.h.b16 %v813
    %v2269 = vunpack.c.l.b16 %v814
    %v2270 = vunpack.c.h.b16 %v814
    %v2271 = vunpack.c.l.b16 %v815
    %v2272 = vunpack.c.h.b16 %v815
    %v2273 = vunpack.c.l.b16 %v816
    %v2274 = vunpack.c.h.b16 %v816
    %v2275 = vunpack.c.l.b16 %v817
    %v2276 = vunpack.c.h.b16 %v817
    %v2277 = vunpack.c.l.b16 %v818
    %v2278 = vunpack.c.h.b16 %v818
    %v2279 = vunpack.c.l.b16 %v819
    %v2280 = vunpack.c.h.b16 %v819
    %v2281 = vunpack.c.l.b16 %v820
    %v2282 = vunpack.c.h.b16 %v820
    %v2283 = vunpack.c.l.b16 %v821
    %v2284 = vunpack.c.h.b16 %v821
    %v2285 = vunpack.c.l.b16 %v822
    %v2286 = vunpack.c.h.b16 %v822
    %v2287 = vunpack.c.l.b16 %v823
    %v2288 = vunpack.c.h.b16 %v823
    %v2289 = vunpack.c.l.b16 %v824
    %v2290 = vunpack.c.h.b16 %v824
    %v2291 = vunpack.c.l.b16 %v825
    %v2292 = vunpack.c.h.b16 %v825
    %v2293 = vunpack.c.l.b16 %v826
    %v2294 = vunpack.c.h.b16 %v826
    %v2295 = vunpack.c.l.b16 %v827
    %v2296 = vunpack.c.h.b16 %v827
    %v2297 = vunpack.c.l.b16 %v828
    %v2298 = vunpack.c.h.b16 %v828
    %v2299 = vunpack.c.l.b16 %v829
    %v2300 = vunpack.c.h.b16 %v829
    %v2301 = vunpack.c.l.b16 %v830
    %v2302 = vunpack.c.h.b16 %v830
    %v2303 = vunpack.c.l.b16 %v831
    %v2304 = vunpack.c.h.b16 %v831
    %v2305 = vunpack.c.l.b16 %v832
    %v2306 = vunpack.c.h.b16 %v832
    %v2307 = vunpack.c.l.b16 %v833
    %v2308 = vunpack.c.h.b16 %v833
    %v2309 = vunpack.c.l.b16 %v834
    %v2310 = vunpack.c.h.b16 %v834
    %v2311 = vunpack.c.l.b16 %v835
    %v2312 = vunpack.c.h.b16 %v835
    %v2313 = vunpack.c.l.b16 %v836
    %v2314 = vunpack.c.h.b16 %v836
    %v2315 = vunpack.c.l.b16 %v837
    %v2316 = vunpack.c.h.b16 %v837
    %v2317 = vunpack.c.l.b16 %v838
    %v2318 = vunpack.c.h.b16 %v838
    %v2319 = vunpack.c.l.b16 %v839
    %v2320 = vunpack.c.h.b16 %v839
    %v2321 = vunpack.c.l.b16 %v840
    %v2322 = vunpack.c.h.b16 %v840
    %v2323 = vunpack.c.l.b16 %v841
    %v2324 = vunpack.c.h.b16 %v841
    %v2325 = vunpack.c.l.b16 %v842
    %v2326 = vunpack.c.h.b16 %v842
    %v2327 = vunpack.c.l.b16 %v843
    %v2328 = vunpack.c.h.b16 %v843
    %v2329 = vunpack.c.l.b16 %v844
    %v2330 = vunpack.c.h.b16 %v844
    %v2331 = vunpack.c.l.b16 %v845
    %v2332 = vunpack.c.h.b16 %v845
    %v2333 = vunpack.c.l.b16 %v846
    %v2334 = vunpack.c.h.b16 %v846
    %v2335 = vunpack.c.l.b16 %v847
    %v2336 = vunpack.c.h.b16 %v847
    %v2337 = vunpack.c.l.b16 %v848
    %v2338 = vunpack.c.h.b16 %v848
    %v2339 = vunpack.c.l.b16 %v849
    %v2340 = vunpack.c.h.b16 %v849
    %v2341 = vunpack.c.l.b16 %v850
    %v2342 = vunpack.c.h.b16 %v850
    %v2343 = vunpack.c.l.b16 %v851
    %v2344 = vunpack.c.h.b16 %v851
    %v2345 = vunpack.c.l.b16 %v852
    %v2346 = vunpack.c.h.b16 %v852
    %v2347 = vunpack.c.l.b16 %v853
    %v2348 = vunpack.c.h.b16 %v853
    %v2349 = vunpack.c.l.b16 %v854
    %v2350 = vunpack.c.h.b16 %v854
    %v2351 = vunpack.c.l.b16 %v855
    %v2352 = vunpack.c.h.b16 %v855
    %v2353 = vunpack.c.l.b16 %v856
    %v2354 = vunpack.c.h.b16 %v856
    %v2355 = vunpack.c.l.b16 %v857
    %v2356 = vunpack.c.h.b16 %v857
    %v2357 = vunpack.c.l.b16 %v858
    %v2358 = vunpack.c.h.b16 %v858
    %v2359 = vunpack.c.l.b16 %v859
    %v2360 = vunpack.c.h.b16 %v859
    %v2361 = vunpack.c.l.b16 %v860
    %v2362 = vunpack.c.h.b16 %v860
    %v2363 = vunpack.c.l.b16 %v861
    %v2364 = vunpack.c.h.b16 %v861
    %v2365 = vunpack.c.l.b16 %v862
    %v2366 = vunpack.c.h.b16 %v862
    %v2367 = vunpack.c.l.b16 %v863
    %v2368 = vunpack.c.h.b16 %v863
    %v2369 = vunpack.c.l.b16 %v864
    %v2370 = vunpack.c.h.b16 %v864
    %v2371 = vunpack.c.l.b16 %v865
    %v2372 = vunpack.c.h.b16 %v865
    %v2373 = vunpack.c.l.b16 %v866
    %v2374 = vunpack.c.h.b16 %v866
    %v2375 = vunpack.c.l.b16 %v867
    %v2376 = vunpack.c.h.b16 %v867
    %v2377 = vunpack.c.l.b16 %v868
    %v2378 = vunpack.c.h.b16 %v868
    %v2379 = vunpack.c.l.b16 %v869
    %v2380 = vunpack.c.h.b16 %v869
    %v2381 = vunpack.c.l.b16 %v870
    %v2382 = vunpack.c.h.b16 %v870
    %v2383 = vunpack.c.l.b16 %v871
    %v2384 = vunpack.c.h.b16 %v871
    %v2385 = vunpack.c.l.b16 %v872
    %v2386 = vunpack.c.h.b16 %v872
    %v2387 = vunpack.c.l.b16 %v873
    %v2388 = vunpack.c.h.b16 %v873
    %v2389 = vunpack.c.l.b16 %v874
    %v2390 = vunpack.c.h.b16 %v874
    %v2391 = vunpack.c.l.b16 %v875
    %v2392 = vunpack.c.h.b16 %v875
    %v2393 = vunpack.c.l.b16 %v876
    %v2394 = vunpack.c.h.b16 %v876
    %v2395 = vunpack.c.l.b16 %v877
    %v2396 = vunpack.c.h.b16 %v877
    %v2397 = vunpack.c.l.b16 %v878
    %v2398 = vunpack.c.h.b16 %v878
    %v2399 = vunpack.c.l.b16 %v879
    %v2400 = vunpack.c.h.b16 %v879
    %v2401 = vunpack.c.l.b16 %v880
    %v2402 = vunpack.c.h.b16 %v880
    %v2403 = vunpack.c.l.b16 %v881
    %v2404 = vunpack.c.h.b16 %v881
    %v2405 = vunpack.c.l.b16 %v882
    %v2406 = vunpack.c.h.b16 %v882
    %v2407 = vunpack.c.l.b16 %v883
    %v2408 = vunpack.c.h.b16 %v883
    %v2409 = vunpack.c.l.b16 %v884
    %v2410 = vunpack.c.h.b16 %v884
    %v2411 = vunpack.c.l.b16 %v885
    %v2412 = vunpack.c.h.b16 %v885
    %v2413 = vunpack.c.l.b16 %v886
    %v2414 = vunpack.c.h.b16 %v886
    %v2415 = vunpack.c.l.b16 %v887
    %v2416 = vunpack.c.h.b16 %v887
    %v2417 = vunpack.c.l.b16 %v888
    %v2418 = vunpack.c.h.b16 %v888
    %v2419 = vunpack.c.l.b16 %v889
    %v2420 = vunpack.c.h.b16 %v889
    %v2421 = vunpack.c.l.b16 %v890
    %v2422 = vunpack.c.h.b16 %v890
    %v2423 = vunpack.c.l.b16 %v891
    %v2424 = vunpack.c.h.b16 %v891
    %v2425 = vunpack.c.l.b16 %v892
    %v2426 = vunpack.c.h.b16 %v892
    %v2427 = vunpack.c.l.b16 %v893
    %v2428 = vunpack.c.h.b16 %v893
    %v2429 = vunpack.c.l.b16 %v894
    %v2430 = vunpack.c.h.b16 %v894
    %v2431 = vunpack.c.l.b16 %v895
    %v2432 = vunpack.c.h.b16 %v895
    %v2433 = vunpack.c.l.b16 %v896
    %v2434 = vunpack.c.h.b16 %v896
    %v2435 = vunpack.c.l.b16 %v897
    %v2436 = vunpack.c.h.b16 %v897
    %v2437 = vunpack.c.l.b16 %v898
    %v2438 = vunpack.c.h.b16 %v898
    %v2439 = vunpack.c.l.b16 %v899
    %v2440 = vunpack.c.h.b16 %v899
    %v2441 = vunpack.c.l.b16 %v900
    %v2442 = vunpack.c.h.b16 %v900
    %v2443 = vunpack.c.l.b16 %v901
    %v2444 = vunpack.c.h.b16 %v901
    %v2445 = vunpack.c.l.b16 %v902
    %v2446 = vunpack.c.h.b16 %v902
    %v2447 = vunpack.c.l.b16 %v903
    %v2448 = vunpack.c.h.b16 %v903
    %v2449 = vunpack.c.l.b16 %v904
    %v2450 = vunpack.c.h.b16 %v904
    %v2451 = vunpack.c.l.b16 %v905
    %v2452 = vunpack.c.h.b16 %v905
    %v2453 = vunpack.c.l.b16 %v906
    %v2454 = vunpack.c.h.b16 %v906
    %v2455 = vunpack.c.l.b16 %v907
    %v2456 = vunpack.c.h.b16 %v907
    %v2457 = vunpack.c.l.b16 %v908
    %v2458 = vunpack.c.h.b16 %v908
    %v2459 = vunpack.c.l.b16 %v909
    %v2460 = vunpack.c.h.b16 %v909
    %v2461 = vunpack.c.l.b16 %v910
    %v2462 = vunpack.c.h.b16 %v910
    %v2463 = vunpack.c.l.b16 %v911
    %v2464 = vunpack.c.h.b16 %v911
    %v2465 = vunpack.c.l.b16 %v912
    %v2466 = vunpack.c.h.b16 %v912
    %v2467 = vpack.c.b16 %v1451, %v1443
    %v2468 = vpack.c.b16 %v1452, %v1444
    %v2469 = vpack.c.b16 %v1453, %v1445
    %v2470 = vpack.c.b16 %v1454, %v1446
    %v2471 = vpack.c.b16 %v1455, %v1447
    %v2472 = vpack.c.b16 %v1456, %v1448
    %v2473 = vpack.c.b16 %v1457, %v1449
    %v2474 = vpack.c.b16 %v1458, %v1450
    %v2475 = vpack.c.b16 %v1467, %v1459
    %v2476 = vpack.c.b16 %v1468, %v1460
    %v2477 = vpack.c.b16 %v1469, %v1461
    %v2478 = vpack.c.b16 %v1470, %v1462
    %v2479 = vpack.c.b16 %v1471, %v1463
    %v2480 = vpack.c.b16 %v1472, %v1464
    %v2481 = vpack.c.b16 %v1473, %v1465
    %v2482 = vpack.c.b16 %v1474, %v1466
    %v2483 = vpack.c.b16 %v1483, %v1475
    %v2484 = vpack.c.b16 %v1484, %v1476
    %v2485 = vpack.c.b16 %v1485, %v1477
    %v2486 = vpack.c.b16 %v1486, %v1478
    %v2487 = vpack.c.b16 %v1487, %v1479
    %v2488 = vpack.c.b16 %v1488, %v1480
    %v2489 = vpack.c.b16 %v1489, %v1481
    %v2490 = vpack.c.b16 %v1490, %v1482
    %v2491 = vpack.c.b16 %v1499, %v1491
    %v2492 = vpack.c.b16 %v1500, %v1492
    %v2493 = vpack.c.b16 %v1501, %v1493
    %v2494 = vpack.c.b16 %v1502, %v1494
    %v2495 = vpack.c.b16 %v1503, %v1495
    %v2496 = vpack.c.b16 %v1504, %v1496
    %v2497 = vpack.c.b16 %v1505, %v1497
    %v2498 = vpack.c.b16 %v1506, %v1498
    %v2499 = vpack.c.b16 %v1515, %v1507
    %v2500 = vpack.c.b16 %v1516, %v1508
    %v2501 = vpack.c.b16 %v1517, %v1509
    %v2502 = vpack.c.b16 %v1518, %v1510
    %v2503 = vpack.c.b16 %v1519, %v1511
    %v2504 = vpack.c.b16 %v1520, %v1512
    %v2505 = vpack.c.b16 %v1521, %v1513
    %v2506 = vpack.c.b16 %v1522, %v1514
    %v2507 = vpack.c.b16 %v1531, %v1523
    %v2508 = vpack.c.b16 %v1532, %v1524
    %v2509 = vpack.c.b16 %v1533, %v1525
    %v2510 = vpack.c.b16 %v1534, %v1526
    %v2511 = vpack.c.b16 %v1535, %v1527
    %v2512 = vpack.c.b16 %v1536, %v1528
    %v2513 = vpack.c.b16 %v1537, %v1529
    %v2514 = vpack.c.b16 %v1538, %v1530
    %v2515 = vpack.c.b16 %v1547, %v1539
    %v2516 = vpack.c.b16 %v1548, %v1540
    %v2517 = vpack.c.b16 %v1549, %v1541
    %v2518 = vpack.c.b16 %v1550, %v1542
    %v2519 = vpack.c.b16 %v1551, %v1543
    %v2520 = vpack.c.b16 %v1552, %v1544
    %v2521 = vpack.c.b16 %v1553, %v1545
    %v2522 = vpack.c.b16 %v1554, %v1546
    %v2523 = vpack.c.b16 %v1563, %v1555
    %v2524 = vpack.c.b16 %v1564, %v1556
    %v2525 = vpack.c.b16 %v1565, %v1557
    %v2526 = vpack.c.b16 %v1566, %v1558
    %v2527 = vpack.c.b16 %v1567, %v1559
    %v2528 = vpack.c.b16 %v1568, %v1560
    %v2529 = vpack.c.b16 %v1569, %v1561
    %v2530 = vpack.c.b16 %v1570, %v1562
    %v2531 = vpack.c.b16 %v1579, %v1571
    %v2532 = vpack.c.b16 %v1580, %v1572
    %v2533 = vpack.c.b16 %v1581, %v1573
    %v2534 = vpack.c.b16 %v1582, %v1574
    %v2535 = vpack.c.b16 %v1583, %v1575
    %v2536 = vpack.c.b16 %v1584, %v1576
    %v2537 = vpack.c.b16 %v1585, %v1577
    %v2538 = vpack.c.b16 %v1586, %v1578
    %v2539 = vpack.c.b16 %v1595, %v1587
    %v2540 = vpack.c.b16 %v1596, %v1588
    %v2541 = vpack.c.b16 %v1597, %v1589
    %v2542 = vpack.c.b16 %v1598, %v1590
    %v2543 = vpack.c.b16 %v1599, %v1591
    %v2544 = vpack.c.b16 %v1600, %v1592
    %v2545 = vpack.c.b16 %v1601, %v1593
    %v2546 = vpack.c.b16 %v1602, %v1594
    %v2547 = vpack.c.b16 %v1611, %v1603
    %v2548 = vpack.c.b16 %v1612, %v1604
    %v2549 = vpack.c.b16 %v1613, %v1605
    %v2550 = vpack.c.b16 %v1614, %v1606
    %v2551 = vpack.c.b16 %v1615, %v1607
    %v2552 = vpack.c.b16 %v1616, %v1608
    %v2553 = vpack.c.b16 %v1617, %v1609
    %v2554 = vpack.c.b16 %v1618, %v1610
    %v2555 = vpack.c.b16 %v1627, %v1619
    %v2556 = vpack.c.b16 %v1628, %v1620
    %v2557 = vpack.c.b16 %v1629, %v1621
    %v2558 = vpack.c.b16 %v1630, %v1622
    %v2559 = vpack.c.b16 %v1631, %v1623
    %v2560 = vpack.c.b16 %v1632, %v1624
    %v2561 = vpack.c.b16 %v1633, %v1625
    %v2562 = vpack.c.b16 %v1634, %v1626
    %v2563 = vpack.c.b16 %v1643, %v1635
    %v2564 = vpack.c.b16 %v1644, %v1636
    %v2565 = vpack.c.b16 %v1645, %v1637
    %v2566 = vpack.c.b16 %v1646, %v1638
    %v2567 = vpack.c.b16 %v1647, %v1639
    %v2568 = vpack.c.b16 %v1648, %v1640
    %v2569 = vpack.c.b16 %v1649, %v1641
    %v2570 = vpack.c.b16 %v1650, %v1642
    %v2571 = vpack.c.b16 %v1659, %v1651
    %v2572 = vpack.c.b16 %v1660, %v1652
    %v2573 = vpack.c.b16 %v1661, %v1653
    %v2574 = vpack.c.b16 %v1662, %v1654
    %v2575 = vpack.c.b16 %v1663, %v1655
    %v2576 = vpack.c.b16 %v1664, %v1656
    %v2577 = vpack.c.b16 %v1665, %v1657
    %v2578 = vpack.c.b16 %v1666, %v1658
    %v2579 = vpack.c.b16 %v1675, %v1667
    %v2580 = vpack.c.b16 %v1676, %v1668
    %v2581 = vpack.c.b16 %v1677, %v1669
    %v2582 = vpack.c.b16 %v1678, %v1670
    %v2583 = vpack.c.b16 %v1679, %v1671
    %v2584 = vpack.c.b16 %v1680, %v1672
    %v2585 = vpack.c.b16 %v1681, %v1673
    %v2586 = vpack.c.b16 %v1682, %v1674
    %v2587 = vpack.c.b16 %v1691, %v1683
    %v2588 = vpack.c.b16 %v1692, %v1684
    %v2589 = vpack.c.b16 %v1693, %v1685
    %v2590 = vpack.c.b16 %v1694, %v1686
    %v2591 = vpack.c.b16 %v1695, %v1687
    %v2592 = vpack.c.b16 %v1696, %v1688
    %v2593 = vpack.c.b16 %v1697, %v1689
    %v2594 = vpack.c.b16 %v1698, %v1690
    %v2595 = vpack.c.b16 %v1707, %v1699
    %v2596 = vpack.c.b16 %v1708, %v1700
    %v2597 = vpack.c.b16 %v1709, %v1701
    %v2598 = vpack.c.b16 %v1710, %v1702
    %v2599 = vpack.c.b16 %v1711, %v1703
    %v2600 = vpack.c.b16 %v1712, %v1704
    %v2601 = vpack.c.b16 %v1713, %v1705
    %v2602 = vpack.c.b16 %v1714, %v1706
    %v2603 = vpack.c.b16 %v1723, %v1715
    %v2604 = vpack.c.b16 %v1724, %v1716
    %v2605 = vpack.c.b16 %v1725, %v1717
    %v2606 = vpack.c.b16 %v1726, %v1718
    %v2607 = vpack.c.b16 %v1727, %v1719
    %v2608 = vpack.c.b16 %v1728, %v1720
    %v2609 = vpack.c.b16 %v1729, %v1721
    %v2610 = vpack.c.b16 %v1730, %v1722
    %v2611 = vpack.c.b16 %v1739, %v1731
    %v2612 = vpack.c.b16 %v1740, %v1732
    %v2613 = vpack.c.b16 %v1741, %v1733
    %v2614 = vpack.c.b16 %v1742, %v1734
    %v2615 = vpack.c.b16 %v1743, %v1735
    %v2616 = vpack.c.b16 %v1744, %v1736
    %v2617 = vpack.c.b16 %v1745, %v1737
    %v2618 = vpack.c.b16 %v1746, %v1738
    %v2619 = vpack.c.b16 %v1755, %v1747
    %v2620 = vpack.c.b16 %v1756, %v1748
    %v2621 = vpack.c.b16 %v1757, %v1749
    %v2622 = vpack.c.b16 %v1758, %v1750
    %v2623 = vpack.c.b16 %v1759, %v1751
    %v2624 = vpack.c.b16 %v1760, %v1752
    %v2625 = vpack.c.b16 %v1761, %v1753
    %v2626 = vpack.c.b16 %v1762, %v1754
    %v2627 = vpack.c.b16 %v1771, %v1763
    %v2628 = vpack.c.b16 %v1772, %v1764
    %v2629 = vpack.c.b16 %v1773, %v1765
    %v2630 = vpack.c.b16 %v1774, %v1766
    %v2631 = vpack.c.b16 %v1775, %v1767
    %v2632 = vpack.c.b16 %v1776, %v1768
    %v2633 = vpack.c.b16 %v1777, %v1769
    %v2634 = vpack.c.b16 %v1778, %v1770
    %v2635 = vpack.c.b16 %v1787, %v1779
    %v2636 = vpack.c.b16 %v1788, %v1780
    %v2637 = vpack.c.b16 %v1789, %v1781
    %v2638 = vpack.c.b16 %v1790, %v1782
    %v2639 = vpack.c.b16 %v1791, %v1783
    %v2640 = vpack.c.b16 %v1792, %v1784
    %v2641 = vpack.c.b16 %v1793, %v1785
    %v2642 = vpack.c.b16 %v1794, %v1786
    %v2643 = vpack.c.b16 %v1803, %v1795
    %v2644 = vpack.c.b16 %v1804, %v1796
    %v2645 = vpack.c.b16 %v1805, %v1797
    %v2646 = vpack.c.b16 %v1806, %v1798
    %v2647 = vpack.c.b16 %v1807, %v1799
    %v2648 = vpack.c.b16 %v1808, %v1800
    %v2649 = vpack.c.b16 %v1809, %v1801
    %v2650 = vpack.c.b16 %v1810, %v1802
    %v2651 = vpack.c.b16 %v1819, %v1811
    %v2652 = vpack.c.b16 %v1820, %v1812
    %v2653 = vpack.c.b16 %v1821, %v1813
    %v2654 = vpack.c.b16 %v1822, %v1814
    %v2655 = vpack.c.b16 %v1823, %v1815
    %v2656 = vpack.c.b16 %v1824, %v1816
    %v2657 = vpack.c.b16 %v1825, %v1817
    %v2658 = vpack.c.b16 %v1826, %v1818
    %v2659 = vpack.c.b16 %v1835, %v1827
    %v2660 = vpack.c.b16 %v1836, %v1828
    %v2661 = vpack.c.b16 %v1837, %v1829
    %v2662 = vpack.c.b16 %v1838, %v1830
    %v2663 = vpack.c.b16 %v1839, %v1831
    %v2664 = vpack.c.b16 %v1840, %v1832
    %v2665 = vpack.c.b16 %v1841, %v1833
    %v2666 = vpack.c.b16 %v1842, %v1834
    %v2667 = vpack.c.b16 %v1851, %v1843
    %v2668 = vpack.c.b16 %v1852, %v1844
    %v2669 = vpack.c.b16 %v1853, %v1845
    %v2670 = vpack.c.b16 %v1854, %v1846
    %v2671 = vpack.c.b16 %v1855, %v1847
    %v2672 = vpack.c.b16 %v1856, %v1848
    %v2673 = vpack.c.b16 %v1857, %v1849
    %v2674 = vpack.c.b16 %v1858, %v1850
    %v2675 = vpack.c.b16 %v1867, %v1859
    %v2676 = vpack.c.b16 %v1868, %v1860
    %v2677 = vpack.c.b16 %v1869, %v1861
    %v2678 = vpack.c.b16 %v1870, %v1862
    %v2679 = vpack.c.b16 %v1871, %v1863
    %v2680 = vpack.c.b16 %v1872, %v1864
    %v2681 = vpack.c.b16 %v1873, %v1865
    %v2682 = vpack.c.b16 %v1874, %v1866
    %v2683 = vpack.c.b16 %v1883, %v1875
    %v2684 = vpack.c.b16 %v1884, %v1876
    %v2685 = vpack.c.b16 %v1885, %v1877
    %v2686 = vpack.c.b16 %v1886, %v1878
    %v2687 = vpack.c.b16 %v1887, %v1879
    %v2688 = vpack.c.b16 %v1888, %v1880
    %v2689 = vpack.c.b16 %v1889, %v1881
    %v2690 = vpack.c.b16 %v1890, %v1882
    %v2691 = vpack.c.b16 %v1899, %v1891
    %v2692 = vpack.c.b16 %v1900, %v1892
    %v2693 = vpack.c.b16 %v1901, %v1893
    %v2694 = vpack.c.b16 %v1902, %v1894
    %v2695 = vpack.c.b16 %v1903, %v1895
    %v2696 = vpack.c.b16 %v1904, %v1896
    %v2697 = vpack.c.b16 %v1905, %v1897
    %v2698 = vpack.c.b16 %v1906, %v1898
    %v2699 = vpack.c.b16 %v1915, %v1907
    %v2700 = vpack.c.b16 %v1916, %v1908
    %v2701 = vpack.c.b16 %v1917, %v1909
    %v2702 = vpack.c.b16 %v1918, %v1910
    %v2703 = vpack.c.b16 %v1919, %v1911
    %v2704 = vpack.c.b16 %v1920, %v1912
    %v2705 = vpack.c.b16 %v1921, %v1913
    %v2706 = vpack.c.b16 %v1922, %v1914
    %v2707 = vpack.c.b16 %v1931, %v1923
    %v2708 = vpack.c.b16 %v1932, %v1924
    %v2709 = vpack.c.b16 %v1933, %v1925
    %v2710 = vpack.c.b16 %v1934, %v1926
    %v2711 = vpack.c.b16 %v1935, %v1927
    %v2712 = vpack.c.b16 %v1936, %v1928
    %v2713 = vpack.c.b16 %v1937, %v1929
    %v2714 = vpack.c.b16 %v1938, %v1930
    %v2715 = vpack.c.b16 %v1947, %v1939
    %v2716 = vpack.c.b16 %v1948, %v1940
    %v2717 = vpack.c.b16 %v1949, %v1941
    %v2718 = vpack.c.b16 %v1950, %v1942
    %v2719 = vpack.c.b16 %v1951, %v1943
    %v2720 = vpack.c.b16 %v1952, %v1944
    %v2721 = vpack.c.b16 %v1953, %v1945
    %v2722 = vpack.c.b16 %v1954, %v1946
    %v2723 = vpack.c.b16 %v1963, %v1955
    %v2724 = vpack.c.b16 %v1964, %v1956
    %v2725 = vpack.c.b16 %v1965, %v1957
    %v2726 = vpack.c.b16 %v1966, %v1958
    %v2727 = vpack.c.b16 %v1967, %v1959
    %v2728 = vpack.c.b16 %v1968, %v1960
    %v2729 = vpack.c.b16 %v1969, %v1961
    %v2730 = vpack.c.b16 %v1970, %v1962
    %v2731 = vpack.c.b16 %v1979, %v1971
    %v2732 = vpack.c.b16 %v1980, %v1972
    %v2733 = vpack.c.b16 %v1981, %v1973
    %v2734 = vpack.c.b16 %v1982, %v1974
    %v2735 = vpack.c.b16 %v1983, %v1975
    %v2736 = vpack.c.b16 %v1984, %v1976
    %v2737 = vpack.c.b16 %v1985, %v1977
    %v2738 = vpack.c.b16 %v1986, %v1978
    %v2739 = vpack.c.b16 %v1995, %v1987
    %v2740 = vpack.c.b16 %v1996, %v1988
    %v2741 = vpack.c.b16 %v1997, %v1989
    %v2742 = vpack.c.b16 %v1998, %v1990
    %v2743 = vpack.c.b16 %v1999, %v1991
    %v2744 = vpack.c.b16 %v2000, %v1992
    %v2745 = vpack.c.b16 %v2001, %v1993
    %v2746 = vpack.c.b16 %v2002, %v1994
    %v2747 = vpack.c.b16 %v2011, %v2003
    %v2748 = vpack.c.b16 %v2012, %v2004
    %v2749 = vpack.c.b16 %v2013, %v2005
    %v2750 = vpack.c.b16 %v2014, %v2006
    %v2751 = vpack.c.b16 %v2015, %v2007
    %v2752 = vpack.c.b16 %v2016, %v2008
    %v2753 = vpack.c.b16 %v2017, %v2009
    %v2754 = vpack.c.b16 %v2018, %v2010
    %v2755 = vpack.c.b16 %v2027, %v2019
    %v2756 = vpack.c.b16 %v2028, %v2020
    %v2757 = vpack.c.b16 %v2029, %v2021
    %v2758 = vpack.c.b16 %v2030, %v2022
    %v2759 = vpack.c.b16 %v2031, %v2023
    %v2760 = vpack.c.b16 %v2032, %v2024
    %v2761 = vpack.c.b16 %v2033, %v2025
    %v2762 = vpack.c.b16 %v2034, %v2026
    %v2763 = vpack.c.b16 %v2043, %v2035
    %v2764 = vpack.c.b16 %v2044, %v2036
    %v2765 = vpack.c.b16 %v2045, %v2037
    %v2766 = vpack.c.b16 %v2046, %v2038
    %v2767 = vpack.c.b16 %v2047, %v2039
    %v2768 = vpack.c.b16 %v2048, %v2040
    %v2769 = vpack.c.b16 %v2049, %v2041
    %v2770 = vpack.c.b16 %v2050, %v2042
    %v2771 = vpack.c.b16 %v2059, %v2051
    %v2772 = vpack.c.b16 %v2060, %v2052
    %v2773 = vpack.c.b16 %v2061, %v2053
    %v2774 = vpack.c.b16 %v2062, %v2054
    %v2775 = vpack.c.b16 %v2063, %v2055
    %v2776 = vpack.c.b16 %v2064, %v2056
    %v2777 = vpack.c.b16 %v2065, %v2057
    %v2778 = vpack.c.b16 %v2066, %v2058
    %v2779 = vpack.c.b16 %v2075, %v2067
    %v2780 = vpack.c.b16 %v2076, %v2068
    %v2781 = vpack.c.b16 %v2077, %v2069
    %v2782 = vpack.c.b16 %v2078, %v2070
    %v2783 = vpack.c.b16 %v2079, %v2071
    %v2784 = vpack.c.b16 %v2080, %v2072
    %v2785 = vpack.c.b16 %v2081, %v2073
    %v2786 = vpack.c.b16 %v2082, %v2074
    %v2787 = vpack.c.b16 %v2091, %v2083
    %v2788 = vpack.c.b16 %v2092, %v2084
    %v2789 = vpack.c.b16 %v2093, %v2085
    %v2790 = vpack.c.b16 %v2094, %v2086
    %v2791 = vpack.c.b16 %v2095, %v2087
    %v2792 = vpack.c.b16 %v2096, %v2088
    %v2793 = vpack.c.b16 %v2097, %v2089
    %v2794 = vpack.c.b16 %v2098, %v2090
    %v2795 = vpack.c.b16 %v2107, %v2099
    %v2796 = vpack.c.b16 %v2108, %v2100
    %v2797 = vpack.c.b16 %v2109, %v2101
    %v2798 = vpack.c.b16 %v2110, %v2102
    %v2799 = vpack.c.b16 %v2111, %v2103
    %v2800 = vpack.c.b16 %v2112, %v2104
    %v2801 = vpack.c.b16 %v2113, %v2105
    %v2802 = vpack.c.b16 %v2114, %v2106
    %v2803 = vpack.c.b16 %v2123, %v2115
    %v2804 = vpack.c.b16 %v2124, %v2116
    %v2805 = vpack.c.b16 %v2125, %v2117
    %v2806 = vpack.c.b16 %v2126, %v2118
    %v2807 = vpack.c.b16 %v2127, %v2119
    %v2808 = vpack.c.b16 %v2128, %v2120
    %v2809 = vpack.c.b16 %v2129, %v2121
    %v2810 = vpack.c.b16 %v2130, %v2122
    %v2811 = vpack.c.b16 %v2139, %v2131
    %v2812 = vpack.c.b16 %v2140, %v2132
    %v2813 = vpack.c.b16 %v2141, %v2133
    %v2814 = vpack.c.b16 %v2142, %v2134
    %v2815 = vpack.c.b16 %v2143, %v2135
    %v2816 = vpack.c.b16 %v2144, %v2136
    %v2817 = vpack.c.b16 %v2145, %v2137
    %v2818 = vpack.c.b16 %v2146, %v2138
    %v2819 = vpack.c.b16 %v2155, %v2147
    %v2820 = vpack.c.b16 %v2156, %v2148
    %v2821 = vpack.c.b16 %v2157, %v2149
    %v2822 = vpack.c.b16 %v2158, %v2150
    %v2823 = vpack.c.b16 %v2159, %v2151
    %v2824 = vpack.c.b16 %v2160, %v2152
    %v2825 = vpack.c.b16 %v2161, %v2153
    %v2826 = vpack.c.b16 %v2162, %v2154
    %v2827 = vpack.c.b16 %v2171, %v2163
    %v2828 = vpack.c.b16 %v2172, %v2164
    %v2829 = vpack.c.b16 %v2173, %v2165
    %v2830 = vpack.c.b16 %v2174, %v2166
    %v2831 = vpack.c.b16 %v2175, %v2167
    %v2832 = vpack.c.b16 %v2176, %v2168
    %v2833 = vpack.c.b16 %v2177, %v2169
    %v2834 = vpack.c.b16 %v2178, %v2170
    %v2835 = vpack.c.b16 %v2187, %v2179
    %v2836 = vpack.c.b16 %v2188, %v2180
    %v2837 = vpack.c.b16 %v2189, %v2181
    %v2838 = vpack.c.b16 %v2190, %v2182
    %v2839 = vpack.c.b16 %v2191, %v2183
    %v2840 = vpack.c.b16 %v2192, %v2184
    %v2841 = vpack.c.b16 %v2193, %v2185
    %v2842 = vpack.c.b16 %v2194, %v2186
    %v2843 = vpack.c.b16 %v2203, %v2195
    %v2844 = vpack.c.b16 %v2204, %v2196
    %v2845 = vpack.c.b16 %v2205, %v2197
    %v2846 = vpack.c.b16 %v2206, %v2198
    %v2847 = vpack.c.b16 %v2207, %v2199
    %v2848 = vpack.c.b16 %v2208, %v2200
    %v2849 = vpack.c.b16 %v2209, %v2201
    %v2850 = vpack.c.b16 %v2210, %v2202
    %v2851 = vpack.c.b16 %v2219, %v2211
    %v2852 = vpack.c.b16 %v2220, %v2212
    %v2853 = vpack.c.b16 %v2221, %v2213
    %v2854 = vpack.c.b16 %v2222, %v2214
    %v2855 = vpack.c.b16 %v2223, %v2215
    %v2856 = vpack.c.b16 %v2224, %v2216
    %v2857 = vpack.c.b16 %v2225, %v2217
    %v2858 = vpack.c.b16 %v2226, %v2218
    %v2859 = vpack.c.b16 %v2235, %v2227
    %v2860 = vpack.c.b16 %v2236, %v2228
    %v2861 = vpack.c.b16 %v2237, %v2229
    %v2862 = vpack.c.b16 %v2238, %v2230
    %v2863 = vpack.c.b16 %v2239, %v2231
    %v2864 = vpack.c.b16 %v2240, %v2232
    %v2865 = vpack.c.b16 %v2241, %v2233
    %v2866 = vpack.c.b16 %v2242, %v2234
    %v2867 = vpack.c.b16 %v2251, %v2243
    %v2868 = vpack.c.b16 %v2252, %v2244
    %v2869 = vpack.c.b16 %v2253, %v2245
    %v2870 = vpack.c.b16 %v2254, %v2246
    %v2871 = vpack.c.b16 %v2255, %v2247
    %v2872 = vpack.c.b16 %v2256, %v2248
    %v2873 = vpack.c.b16 %v2257, %v2249
    %v2874 = vpack.c.b16 %v2258, %v2250
    %v2875 = vpack.c.b16 %v2267, %v2259
    %v2876 = vpack.c.b16 %v2268, %v2260
    %v2877 = vpack.c.b16 %v2269, %v2261
    %v2878 = vpack.c.b16 %v2270, %v2262
    %v2879 = vpack.c.b16 %v2271, %v2263
    %v2880 = vpack.c.b16 %v2272, %v2264
    %v2881 = vpack.c.b16 %v2273, %v2265
    %v2882 = vpack.c.b16 %v2274, %v2266
    %v2883 = vpack.c.b16 %v2283, %v2275
    %v2884 = vpack.c.b16 %v2284, %v2276
    %v2885 = vpack.c.b16 %v2285, %v2277
    %v2886 = vpack.c.b16 %v2286, %v2278
    %v2887 = vpack.c.b16 %v2287, %v2279
    %v2888 = vpack.c.b16 %v2288, %v2280
    %v2889 = vpack.c.b16 %v2289, %v2281
    %v2890 = vpack.c.b16 %v2290, %v2282
    %v2891 = vpack.c.b16 %v2299, %v2291
    %v2892 = vpack.c.b16 %v2300, %v2292
    %v2893 = vpack.c.b16 %v2301, %v2293
    %v2894 = vpack.c.b16 %v2302, %v2294
    %v2895 = vpack.c.b16 %v2303, %v2295
    %v2896 = vpack.c.b16 %v2304, %v2296
    %v2897 = vpack.c.b16 %v2305, %v2297
    %v2898 = vpack.c.b16 %v2306, %v2298
    %v2899 = vpack.c.b16 %v2315, %v2307
    %v2900 = vpack.c.b16 %v2316, %v2308
    %v2901 = vpack.c.b16 %v2317, %v2309
    %v2902 = vpack.c.b16 %v2318, %v2310
    %v2903 = vpack.c.b16 %v2319, %v2311
    %v2904 = vpack.c.b16 %v2320, %v2312
    %v2905 = vpack.c.b16 %v2321, %v2313
    %v2906 = vpack.c.b16 %v2322, %v2314
    %v2907 = vpack.c.b16 %v2331, %v2323
    %v2908 = vpack.c.b16 %v2332, %v2324
    %v2909 = vpack.c.b16 %v2333, %v2325
    %v2910 = vpack.c.b16 %v2334, %v2326
    %v2911 = vpack.c.b16 %v2335, %v2327
    %v2912 = vpack.c.b16 %v2336, %v2328
    %v2913 = vpack.c.b16 %v2337, %v2329
    %v2914 = vpack.c.b16 %v2338, %v2330
    %v2915 = vpack.c.b16 %v2347, %v2339
    %v2916 = vpack.c.b16 %v2348, %v2340
    %v2917 = vpack.c.b16 %v2349, %v2341
    %v2918 = vpack.c.b16 %v2350, %v2342
    %v2919 = vpack.c.b16 %v2351, %v2343
    %v2920 = vpack.c.b16 %v2352, %v2344
    %v2921 = vpack.c.b16 %v2353, %v2345
    %v2922 = vpack.c.b16 %v2354, %v2346
    %v2923 = vpack.c.b16 %v2363, %v2355
    %v2924 = vpack.c.b16 %v2364, %v2356
    %v2925 = vpack.c.b16 %v2365, %v2357
    %v2926 = vpack.c.b16 %v2366, %v2358
    %v2927 = vpack.c.b16 %v2367, %v2359
    %v2928 = vpack.c.b16 %v2368, %v2360
    %v2929 = vpack.c.b16 %v2369, %v2361
    %v2930 = vpack.c.b16 %v2370, %v2362
    %v2931 = vpack.c.b16 %v2379, %v2371
    %v2932 = vpack.c.b16 %v2380, %v2372
    %v2933 = vpack.c.b16 %v2381, %v2373
    %v2934 = vpack.c.b16 %v2382, %v2374
    %v2935 = vpack.c.b16 %v2383, %v2375
    %v2936 = vpack.c.b16 %v2384, %v2376
    %v2937 = vpack.c.b16 %v2385, %v2377
    %v2938 = vpack.c.b16 %v2386, %v2378
    %v2939 = vpack.c.b16 %v2395, %v2387
    %v2940 = vpack.c.b16 %v2396, %v2388
    %v2941 = vpack.c.b16 %v2397, %v2389
    %v2942 = vpack.c.b16 %v2398, %v2390
    %v2943 = vpack.c.b16 %v2399, %v2391
    %v2944 = vpack.c.b16 %v2400, %v2392
    %v2945 = vpack.c.b16 %v2401, %v2393
    %v2946 = vpack.c.b16 %v2402, %v2394
    %v2947 = vpack.c.b16 %v2411, %v2403
    %v2948 = vpack.c.b16 %v2412, %v2404
    %v2949 = vpack.c.b16 %v2413, %v2405
    %v2950 = vpack.c.b16 %v2414, %v2406
    %v2951 = vpack.c.b16 %v2415, %v2407
    %v2952 = vpack.c.b16 %v2416, %v2408
    %v2953 = vpack.c.b16 %v2417, %v2409
    %v2954 = vpack.c.b16 %v2418, %v2410
    %v2955 = vpack.c.b16 %v2427, %v2419
    %v2956 = vpack.c.b16 %v2428, %v2420
    %v2957 = vpack.c.b16 %v2429, %v2421
    %v2958 = vpack.c.b16 %v2430, %v2422
    %v2959 = vpack.c.b16 %v2431, %v2423
    %v2960 = vpack.c.b16 %v2432, %v2424
    %v2961 = vpack.c.b16 %v2433, %v2425
    %v2962 = vpack.c.b16 %v2434, %v2426
    %v2963 = vpack.c.b16 %v2443, %v2435
    %v2964 = vpack.c.b16 %v2444, %v2436
    %v2965 = vpack.c.b16 %v2445, %v2437
    %v2966 = vpack.c.b16 %v2446, %v2438
    %v2967 = vpack.c.b16 %v2447, %v2439
    %v2968 = vpack.c.b16 %v2448, %v2440
    %v2969 = vpack.c.b16 %v2449, %v2441
    %v2970 = vpack.c.b16 %v2450, %v2442
    %v2971 = vpack.c.b16 %v2459, %v2451
    %v2972 = vpack.c.b16 %v2460, %v2452
    %v2973 = vpack.c.b16 %v2461, %v2453
    %v2974 = vpack.c.b16 %v2462, %v2454
    %v2975 = vpack.c.b16 %v2463, %v2455
    %v2976 = vpack.c.b16 %v2464, %v2456
    %v2977 = vpack.c.b16 %v2465, %v2457
    %v2978 = vpack.c.b16 %v2466, %v2458
    %3491 = vmatpush.bf16.msra.mxu0 %v2523
    %3492 = vmatpush.bf16.msra.mxu0 %v2515
    %3493 = vmatpush.bf16.msra.mxu0 %v2507
    %3494 = vmatpush.bf16.msra.mxu0 %v2499
    %3495 = vmatpush.bf16.msra.mxu0 %v2491
    %3496 = vmatpush.bf16.msra.mxu0 %v2483
    %3497 = vmatpush.bf16.msra.mxu0 %v2475
    %3498 = vmatpush.bf16.msra.mxu0 %v2467
    %3499 = vmatmul.bf16.gmra.mxu0 %v915
    %v3500 = vpop.f32.mrf.mxu0
    %v3501 = vadd.f32 0.0, %v3500
    %v3502 = vpop.f32.mrf.mxu0
    %3503 = vdwg.mxu0
    %3504 = vmatpush.bf16.msra.mxu0 %v2587
    %3505 = vmatpush.bf16.msra.mxu0 %v2579
    %3506 = vmatpush.bf16.msra.mxu0 %v2571
    %3507 = vmatpush.bf16.msra.mxu0 %v2563
    %3508 = vmatpush.bf16.msra.mxu0 %v2555
    %3509 = vmatpush.bf16.msra.mxu0 %v2547
    %3510 = vmatpush.bf16.msra.mxu0 %v2539
    %3511 = vmatpush.bf16.msra.mxu0 %v2531
    %3512 = vmatmul.bf16.gmra.mxu0 %v916
    %v3513 = vpop.f32.mrf.mxu0
    %v3514 = vadd.f32 %v3501, %v3513
    %v3515 = vpop.f32.mrf.mxu0
    %3516 = vdwg.mxu0
    %3517 = vmatpush.bf16.msra.mxu0 %v2651
    %3518 = vmatpush.bf16.msra.mxu0 %v2643
    %3519 = vmatpush.bf16.msra.mxu0 %v2635
    %3520 = vmatpush.bf16.msra.mxu0 %v2627
    %3521 = vmatpush.bf16.msra.mxu0 %v2619
    %3522 = vmatpush.bf16.msra.mxu0 %v2611
    %3523 = vmatpush.bf16.msra.mxu0 %v2603
    %3524 = vmatpush.bf16.msra.mxu0 %v2595
    %3525 = vmatmul.bf16.gmra.mxu0 %v917
    %v3526 = vpop.f32.mrf.mxu0
    %v3527 = vadd.f32 %v3514, %v3526
    %v3528 = vpop.f32.mrf.mxu0
    %3529 = vdwg.mxu0
    %3530 = vmatpush.bf16.msra.mxu0 %v2715
    %3531 = vmatpush.bf16.msra.mxu0 %v2707
    %3532 = vmatpush.bf16.msra.mxu0 %v2699
    %3533 = vmatpush.bf16.msra.mxu0 %v2691
    %3534 = vmatpush.bf16.msra.mxu0 %v2683
    %3535 = vmatpush.bf16.msra.mxu0 %v2675
    %3536 = vmatpush.bf16.msra.mxu0 %v2667
    %3537 = vmatpush.bf16.msra.mxu0 %v2659
    %3538 = vmatmul.bf16.gmra.mxu0 %v918
    %v3539 = vpop.f32.mrf.mxu0
    %v3540 = vadd.f32 %v3527, %v3539
    %v3541 = vpop.f32.mrf.mxu0
    %3542 = vdwg.mxu0
    %3543 = vmatpush.bf16.msra.mxu0 %v2779
    %3544 = vmatpush.bf16.msra.mxu0 %v2771
    %3545 = vmatpush.bf16.msra.mxu0 %v2763
    %3546 = vmatpush.bf16.msra.mxu0 %v2755
    %3547 = vmatpush.bf16.msra.mxu0 %v2747
    %3548 = vmatpush.bf16.msra.mxu0 %v2739
    %3549 = vmatpush.bf16.msra.mxu0 %v2731
    %3550 = vmatpush.bf16.msra.mxu0 %v2723
    %3551 = vmatmul.bf16.gmra.mxu0 %v919
    %v3552 = vpop.f32.mrf.mxu0
    %v3553 = vadd.f32 %v3540, %v3552
    %v3554 = vpop.f32.mrf.mxu0
    %3555 = vdwg.mxu0
    %3556 = vmatpush.bf16.msra.mxu0 %v2843
    %3557 = vmatpush.bf16.msra.mxu0 %v2835
    %3558 = vmatpush.bf16.msra.mxu0 %v2827
    %3559 = vmatpush.bf16.msra.mxu0 %v2819
    %3560 = vmatpush.bf16.msra.mxu0 %v2811
    %3561 = vmatpush.bf16.msra.mxu0 %v2803
    %3562 = vmatpush.bf16.msra.mxu0 %v2795
    %3563 = vmatpush.bf16.msra.mxu0 %v2787
    %3564 = vmatmul.bf16.gmra.mxu0 %v920
    %v3565 = vpop.f32.mrf.mxu0
    %v3566 = vadd.f32 %v3553, %v3565
    %v3567 = vpop.f32.mrf.mxu0
    %3568 = vdwg.mxu0
    %3569 = vmatpush.bf16.msra.mxu0 %v2907
    %3570 = vmatpush.bf16.msra.mxu0 %v2899
    %3571 = vmatpush.bf16.msra.mxu0 %v2891
    %3572 = vmatpush.bf16.msra.mxu0 %v2883
    %3573 = vmatpush.bf16.msra.mxu0 %v2875
    %3574 = vmatpush.bf16.msra.mxu0 %v2867
    %3575 = vmatpush.bf16.msra.mxu0 %v2859
    %3576 = vmatpush.bf16.msra.mxu0 %v2851
    %3577 = vmatmul.bf16.gmra.mxu0 %v921
    %v3578 = vpop.f32.mrf.mxu0
    %v3579 = vadd.f32 %v3566, %v3578
    %v3580 = vpop.f32.mrf.mxu0
    %3581 = vdwg.mxu0
    %3582 = vmatpush.bf16.msra.mxu0 %v2971
    %3583 = vmatpush.bf16.msra.mxu0 %v2963
    %3584 = vmatpush.bf16.msra.mxu0 %v2955
    %3585 = vmatpush.bf16.msra.mxu0 %v2947
    %3586 = vmatpush.bf16.msra.mxu0 %v2939
    %3587 = vmatpush.bf16.msra.mxu0 %v2931
    %3588 = vmatpush.bf16.msra.mxu0 %v2923
    %3589 = vmatpush.bf16.msra.mxu0 %v2915
    %3590 = vmatmul.bf16.gmra.mxu0 %v922
    %v3591 = vpop.f32.mrf.mxu0
    %v3592 = vadd.f32 %v3579, %v3591
    %v3593 = vpop.f32.mrf.mxu0
    %3594 = vdwg.mxu0
    %3595 = vmatpush.bf16.msra.mxu0 %v2524
    %3596 = vmatpush.bf16.msra.mxu0 %v2516
    %3597 = vmatpush.bf16.msra.mxu0 %v2508
    %3598 = vmatpush.bf16.msra.mxu0 %v2500
    %3599 = vmatpush.bf16.msra.mxu0 %v2492
    %3600 = vmatpush.bf16.msra.mxu0 %v2484
    %3601 = vmatpush.bf16.msra.mxu0 %v2476
    %3602 = vmatpush.bf16.msra.mxu0 %v2468
    %3603 = vmatmul.bf16.gmra.mxu0 %v915
    %v3604 = vpop.f32.mrf.mxu0
    %v3605 = vadd.f32 0.0, %v3604
    %v3606 = vpop.f32.mrf.mxu0
    %3607 = vdwg.mxu0
    %3608 = vmatpush.bf16.msra.mxu0 %v2588
    %3609 = vmatpush.bf16.msra.mxu0 %v2580
    %3610 = vmatpush.bf16.msra.mxu0 %v2572
    %3611 = vmatpush.bf16.msra.mxu0 %v2564
    %3612 = vmatpush.bf16.msra.mxu0 %v2556
    %3613 = vmatpush.bf16.msra.mxu0 %v2548
    %3614 = vmatpush.bf16.msra.mxu0 %v2540
    %3615 = vmatpush.bf16.msra.mxu0 %v2532
    %3616 = vmatmul.bf16.gmra.mxu0 %v916
    %v3617 = vpop.f32.mrf.mxu0
    %v3618 = vadd.f32 %v3605, %v3617
    %v3619 = vpop.f32.mrf.mxu0
    %3620 = vdwg.mxu0
    %3621 = vmatpush.bf16.msra.mxu0 %v2652
    %3622 = vmatpush.bf16.msra.mxu0 %v2644
    %3623 = vmatpush.bf16.msra.mxu0 %v2636
    %3624 = vmatpush.bf16.msra.mxu0 %v2628
    %3625 = vmatpush.bf16.msra.mxu0 %v2620
    %3626 = vmatpush.bf16.msra.mxu0 %v2612
    %3627 = vmatpush.bf16.msra.mxu0 %v2604
    %3628 = vmatpush.bf16.msra.mxu0 %v2596
    %3629 = vmatmul.bf16.gmra.mxu0 %v917
    %v3630 = vpop.f32.mrf.mxu0
    %v3631 = vadd.f32 %v3618, %v3630
    %v3632 = vpop.f32.mrf.mxu0
    %3633 = vdwg.mxu0
    %3634 = vmatpush.bf16.msra.mxu0 %v2716
    %3635 = vmatpush.bf16.msra.mxu0 %v2708
    %3636 = vmatpush.bf16.msra.mxu0 %v2700
    %3637 = vmatpush.bf16.msra.mxu0 %v2692
    %3638 = vmatpush.bf16.msra.mxu0 %v2684
    %3639 = vmatpush.bf16.msra.mxu0 %v2676
    %3640 = vmatpush.bf16.msra.mxu0 %v2668
    %3641 = vmatpush.bf16.msra.mxu0 %v2660
    %3642 = vmatmul.bf16.gmra.mxu0 %v918
    %v3643 = vpop.f32.mrf.mxu0
    %v3644 = vadd.f32 %v3631, %v3643
    %v3645 = vpop.f32.mrf.mxu0
    %3646 = vdwg.mxu0
    %3647 = vmatpush.bf16.msra.mxu0 %v2780
    %3648 = vmatpush.bf16.msra.mxu0 %v2772
    %3649 = vmatpush.bf16.msra.mxu0 %v2764
    %3650 = vmatpush.bf16.msra.mxu0 %v2756
    %3651 = vmatpush.bf16.msra.mxu0 %v2748
    %3652 = vmatpush.bf16.msra.mxu0 %v2740
    %3653 = vmatpush.bf16.msra.mxu0 %v2732
    %3654 = vmatpush.bf16.msra.mxu0 %v2724
    %3655 = vmatmul.bf16.gmra.mxu0 %v919
    %v3656 = vpop.f32.mrf.mxu0
    %v3657 = vadd.f32 %v3644, %v3656
    %v3658 = vpop.f32.mrf.mxu0
    %3659 = vdwg.mxu0
    %3660 = vmatpush.bf16.msra.mxu0 %v2844
    %3661 = vmatpush.bf16.msra.mxu0 %v2836
    %3662 = vmatpush.bf16.msra.mxu0 %v2828
    %3663 = vmatpush.bf16.msra.mxu0 %v2820
    %3664 = vmatpush.bf16.msra.mxu0 %v2812
    %3665 = vmatpush.bf16.msra.mxu0 %v2804
    %3666 = vmatpush.bf16.msra.mxu0 %v2796
    %3667 = vmatpush.bf16.msra.mxu0 %v2788
    %3668 = vmatmul.bf16.gmra.mxu0 %v920
    %v3669 = vpop.f32.mrf.mxu0
    %v3670 = vadd.f32 %v3657, %v3669
    %v3671 = vpop.f32.mrf.mxu0
    %3672 = vdwg.mxu0
    %3673 = vmatpush.bf16.msra.mxu0 %v2908
    %3674 = vmatpush.bf16.msra.mxu0 %v2900
    %3675 = vmatpush.bf16.msra.mxu0 %v2892
    %3676 = vmatpush.bf16.msra.mxu0 %v2884
    %3677 = vmatpush.bf16.msra.mxu0 %v2876
    %3678 = vmatpush.bf16.msra.mxu0 %v2868
    %3679 = vmatpush.bf16.msra.mxu0 %v2860
    %3680 = vmatpush.bf16.msra.mxu0 %v2852
    %3681 = vmatmul.bf16.gmra.mxu0 %v921
    %v3682 = vpop.f32.mrf.mxu0
    %v3683 = vadd.f32 %v3670, %v3682
    %v3684 = vpop.f32.mrf.mxu0
    %3685 = vdwg.mxu0
    %3686 = vmatpush.bf16.msra.mxu0 %v2972
    %3687 = vmatpush.bf16.msra.mxu0 %v2964
    %3688 = vmatpush.bf16.msra.mxu0 %v2956
    %3689 = vmatpush.bf16.msra.mxu0 %v2948
    %3690 = vmatpush.bf16.msra.mxu0 %v2940
    %3691 = vmatpush.bf16.msra.mxu0 %v2932
    %3692 = vmatpush.bf16.msra.mxu0 %v2924
    %3693 = vmatpush.bf16.msra.mxu0 %v2916
    %3694 = vmatmul.bf16.gmra.mxu0 %v922
    %v3695 = vpop.f32.mrf.mxu0
    %v3696 = vadd.f32 %v3683, %v3695
    %v3697 = vpop.f32.mrf.mxu0
    %3698 = vdwg.mxu0
    %3699 = vmatpush.bf16.msra.mxu0 %v2525
    %3700 = vmatpush.bf16.msra.mxu0 %v2517
    %3701 = vmatpush.bf16.msra.mxu0 %v2509
    %3702 = vmatpush.bf16.msra.mxu0 %v2501
    %3703 = vmatpush.bf16.msra.mxu0 %v2493
    %3704 = vmatpush.bf16.msra.mxu0 %v2485
    %3705 = vmatpush.bf16.msra.mxu0 %v2477
    %3706 = vmatpush.bf16.msra.mxu0 %v2469
    %3707 = vmatmul.bf16.gmra.mxu0 %v915
    %v3708 = vpop.f32.mrf.mxu0
    %v3709 = vadd.f32 0.0, %v3708
    %v3710 = vpop.f32.mrf.mxu0
    %3711 = vdwg.mxu0
    %3712 = vmatpush.bf16.msra.mxu0 %v2589
    %3713 = vmatpush.bf16.msra.mxu0 %v2581
    %3714 = vmatpush.bf16.msra.mxu0 %v2573
    %3715 = vmatpush.bf16.msra.mxu0 %v2565
    %3716 = vmatpush.bf16.msra.mxu0 %v2557
    %3717 = vmatpush.bf16.msra.mxu0 %v2549
    %3718 = vmatpush.bf16.msra.mxu0 %v2541
    %3719 = vmatpush.bf16.msra.mxu0 %v2533
    %3720 = vmatmul.bf16.gmra.mxu0 %v916
    %v3721 = vpop.f32.mrf.mxu0
    %v3722 = vadd.f32 %v3709, %v3721
    %v3723 = vpop.f32.mrf.mxu0
    %3724 = vdwg.mxu0
    %3725 = vmatpush.bf16.msra.mxu0 %v2653
    %3726 = vmatpush.bf16.msra.mxu0 %v2645
    %3727 = vmatpush.bf16.msra.mxu0 %v2637
    %3728 = vmatpush.bf16.msra.mxu0 %v2629
    %3729 = vmatpush.bf16.msra.mxu0 %v2621
    %3730 = vmatpush.bf16.msra.mxu0 %v2613
    %3731 = vmatpush.bf16.msra.mxu0 %v2605
    %3732 = vmatpush.bf16.msra.mxu0 %v2597
    %3733 = vmatmul.bf16.gmra.mxu0 %v917
    %v3734 = vpop.f32.mrf.mxu0
    %v3735 = vadd.f32 %v3722, %v3734
    %v3736 = vpop.f32.mrf.mxu0
    %3737 = vdwg.mxu0
    %3738 = vmatpush.bf16.msra.mxu0 %v2717
    %3739 = vmatpush.bf16.msra.mxu0 %v2709
    %3740 = vmatpush.bf16.msra.mxu0 %v2701
    %3741 = vmatpush.bf16.msra.mxu0 %v2693
    %3742 = vmatpush.bf16.msra.mxu0 %v2685
    %3743 = vmatpush.bf16.msra.mxu0 %v2677
    %3744 = vmatpush.bf16.msra.mxu0 %v2669
    %3745 = vmatpush.bf16.msra.mxu0 %v2661
    %3746 = vmatmul.bf16.gmra.mxu0 %v918
    %v3747 = vpop.f32.mrf.mxu0
    %v3748 = vadd.f32 %v3735, %v3747
    %v3749 = vpop.f32.mrf.mxu0
    %3750 = vdwg.mxu0
    %3751 = vmatpush.bf16.msra.mxu0 %v2781
    %3752 = vmatpush.bf16.msra.mxu0 %v2773
    %3753 = vmatpush.bf16.msra.mxu0 %v2765
    %3754 = vmatpush.bf16.msra.mxu0 %v2757
    %3755 = vmatpush.bf16.msra.mxu0 %v2749
    %3756 = vmatpush.bf16.msra.mxu0 %v2741
    %3757 = vmatpush.bf16.msra.mxu0 %v2733
    %3758 = vmatpush.bf16.msra.mxu0 %v2725
    %3759 = vmatmul.bf16.gmra.mxu0 %v919
    %v3760 = vpop.f32.mrf.mxu0
    %v3761 = vadd.f32 %v3748, %v3760
    %v3762 = vpop.f32.mrf.mxu0
    %3763 = vdwg.mxu0
    %3764 = vmatpush.bf16.msra.mxu0 %v2845
    %3765 = vmatpush.bf16.msra.mxu0 %v2837
    %3766 = vmatpush.bf16.msra.mxu0 %v2829
    %3767 = vmatpush.bf16.msra.mxu0 %v2821
    %3768 = vmatpush.bf16.msra.mxu0 %v2813
    %3769 = vmatpush.bf16.msra.mxu0 %v2805
    %3770 = vmatpush.bf16.msra.mxu0 %v2797
    %3771 = vmatpush.bf16.msra.mxu0 %v2789
    %3772 = vmatmul.bf16.gmra.mxu0 %v920
    %v3773 = vpop.f32.mrf.mxu0
    %v3774 = vadd.f32 %v3761, %v3773
    %v3775 = vpop.f32.mrf.mxu0
    %3776 = vdwg.mxu0
    %3777 = vmatpush.bf16.msra.mxu0 %v2909
    %3778 = vmatpush.bf16.msra.mxu0 %v2901
    %3779 = vmatpush.bf16.msra.mxu0 %v2893
    %3780 = vmatpush.bf16.msra.mxu0 %v2885
    %3781 = vmatpush.bf16.msra.mxu0 %v2877
    %3782 = vmatpush.bf16.msra.mxu0 %v2869
    %3783 = vmatpush.bf16.msra.mxu0 %v2861
    %3784 = vmatpush.bf16.msra.mxu0 %v2853
    %3785 = vmatmul.bf16.gmra.mxu0 %v921
    %v3786 = vpop.f32.mrf.mxu0
    %v3787 = vadd.f32 %v3774, %v3786
    %v3788 = vpop.f32.mrf.mxu0
    %3789 = vdwg.mxu0
    %3790 = vmatpush.bf16.msra.mxu0 %v2973
    %3791 = vmatpush.bf16.msra.mxu0 %v2965
    %3792 = vmatpush.bf16.msra.mxu0 %v2957
    %3793 = vmatpush.bf16.msra.mxu0 %v2949
    %3794 = vmatpush.bf16.msra.mxu0 %v2941
    %3795 = vmatpush.bf16.msra.mxu0 %v2933
    %3796 = vmatpush.bf16.msra.mxu0 %v2925
    %3797 = vmatpush.bf16.msra.mxu0 %v2917
    %3798 = vmatmul.bf16.gmra.mxu0 %v922
    %v3799 = vpop.f32.mrf.mxu0
    %v3800 = vadd.f32 %v3787, %v3799
    %v3801 = vpop.f32.mrf.mxu0
    %3802 = vdwg.mxu0
    %3803 = vmatpush.bf16.msra.mxu0 %v2526
    %3804 = vmatpush.bf16.msra.mxu0 %v2518
    %3805 = vmatpush.bf16.msra.mxu0 %v2510
    %3806 = vmatpush.bf16.msra.mxu0 %v2502
    %3807 = vmatpush.bf16.msra.mxu0 %v2494
    %3808 = vmatpush.bf16.msra.mxu0 %v2486
    %3809 = vmatpush.bf16.msra.mxu0 %v2478
    %3810 = vmatpush.bf16.msra.mxu0 %v2470
    %3811 = vmatmul.bf16.gmra.mxu0 %v915
    %v3812 = vpop.f32.mrf.mxu0
    %v3813 = vadd.f32 0.0, %v3812
    %v3814 = vpop.f32.mrf.mxu0
    %3815 = vdwg.mxu0
    %3816 = vmatpush.bf16.msra.mxu0 %v2590
    %3817 = vmatpush.bf16.msra.mxu0 %v2582
    %3818 = vmatpush.bf16.msra.mxu0 %v2574
    %3819 = vmatpush.bf16.msra.mxu0 %v2566
    %3820 = vmatpush.bf16.msra.mxu0 %v2558
    %3821 = vmatpush.bf16.msra.mxu0 %v2550
    %3822 = vmatpush.bf16.msra.mxu0 %v2542
    %3823 = vmatpush.bf16.msra.mxu0 %v2534
    %3824 = vmatmul.bf16.gmra.mxu0 %v916
    %v3825 = vpop.f32.mrf.mxu0
    %v3826 = vadd.f32 %v3813, %v3825
    %v3827 = vpop.f32.mrf.mxu0
    %3828 = vdwg.mxu0
    %3829 = vmatpush.bf16.msra.mxu0 %v2654
    %3830 = vmatpush.bf16.msra.mxu0 %v2646
    %3831 = vmatpush.bf16.msra.mxu0 %v2638
    %3832 = vmatpush.bf16.msra.mxu0 %v2630
    %3833 = vmatpush.bf16.msra.mxu0 %v2622
    %3834 = vmatpush.bf16.msra.mxu0 %v2614
    %3835 = vmatpush.bf16.msra.mxu0 %v2606
    %3836 = vmatpush.bf16.msra.mxu0 %v2598
    %3837 = vmatmul.bf16.gmra.mxu0 %v917
    %v3838 = vpop.f32.mrf.mxu0
    %v3839 = vadd.f32 %v3826, %v3838
    %v3840 = vpop.f32.mrf.mxu0
    %3841 = vdwg.mxu0
    %3842 = vmatpush.bf16.msra.mxu0 %v2718
    %3843 = vmatpush.bf16.msra.mxu0 %v2710
    %3844 = vmatpush.bf16.msra.mxu0 %v2702
    %3845 = vmatpush.bf16.msra.mxu0 %v2694
    %3846 = vmatpush.bf16.msra.mxu0 %v2686
    %3847 = vmatpush.bf16.msra.mxu0 %v2678
    %3848 = vmatpush.bf16.msra.mxu0 %v2670
    %3849 = vmatpush.bf16.msra.mxu0 %v2662
    %3850 = vmatmul.bf16.gmra.mxu0 %v918
    %v3851 = vpop.f32.mrf.mxu0
    %v3852 = vadd.f32 %v3839, %v3851
    %v3853 = vpop.f32.mrf.mxu0
    %3854 = vdwg.mxu0
    %3855 = vmatpush.bf16.msra.mxu0 %v2782
    %3856 = vmatpush.bf16.msra.mxu0 %v2774
    %3857 = vmatpush.bf16.msra.mxu0 %v2766
    %3858 = vmatpush.bf16.msra.mxu0 %v2758
    %3859 = vmatpush.bf16.msra.mxu0 %v2750
    %3860 = vmatpush.bf16.msra.mxu0 %v2742
    %3861 = vmatpush.bf16.msra.mxu0 %v2734
    %3862 = vmatpush.bf16.msra.mxu0 %v2726
    %3863 = vmatmul.bf16.gmra.mxu0 %v919
    %v3864 = vpop.f32.mrf.mxu0
    %v3865 = vadd.f32 %v3852, %v3864
    %v3866 = vpop.f32.mrf.mxu0
    %3867 = vdwg.mxu0
    %3868 = vmatpush.bf16.msra.mxu0 %v2846
    %3869 = vmatpush.bf16.msra.mxu0 %v2838
    %3870 = vmatpush.bf16.msra.mxu0 %v2830
    %3871 = vmatpush.bf16.msra.mxu0 %v2822
    %3872 = vmatpush.bf16.msra.mxu0 %v2814
    %3873 = vmatpush.bf16.msra.mxu0 %v2806
    %3874 = vmatpush.bf16.msra.mxu0 %v2798
    %3875 = vmatpush.bf16.msra.mxu0 %v2790
    %3876 = vmatmul.bf16.gmra.mxu0 %v920
    %v3877 = vpop.f32.mrf.mxu0
    %v3878 = vadd.f32 %v3865, %v3877
    %v3879 = vpop.f32.mrf.mxu0
    %3880 = vdwg.mxu0
    %3881 = vmatpush.bf16.msra.mxu0 %v2910
    %3882 = vmatpush.bf16.msra.mxu0 %v2902
    %3883 = vmatpush.bf16.msra.mxu0 %v2894
    %3884 = vmatpush.bf16.msra.mxu0 %v2886
    %3885 = vmatpush.bf16.msra.mxu0 %v2878
    %3886 = vmatpush.bf16.msra.mxu0 %v2870
    %3887 = vmatpush.bf16.msra.mxu0 %v2862
    %3888 = vmatpush.bf16.msra.mxu0 %v2854
    %3889 = vmatmul.bf16.gmra.mxu0 %v921
    %v3890 = vpop.f32.mrf.mxu0
    %v3891 = vadd.f32 %v3878, %v3890
    %v3892 = vpop.f32.mrf.mxu0
    %3893 = vdwg.mxu0
    %3894 = vmatpush.bf16.msra.mxu0 %v2974
    %3895 = vmatpush.bf16.msra.mxu0 %v2966
    %3896 = vmatpush.bf16.msra.mxu0 %v2958
    %3897 = vmatpush.bf16.msra.mxu0 %v2950
    %3898 = vmatpush.bf16.msra.mxu0 %v2942
    %3899 = vmatpush.bf16.msra.mxu0 %v2934
    %3900 = vmatpush.bf16.msra.mxu0 %v2926
    %3901 = vmatpush.bf16.msra.mxu0 %v2918
    %3902 = vmatmul.bf16.gmra.mxu0 %v922
    %v3903 = vpop.f32.mrf.mxu0
    %v3904 = vadd.f32 %v3891, %v3903
    %v3905 = vpop.f32.mrf.mxu0
    %3906 = vdwg.mxu0
    %3907 = vmatpush.bf16.msra.mxu0 %v2527
    %3908 = vmatpush.bf16.msra.mxu0 %v2519
    %3909 = vmatpush.bf16.msra.mxu0 %v2511
    %3910 = vmatpush.bf16.msra.mxu0 %v2503
    %3911 = vmatpush.bf16.msra.mxu0 %v2495
    %3912 = vmatpush.bf16.msra.mxu0 %v2487
    %3913 = vmatpush.bf16.msra.mxu0 %v2479
    %3914 = vmatpush.bf16.msra.mxu0 %v2471
    %3915 = vmatmul.bf16.gmra.mxu0 %v915
    %v3916 = vpop.f32.mrf.mxu0
    %v3917 = vadd.f32 0.0, %v3916
    %v3918 = vpop.f32.mrf.mxu0
    %3919 = vdwg.mxu0
    %3920 = vmatpush.bf16.msra.mxu0 %v2591
    %3921 = vmatpush.bf16.msra.mxu0 %v2583
    %3922 = vmatpush.bf16.msra.mxu0 %v2575
    %3923 = vmatpush.bf16.msra.mxu0 %v2567
    %3924 = vmatpush.bf16.msra.mxu0 %v2559
    %3925 = vmatpush.bf16.msra.mxu0 %v2551
    %3926 = vmatpush.bf16.msra.mxu0 %v2543
    %3927 = vmatpush.bf16.msra.mxu0 %v2535
    %3928 = vmatmul.bf16.gmra.mxu0 %v916
    %v3929 = vpop.f32.mrf.mxu0
    %v3930 = vadd.f32 %v3917, %v3929
    %v3931 = vpop.f32.mrf.mxu0
    %3932 = vdwg.mxu0
    %3933 = vmatpush.bf16.msra.mxu0 %v2655
    %3934 = vmatpush.bf16.msra.mxu0 %v2647
    %3935 = vmatpush.bf16.msra.mxu0 %v2639
    %3936 = vmatpush.bf16.msra.mxu0 %v2631
    %3937 = vmatpush.bf16.msra.mxu0 %v2623
    %3938 = vmatpush.bf16.msra.mxu0 %v2615
    %3939 = vmatpush.bf16.msra.mxu0 %v2607
    %3940 = vmatpush.bf16.msra.mxu0 %v2599
    %3941 = vmatmul.bf16.gmra.mxu0 %v917
    %v3942 = vpop.f32.mrf.mxu0
    %v3943 = vadd.f32 %v3930, %v3942
    %v3944 = vpop.f32.mrf.mxu0
    %3945 = vdwg.mxu0
    %3946 = vmatpush.bf16.msra.mxu0 %v2719
    %3947 = vmatpush.bf16.msra.mxu0 %v2711
    %3948 = vmatpush.bf16.msra.mxu0 %v2703
    %3949 = vmatpush.bf16.msra.mxu0 %v2695
    %3950 = vmatpush.bf16.msra.mxu0 %v2687
    %3951 = vmatpush.bf16.msra.mxu0 %v2679
    %3952 = vmatpush.bf16.msra.mxu0 %v2671
    %3953 = vmatpush.bf16.msra.mxu0 %v2663
    %3954 = vmatmul.bf16.gmra.mxu0 %v918
    %v3955 = vpop.f32.mrf.mxu0
    %v3956 = vadd.f32 %v3943, %v3955
    %v3957 = vpop.f32.mrf.mxu0
    %3958 = vdwg.mxu0
    %3959 = vmatpush.bf16.msra.mxu0 %v2783
    %3960 = vmatpush.bf16.msra.mxu0 %v2775
    %3961 = vmatpush.bf16.msra.mxu0 %v2767
    %3962 = vmatpush.bf16.msra.mxu0 %v2759
    %3963 = vmatpush.bf16.msra.mxu0 %v2751
    %3964 = vmatpush.bf16.msra.mxu0 %v2743
    %3965 = vmatpush.bf16.msra.mxu0 %v2735
    %3966 = vmatpush.bf16.msra.mxu0 %v2727
    %3967 = vmatmul.bf16.gmra.mxu0 %v919
    %v3968 = vpop.f32.mrf.mxu0
    %v3969 = vadd.f32 %v3956, %v3968
    %v3970 = vpop.f32.mrf.mxu0
    %3971 = vdwg.mxu0
    %3972 = vmatpush.bf16.msra.mxu0 %v2847
    %3973 = vmatpush.bf16.msra.mxu0 %v2839
    %3974 = vmatpush.bf16.msra.mxu0 %v2831
    %3975 = vmatpush.bf16.msra.mxu0 %v2823
    %3976 = vmatpush.bf16.msra.mxu0 %v2815
    %3977 = vmatpush.bf16.msra.mxu0 %v2807
    %3978 = vmatpush.bf16.msra.mxu0 %v2799
    %3979 = vmatpush.bf16.msra.mxu0 %v2791
    %3980 = vmatmul.bf16.gmra.mxu0 %v920
    %v3981 = vpop.f32.mrf.mxu0
    %v3982 = vadd.f32 %v3969, %v3981
    %v3983 = vpop.f32.mrf.mxu0
    %3984 = vdwg.mxu0
    %3985 = vmatpush.bf16.msra.mxu0 %v2911
    %3986 = vmatpush.bf16.msra.mxu0 %v2903
    %3987 = vmatpush.bf16.msra.mxu0 %v2895
    %3988 = vmatpush.bf16.msra.mxu0 %v2887
    %3989 = vmatpush.bf16.msra.mxu0 %v2879
    %3990 = vmatpush.bf16.msra.mxu0 %v2871
    %3991 = vmatpush.bf16.msra.mxu0 %v2863
    %3992 = vmatpush.bf16.msra.mxu0 %v2855
    %3993 = vmatmul.bf16.gmra.mxu0 %v921
    %v3994 = vpop.f32.mrf.mxu0
    %v3995 = vadd.f32 %v3982, %v3994
    %v3996 = vpop.f32.mrf.mxu0
    %3997 = vdwg.mxu0
    %3998 = vmatpush.bf16.msra.mxu0 %v2975
    %3999 = vmatpush.bf16.msra.mxu0 %v2967
    %4000 = vmatpush.bf16.msra.mxu0 %v2959
    %4001 = vmatpush.bf16.msra.mxu0 %v2951
    %4002 = vmatpush.bf16.msra.mxu0 %v2943
    %4003 = vmatpush.bf16.msra.mxu0 %v2935
    %4004 = vmatpush.bf16.msra.mxu0 %v2927
    %4005 = vmatpush.bf16.msra.mxu0 %v2919
    %4006 = vmatmul.bf16.gmra.mxu0 %v922
    %v4007 = vpop.f32.mrf.mxu0
    %v4008 = vadd.f32 %v3995, %v4007
    %v4009 = vpop.f32.mrf.mxu0
    %4010 = vdwg.mxu0
    %4011 = vmatpush.bf16.msra.mxu0 %v2528
    %4012 = vmatpush.bf16.msra.mxu0 %v2520
    %4013 = vmatpush.bf16.msra.mxu0 %v2512
    %4014 = vmatpush.bf16.msra.mxu0 %v2504
    %4015 = vmatpush.bf16.msra.mxu0 %v2496
    %4016 = vmatpush.bf16.msra.mxu0 %v2488
    %4017 = vmatpush.bf16.msra.mxu0 %v2480
    %4018 = vmatpush.bf16.msra.mxu0 %v2472
    %4019 = vmatmul.bf16.gmra.mxu0 %v915
    %v4020 = vpop.f32.mrf.mxu0
    %v4021 = vadd.f32 0.0, %v4020
    %v4022 = vpop.f32.mrf.mxu0
    %4023 = vdwg.mxu0
    %4024 = vmatpush.bf16.msra.mxu0 %v2592
    %4025 = vmatpush.bf16.msra.mxu0 %v2584
    %4026 = vmatpush.bf16.msra.mxu0 %v2576
    %4027 = vmatpush.bf16.msra.mxu0 %v2568
    %4028 = vmatpush.bf16.msra.mxu0 %v2560
    %4029 = vmatpush.bf16.msra.mxu0 %v2552
    %4030 = vmatpush.bf16.msra.mxu0 %v2544
    %4031 = vmatpush.bf16.msra.mxu0 %v2536
    %4032 = vmatmul.bf16.gmra.mxu0 %v916
    %v4033 = vpop.f32.mrf.mxu0
    %v4034 = vadd.f32 %v4021, %v4033
    %v4035 = vpop.f32.mrf.mxu0
    %4036 = vdwg.mxu0
    %4037 = vmatpush.bf16.msra.mxu0 %v2656
    %4038 = vmatpush.bf16.msra.mxu0 %v2648
    %4039 = vmatpush.bf16.msra.mxu0 %v2640
    %4040 = vmatpush.bf16.msra.mxu0 %v2632
    %4041 = vmatpush.bf16.msra.mxu0 %v2624
    %4042 = vmatpush.bf16.msra.mxu0 %v2616
    %4043 = vmatpush.bf16.msra.mxu0 %v2608
    %4044 = vmatpush.bf16.msra.mxu0 %v2600
    %4045 = vmatmul.bf16.gmra.mxu0 %v917
    %v4046 = vpop.f32.mrf.mxu0
    %v4047 = vadd.f32 %v4034, %v4046
    %v4048 = vpop.f32.mrf.mxu0
    %4049 = vdwg.mxu0
    %4050 = vmatpush.bf16.msra.mxu0 %v2720
    %4051 = vmatpush.bf16.msra.mxu0 %v2712
    %4052 = vmatpush.bf16.msra.mxu0 %v2704
    %4053 = vmatpush.bf16.msra.mxu0 %v2696
    %4054 = vmatpush.bf16.msra.mxu0 %v2688
    %4055 = vmatpush.bf16.msra.mxu0 %v2680
    %4056 = vmatpush.bf16.msra.mxu0 %v2672
    %4057 = vmatpush.bf16.msra.mxu0 %v2664
    %4058 = vmatmul.bf16.gmra.mxu0 %v918
    %v4059 = vpop.f32.mrf.mxu0
    %v4060 = vadd.f32 %v4047, %v4059
    %v4061 = vpop.f32.mrf.mxu0
    %4062 = vdwg.mxu0
    %4063 = vmatpush.bf16.msra.mxu0 %v2784
    %4064 = vmatpush.bf16.msra.mxu0 %v2776
    %4065 = vmatpush.bf16.msra.mxu0 %v2768
    %4066 = vmatpush.bf16.msra.mxu0 %v2760
    %4067 = vmatpush.bf16.msra.mxu0 %v2752
    %4068 = vmatpush.bf16.msra.mxu0 %v2744
    %4069 = vmatpush.bf16.msra.mxu0 %v2736
    %4070 = vmatpush.bf16.msra.mxu0 %v2728
    %4071 = vmatmul.bf16.gmra.mxu0 %v919
    %v4072 = vpop.f32.mrf.mxu0
    %v4073 = vadd.f32 %v4060, %v4072
    %v4074 = vpop.f32.mrf.mxu0
    %4075 = vdwg.mxu0
    %4076 = vmatpush.bf16.msra.mxu0 %v2848
    %4077 = vmatpush.bf16.msra.mxu0 %v2840
    %4078 = vmatpush.bf16.msra.mxu0 %v2832
    %4079 = vmatpush.bf16.msra.mxu0 %v2824
    %4080 = vmatpush.bf16.msra.mxu0 %v2816
    %4081 = vmatpush.bf16.msra.mxu0 %v2808
    %4082 = vmatpush.bf16.msra.mxu0 %v2800
    %4083 = vmatpush.bf16.msra.mxu0 %v2792
    %4084 = vmatmul.bf16.gmra.mxu0 %v920
    %v4085 = vpop.f32.mrf.mxu0
    %v4086 = vadd.f32 %v4073, %v4085
    %v4087 = vpop.f32.mrf.mxu0
    %4088 = vdwg.mxu0
    %4089 = vmatpush.bf16.msra.mxu0 %v2912
    %4090 = vmatpush.bf16.msra.mxu0 %v2904
    %4091 = vmatpush.bf16.msra.mxu0 %v2896
    %4092 = vmatpush.bf16.msra.mxu0 %v2888
    %4093 = vmatpush.bf16.msra.mxu0 %v2880
    %4094 = vmatpush.bf16.msra.mxu0 %v2872
    %4095 = vmatpush.bf16.msra.mxu0 %v2864
    %4096 = vmatpush.bf16.msra.mxu0 %v2856
    %4097 = vmatmul.bf16.gmra.mxu0 %v921
    %v4098 = vpop.f32.mrf.mxu0
    %v4099 = vadd.f32 %v4086, %v4098
    %v4100 = vpop.f32.mrf.mxu0
    %4101 = vdwg.mxu0
    %4102 = vmatpush.bf16.msra.mxu0 %v2976
    %4103 = vmatpush.bf16.msra.mxu0 %v2968
    %4104 = vmatpush.bf16.msra.mxu0 %v2960
    %4105 = vmatpush.bf16.msra.mxu0 %v2952
    %4106 = vmatpush.bf16.msra.mxu0 %v2944
    %4107 = vmatpush.bf16.msra.mxu0 %v2936
    %4108 = vmatpush.bf16.msra.mxu0 %v2928
    %4109 = vmatpush.bf16.msra.mxu0 %v2920
    %4110 = vmatmul.bf16.gmra.mxu0 %v922
    %v4111 = vpop.f32.mrf.mxu0
    %v4112 = vadd.f32 %v4099, %v4111
    %v4113 = vpop.f32.mrf.mxu0
    %4114 = vdwg.mxu0
    %4115 = vmatpush.bf16.msra.mxu0 %v2529
    %4116 = vmatpush.bf16.msra.mxu0 %v2521
    %4117 = vmatpush.bf16.msra.mxu0 %v2513
    %4118 = vmatpush.bf16.msra.mxu0 %v2505
    %4119 = vmatpush.bf16.msra.mxu0 %v2497
    %4120 = vmatpush.bf16.msra.mxu0 %v2489
    %4121 = vmatpush.bf16.msra.mxu0 %v2481
    %4122 = vmatpush.bf16.msra.mxu0 %v2473
    %4123 = vmatmul.bf16.gmra.mxu0 %v915
    %v4124 = vpop.f32.mrf.mxu0
    %v4125 = vadd.f32 0.0, %v4124
    %v4126 = vpop.f32.mrf.mxu0
    %4127 = vdwg.mxu0
    %4128 = vmatpush.bf16.msra.mxu0 %v2593
    %4129 = vmatpush.bf16.msra.mxu0 %v2585
    %4130 = vmatpush.bf16.msra.mxu0 %v2577
    %4131 = vmatpush.bf16.msra.mxu0 %v2569
    %4132 = vmatpush.bf16.msra.mxu0 %v2561
    %4133 = vmatpush.bf16.msra.mxu0 %v2553
    %4134 = vmatpush.bf16.msra.mxu0 %v2545
    %4135 = vmatpush.bf16.msra.mxu0 %v2537
    %4136 = vmatmul.bf16.gmra.mxu0 %v916
    %v4137 = vpop.f32.mrf.mxu0
    %v4138 = vadd.f32 %v4125, %v4137
    %v4139 = vpop.f32.mrf.mxu0
    %4140 = vdwg.mxu0
    %4141 = vmatpush.bf16.msra.mxu0 %v2657
    %4142 = vmatpush.bf16.msra.mxu0 %v2649
    %4143 = vmatpush.bf16.msra.mxu0 %v2641
    %4144 = vmatpush.bf16.msra.mxu0 %v2633
    %4145 = vmatpush.bf16.msra.mxu0 %v2625
    %4146 = vmatpush.bf16.msra.mxu0 %v2617
    %4147 = vmatpush.bf16.msra.mxu0 %v2609
    %4148 = vmatpush.bf16.msra.mxu0 %v2601
    %4149 = vmatmul.bf16.gmra.mxu0 %v917
    %v4150 = vpop.f32.mrf.mxu0
    %v4151 = vadd.f32 %v4138, %v4150
    %v4152 = vpop.f32.mrf.mxu0
    %4153 = vdwg.mxu0
    %4154 = vmatpush.bf16.msra.mxu0 %v2721
    %4155 = vmatpush.bf16.msra.mxu0 %v2713
    %4156 = vmatpush.bf16.msra.mxu0 %v2705
    %4157 = vmatpush.bf16.msra.mxu0 %v2697
    %4158 = vmatpush.bf16.msra.mxu0 %v2689
    %4159 = vmatpush.bf16.msra.mxu0 %v2681
    %4160 = vmatpush.bf16.msra.mxu0 %v2673
    %4161 = vmatpush.bf16.msra.mxu0 %v2665
    %4162 = vmatmul.bf16.gmra.mxu0 %v918
    %v4163 = vpop.f32.mrf.mxu0
    %v4164 = vadd.f32 %v4151, %v4163
    %v4165 = vpop.f32.mrf.mxu0
    %4166 = vdwg.mxu0
    %4167 = vmatpush.bf16.msra.mxu0 %v2785
    %4168 = vmatpush.bf16.msra.mxu0 %v2777
    %4169 = vmatpush.bf16.msra.mxu0 %v2769
    %4170 = vmatpush.bf16.msra.mxu0 %v2761
    %4171 = vmatpush.bf16.msra.mxu0 %v2753
    %4172 = vmatpush.bf16.msra.mxu0 %v2745
    %4173 = vmatpush.bf16.msra.mxu0 %v2737
    %4174 = vmatpush.bf16.msra.mxu0 %v2729
    %4175 = vmatmul.bf16.gmra.mxu0 %v919
    %v4176 = vpop.f32.mrf.mxu0
    %v4177 = vadd.f32 %v4164, %v4176
    %v4178 = vpop.f32.mrf.mxu0
    %4179 = vdwg.mxu0
    %4180 = vmatpush.bf16.msra.mxu0 %v2849
    %4181 = vmatpush.bf16.msra.mxu0 %v2841
    %4182 = vmatpush.bf16.msra.mxu0 %v2833
    %4183 = vmatpush.bf16.msra.mxu0 %v2825
    %4184 = vmatpush.bf16.msra.mxu0 %v2817
    %4185 = vmatpush.bf16.msra.mxu0 %v2809
    %4186 = vmatpush.bf16.msra.mxu0 %v2801
    %4187 = vmatpush.bf16.msra.mxu0 %v2793
    %4188 = vmatmul.bf16.gmra.mxu0 %v920
    %v4189 = vpop.f32.mrf.mxu0
    %v4190 = vadd.f32 %v4177, %v4189
    %v4191 = vpop.f32.mrf.mxu0
    %4192 = vdwg.mxu0
    %4193 = vmatpush.bf16.msra.mxu0 %v2913
    %4194 = vmatpush.bf16.msra.mxu0 %v2905
    %4195 = vmatpush.bf16.msra.mxu0 %v2897
    %4196 = vmatpush.bf16.msra.mxu0 %v2889
    %4197 = vmatpush.bf16.msra.mxu0 %v2881
    %4198 = vmatpush.bf16.msra.mxu0 %v2873
    %4199 = vmatpush.bf16.msra.mxu0 %v2865
    %4200 = vmatpush.bf16.msra.mxu0 %v2857
    %4201 = vmatmul.bf16.gmra.mxu0 %v921
    %v4202 = vpop.f32.mrf.mxu0
    %v4203 = vadd.f32 %v4190, %v4202
    %v4204 = vpop.f32.mrf.mxu0
    %4205 = vdwg.mxu0
    %4206 = vmatpush.bf16.msra.mxu0 %v2977
    %4207 = vmatpush.bf16.msra.mxu0 %v2969
    %4208 = vmatpush.bf16.msra.mxu0 %v2961
    %4209 = vmatpush.bf16.msra.mxu0 %v2953
    %4210 = vmatpush.bf16.msra.mxu0 %v2945
    %4211 = vmatpush.bf16.msra.mxu0 %v2937
    %4212 = vmatpush.bf16.msra.mxu0 %v2929
    %4213 = vmatpush.bf16.msra.mxu0 %v2921
    %4214 = vmatmul.bf16.gmra.mxu0 %v922
    %v4215 = vpop.f32.mrf.mxu0
    %v4216 = vadd.f32 %v4203, %v4215
    %v4217 = vpop.f32.mrf.mxu0
    %4218 = vdwg.mxu0
    %4219 = vmatpush.bf16.msra.mxu0 %v2530
    %4220 = vmatpush.bf16.msra.mxu0 %v2522
    %4221 = vmatpush.bf16.msra.mxu0 %v2514
    %4222 = vmatpush.bf16.msra.mxu0 %v2506
    %4223 = vmatpush.bf16.msra.mxu0 %v2498
    %4224 = vmatpush.bf16.msra.mxu0 %v2490
    %4225 = vmatpush.bf16.msra.mxu0 %v2482
    %4226 = vmatpush.bf16.msra.mxu0 %v2474
    %4227 = vmatmul.bf16.gmra.mxu0 %v915
    %v4228 = vpop.f32.mrf.mxu0
    %v4229 = vadd.f32 0.0, %v4228
    %v4230 = vpop.f32.mrf.mxu0
    %4231 = vdwg.mxu0
    %4232 = vmatpush.bf16.msra.mxu0 %v2594
    %4233 = vmatpush.bf16.msra.mxu0 %v2586
    %4234 = vmatpush.bf16.msra.mxu0 %v2578
    %4235 = vmatpush.bf16.msra.mxu0 %v2570
    %4236 = vmatpush.bf16.msra.mxu0 %v2562
    %4237 = vmatpush.bf16.msra.mxu0 %v2554
    %4238 = vmatpush.bf16.msra.mxu0 %v2546
    %4239 = vmatpush.bf16.msra.mxu0 %v2538
    %4240 = vmatmul.bf16.gmra.mxu0 %v916
    %v4241 = vpop.f32.mrf.mxu0
    %v4242 = vadd.f32 %v4229, %v4241
    %v4243 = vpop.f32.mrf.mxu0
    %4244 = vdwg.mxu0
    %4245 = vmatpush.bf16.msra.mxu0 %v2658
    %4246 = vmatpush.bf16.msra.mxu0 %v2650
    %4247 = vmatpush.bf16.msra.mxu0 %v2642
    %4248 = vmatpush.bf16.msra.mxu0 %v2634
    %4249 = vmatpush.bf16.msra.mxu0 %v2626
    %4250 = vmatpush.bf16.msra.mxu0 %v2618
    %4251 = vmatpush.bf16.msra.mxu0 %v2610
    %4252 = vmatpush.bf16.msra.mxu0 %v2602
    %4253 = vmatmul.bf16.gmra.mxu0 %v917
    %v4254 = vpop.f32.mrf.mxu0
    %v4255 = vadd.f32 %v4242, %v4254
    %v4256 = vpop.f32.mrf.mxu0
    %4257 = vdwg.mxu0
    %4258 = vmatpush.bf16.msra.mxu0 %v2722
    %4259 = vmatpush.bf16.msra.mxu0 %v2714
    %4260 = vmatpush.bf16.msra.mxu0 %v2706
    %4261 = vmatpush.bf16.msra.mxu0 %v2698
    %4262 = vmatpush.bf16.msra.mxu0 %v2690
    %4263 = vmatpush.bf16.msra.mxu0 %v2682
    %4264 = vmatpush.bf16.msra.mxu0 %v2674
    %4265 = vmatpush.bf16.msra.mxu0 %v2666
    %4266 = vmatmul.bf16.gmra.mxu0 %v918
    %v4267 = vpop.f32.mrf.mxu0
    %v4268 = vadd.f32 %v4255, %v4267
    %v4269 = vpop.f32.mrf.mxu0
    %4270 = vdwg.mxu0
    %4271 = vmatpush.bf16.msra.mxu0 %v2786
    %4272 = vmatpush.bf16.msra.mxu0 %v2778
    %4273 = vmatpush.bf16.msra.mxu0 %v2770
    %4274 = vmatpush.bf16.msra.mxu0 %v2762
    %4275 = vmatpush.bf16.msra.mxu0 %v2754
    %4276 = vmatpush.bf16.msra.mxu0 %v2746
    %4277 = vmatpush.bf16.msra.mxu0 %v2738
    %4278 = vmatpush.bf16.msra.mxu0 %v2730
    %4279 = vmatmul.bf16.gmra.mxu0 %v919
    %v4280 = vpop.f32.mrf.mxu0
    %v4281 = vadd.f32 %v4268, %v4280
    %v4282 = vpop.f32.mrf.mxu0
    %4283 = vdwg.mxu0
    %4284 = vmatpush.bf16.msra.mxu0 %v2850
    %4285 = vmatpush.bf16.msra.mxu0 %v2842
    %4286 = vmatpush.bf16.msra.mxu0 %v2834
    %4287 = vmatpush.bf16.msra.mxu0 %v2826
    %4288 = vmatpush.bf16.msra.mxu0 %v2818
    %4289 = vmatpush.bf16.msra.mxu0 %v2810
    %4290 = vmatpush.bf16.msra.mxu0 %v2802
    %4291 = vmatpush.bf16.msra.mxu0 %v2794
    %4292 = vmatmul.bf16.gmra.mxu0 %v920
    %v4293 = vpop.f32.mrf.mxu0
    %v4294 = vadd.f32 %v4281, %v4293
    %v4295 = vpop.f32.mrf.mxu0
    %4296 = vdwg.mxu0
    %4297 = vmatpush.bf16.msra.mxu0 %v2914
    %4298 = vmatpush.bf16.msra.mxu0 %v2906
    %4299 = vmatpush.bf16.msra.mxu0 %v2898
    %4300 = vmatpush.bf16.msra.mxu0 %v2890
    %4301 = vmatpush.bf16.msra.mxu0 %v2882
    %4302 = vmatpush.bf16.msra.mxu0 %v2874
    %4303 = vmatpush.bf16.msra.mxu0 %v2866
    %4304 = vmatpush.bf16.msra.mxu0 %v2858
    %4305 = vmatmul.bf16.gmra.mxu0 %v921
    %v4306 = vpop.f32.mrf.mxu0
    %v4307 = vadd.f32 %v4294, %v4306
    %v4308 = vpop.f32.mrf.mxu0
    %4309 = vdwg.mxu0
    %4310 = vmatpush.bf16.msra.mxu0 %v2978
    %4311 = vmatpush.bf16.msra.mxu0 %v2970
    %4312 = vmatpush.bf16.msra.mxu0 %v2962
    %4313 = vmatpush.bf16.msra.mxu0 %v2954
    %4314 = vmatpush.bf16.msra.mxu0 %v2946
    %4315 = vmatpush.bf16.msra.mxu0 %v2938
    %4316 = vmatpush.bf16.msra.mxu0 %v2930
    %4317 = vmatpush.bf16.msra.mxu0 %v2922
    %4318 = vmatmul.bf16.gmra.mxu0 %v922
    %v4319 = vpop.f32.mrf.mxu0
    %v4320 = vadd.f32 %v4307, %v4319
    %v4321 = vpop.f32.mrf.mxu0
    %4322 = vdwg.mxu0
    %v4331 = vrot.slane %v3696, 6
    %v4332 = vrot.slane %v3800, 4
    %v4333 = vrot.slane %v3904, 2
    %v4334 = vrot.slane %v4112, 6
    %v4335 = vrot.slane %v4216, 4
    %v4336 = vrot.slane %v4320, 2
    %vm4337 = vcmask 1041408
    %v4338 = vsel %vm4337, %v3592, %v4331
    %vm4339 = vcmask 1045508
    %v4340 = vsel %vm4339, %v4332, %v4333
    %vm4341 = vcmask 1043456
    %v4342 = vsel %vm4341, %v4338, %v4340
    %v4343 = vsel %vm4337, %v4008, %v4334
    %v4344 = vsel %vm4339, %v4335, %v4336
    %v4345 = vsel %vm4341, %v4343, %v4344
    %v4348 = vadd.f32 %v395, %v4342
    %v4349 = vadd.f32 %v396, %v4345
    %4350 = vst [vmem:[%s6] sm:$0xff] %v4348
    %4351 = vst [vmem:[%s6 + $0x8] sm:$0xff] %v4349
    // Predicated region
    $region42: #{cfg_denoiser_forward.1} parent=1 // pred_check
      _
    $region43: #{cfg_denoiser_forward.1} parent=1 // pred_check_branch
      %4353 = sbr.rel (0) target = $region45
    $region44: #{cfg_denoiser_forward.1} parent=1 // pred_region
      _
    $region45: #{cfg_denoiser_forward.1} parent=1 // pred_fallthru
      _
    // Predicated region
    $region46: #{cfg_denoiser_forward.1} parent=1 // pred_check
      _
    $region47: #{cfg_denoiser_forward.1} parent=1 // pred_check_branch
      %4355 = sbr.rel (0) target = $region49
    $region48: #{cfg_denoiser_forward.1} parent=1 // pred_region
      _
    $region49: #{cfg_denoiser_forward.1} parent=1 // pred_fallthru
      _
    %4356 = vsyncpa [#allocation4], 1
    %4357 = vsyncpa [#allocation6], 1

</llo_original>
